<compile_context>
chip_gen: v7x
topology: tpu7x:2x2x1
jax: 0.10.0
libtpu: 0.0.40
codegen_flags: <defaults>
</compile_context>

<pallas_src>
import functools

import jax
import jax.numpy as jnp
from jax.experimental import pallas as pl
from jax.experimental.pallas import tpu as pltpu


# ----------------------------- fused Pallas kernel -------------------------- #

def _fused_ldm_kernel(x_ref, wenc_ref, benc_ref, eps_ref, a_ref, s_ref, temb_ref,
                      wcat_ref, bin_ref, w1_ref, b1_ref, w2_ref, b2_ref,
                      wout_ref, bout_ref, o_ref, cat_ref, *, c_in, d_flat):
    # ---- frozen encoder: pointwise (1x1) projection as VPU broadcast-FMA ----
    # x_ref:   (C_in, B, D) with D = H*W*C_lat, element [c,b,p*C_lat+j] = x[b,p,c]
    # wenc_ref:(C_in, 1, D) element [c,0,p*C_lat+j] = w_enc[c,j]
    # Kept in f32 on purpose: v5e has no bf16 VPU/EUP path; bf16 only at MXU inputs.
    lat = benc_ref[...]                              # (1, D) bias, f32
    for c in range(c_in):                            # C_in FMAs, stays on the VPU
        lat = lat + x_ref[c] * wenc_ref[c]           # (B, D)
    lat = jnp.maximum(lat, 0.0)

    # ---- diffusion forward mix: sqrt(a_t)*latent + sqrt(1-a_t)*eps ----------
    diffused = a_ref[...] * lat + s_ref[...] * eps_ref[...]          # (B, D) f32

    # ---- fold time conditioning into the input matmul --------------------------
    # act = [diffused | temb_pad] (B, D+128); single MXU chain with W_cat instead
    # of a separate, heavily K-padded (B,32)x(32,HID) matmul.
    cat_ref[:, :d_flat] = diffused
    cat_ref[:, d_flat:] = temb_ref[...]
    act = cat_ref[...].astype(jnp.bfloat16)

    # ---- backbone: time-conditioned MLP-ResNet (bf16 MXU, f32 accumulate) ---
    h = jnp.dot(act, wcat_ref[...], preferred_element_type=jnp.float32)
    h = jnp.maximum(h + bin_ref[...], 0.0)                           # (B, HID)

    z = jnp.dot(h.astype(jnp.bfloat16), w1_ref[...],
                preferred_element_type=jnp.float32) + b1_ref[...]
    z = jnp.maximum(z, 0.0)
    h = h + jnp.dot(z.astype(jnp.bfloat16), w2_ref[...],
                    preferred_element_type=jnp.float32) + b2_ref[...]

    # Output projection uses only this grid step's (HID, tn) slice of w_out.
    out = jnp.dot(h.astype(jnp.bfloat16), wout_ref[...],
                  preferred_element_type=jnp.float32) + bout_ref[...]
    o_ref[...] = out.astype(o_ref.dtype)                 # (B, tn) lane-dense store


def fused_latent_diffusion(x_exp, w_enc_exp, b_enc_exp, eps_flat, a_sqrt, s_sqrt,
                           temb_pad, w_cat, b_in, w1, b1, w2, b2, w_out, b_out,
                           *, n_out_tiles=2):
    c_in, B, D = x_exp.shape
    KC, HID = w_cat.shape
    TP = temb_pad.shape[1]
    assert D % n_out_tiles == 0
    tn = D // n_out_tiles            # 1024 lanes per output tile -> unmasked vst

    def const(shape):
        # constant block index across the grid: fetched once, never re-DMA'd
        return pl.BlockSpec(shape, lambda j, _n=len(shape): (0,) * _n)

    return pl.pallas_call(
        functools.partial(_fused_ldm_kernel, c_in=c_in, d_flat=D),
        out_shape=jax.ShapeDtypeStruct((B, D), jnp.float32),
        grid=(n_out_tiles,),
        in_specs=[
            const((c_in, B, D)),   # expanded input pixels
            const((c_in, 1, D)),   # expanded encoder weight
            const((1, D)),         # expanded encoder bias
            const((B, D)),         # eps
            const((B, 1)),         # sqrt(alpha_t)
            const((B, 1)),         # sqrt(1 - alpha_t)
            const((B, TP)),        # time embedding, zero-padded to 128 lanes
            const((KC, HID)),      # W_cat = [w_in ; w_t_pad]  (bf16)
            const((1, HID)),       # b_in
            const((HID, HID)),     # w1   (bf16)
            const((1, HID)),       # b1
            const((HID, HID)),     # w2   (bf16)
            const((1, HID)),       # b2
            pl.BlockSpec((HID, tn), lambda j: (0, j)),   # w_out tile (bf16)
            pl.BlockSpec((1, tn), lambda j: (0, j)),     # b_out tile
        ],
        out_specs=pl.BlockSpec((B, tn), lambda j: (0, j)),
        scratch_shapes=[pltpu.VMEM((B, KC), jnp.float32)],   # [diffused | temb] staging
        compiler_params=pltpu.CompilerParams(
            # Disjoint output tiles -> safe to shard across v7x's two TensorCores.
            dimension_semantics=("parallel",),
            vmem_limit_bytes=32 * 1024 * 1024),
    )(x_exp, w_enc_exp, b_enc_exp, eps_flat, a_sqrt, s_sqrt, temb_pad,
      w_cat, b_in, w1, b1, w2, b2, w_out, b_out)


# ------------------------------ model wrapper ------------------------------- #

def sinusoidal_time_encoding(t, dim):
    """SinusoidalPosEncoder: t (B,) int -> (B, dim) float32."""
    half = dim // 2
    freqs = jnp.exp(-jnp.log(10000.0) * jnp.arange(half, dtype=jnp.float32) / half)
    args = t.astype(jnp.float32)[:, None] * freqs[None, :]
    return jnp.concatenate([jnp.sin(args), jnp.cos(args)], axis=-1)


def init_params(key, c_in, c_lat, d_flat, hidden, temporal_dim):
    ks = jax.random.split(key, 8)

    def dense(k, fan_in, fan_out):
        return jax.random.normal(k, (fan_in, fan_out), jnp.float32) / jnp.sqrt(float(fan_in))

    return {
        # frozen encoder (pointwise projection)
        "w_enc": dense(ks[0], c_in, c_lat),
        "b_enc": jnp.zeros((c_lat,), jnp.float32),
        # backbone (MLP-ResNet style)
        "w_in": dense(ks[1], d_flat, hidden),
        "w_t": dense(ks[2], temporal_dim, hidden),
        "b_in": jnp.zeros((hidden,), jnp.float32),
        "w1": dense(ks[3], hidden, hidden),
        "b1": jnp.zeros((hidden,), jnp.float32),
        "w2": dense(ks[4], hidden, hidden),
        "b2": jnp.zeros((hidden,), jnp.float32),
        "w_out": dense(ks[5], hidden, d_flat),
        "b_out": jnp.zeros((d_flat,), jnp.float32),
    }


def prepare_model(params, *, H, W, time_steps, beta_1, beta_T, temporal_dim, t_pad=128):
    """One-time (param-only) layout plumbing, hoisted out of the per-step path.

    - encoder 1x1-conv weights expanded to the lane-dense flattened-latent layout
    - w_t zero-padded to 128 rows and concatenated under w_in -> W_cat
    - bf16 casts of all MXU weights
    - noise schedule sqrt(alpha_t) / sqrt(1-alpha_t) tables
    """
    c_lat = params["w_enc"].shape[1]
    hidden = params["w1"].shape[0]
    P = H * W

    w_enc_exp = jnp.tile(params["w_enc"], (1, P))[:, None, :]            # (C_in,1,D)
    b_enc_exp = jnp.tile(params["b_enc"], (P,))[None, :]                 # (1, D)

    w_t_pad = jnp.zeros((t_pad, hidden), jnp.float32).at[:temporal_dim].set(params["w_t"])
    w_cat = jnp.concatenate([params["w_in"], w_t_pad], axis=0).astype(jnp.bfloat16)

    # noise schedule (matches BPSDiffusionModel.__init__:
    #   exp(tril(ones) @ log(1 - beta)) == cumprod(1 - beta))
    beta = jnp.linspace(beta_1, beta_T, time_steps, dtype=jnp.float32)
    alpha = jnp.cumprod(1.0 - beta)

    return {
        "w_enc_exp": w_enc_exp, "b_enc_exp": b_enc_exp,
        "w_cat": w_cat, "b_in": params["b_in"][None, :],
        "w1": params["w1"].astype(jnp.bfloat16), "b1": params["b1"][None, :],
        "w2": params["w2"].astype(jnp.bfloat16), "b2": params["b2"][None, :],
        "w_out": params["w_out"].astype(jnp.bfloat16), "b_out": params["b_out"][None, :],
        "sqrt_alpha": jnp.sqrt(alpha),
        "sqrt_one_minus_alpha": jnp.sqrt(1.0 - alpha),
    }


def latent_diffusion_forward(prep, x_nchw, rng_key, *, c_lat, temporal_dim=32, t_pad=128):
    """Returns (eps_hat, eps), each (B, H, W, C_lat) channels-last."""
    B, C, H, W = x_nchw.shape
    P = H * W
    d_flat = P * c_lat
    time_steps = prep["sqrt_alpha"].shape[0]

    # --- per-call layout plumbing (depends on x only) ------------------------
    x_nhwc = jnp.transpose(x_nchw, (0, 2, 3, 1)).astype(jnp.float32)
    x_cbp = jnp.transpose(x_nhwc.reshape(B, P, C), (2, 0, 1))            # (C, B, P)
    x_exp = jnp.repeat(x_cbp, c_lat, axis=-1)                            # (C, B, D)

    # --- diffusion forward: t ~ U[0, T), eps ~ N(0, I) ------------------------
    # NOTE: eps stays in the wrapper (jax.random) to keep bit-compatibility with
    # the reference; in-kernel pltpu.prng_* would save one RNG launch otherwise.
    k_t, k_eps = jax.random.split(rng_key)
    t = jax.random.randint(k_t, (B,), 0, time_steps)
    eps_flat = jax.random.normal(k_eps, (B, d_flat), jnp.float32)

    a_sqrt = prep["sqrt_alpha"][t][:, None]                              # (B, 1)
    s_sqrt = prep["sqrt_one_minus_alpha"][t][:, None]                    # (B, 1)

    t_emb = sinusoidal_time_encoding(t, temporal_dim)                    # (B, Tdim)
    temb_pad = jnp.pad(t_emb, ((0, 0), (0, t_pad - temporal_dim)))       # (B, 128)

    eps_hat_flat = fused_latent_diffusion(
        x_exp, prep["w_enc_exp"], prep["b_enc_exp"], eps_flat, a_sqrt, s_sqrt,
        temb_pad, prep["w_cat"], prep["b_in"], prep["w1"], prep["b1"],
        prep["w2"], prep["b2"], prep["w_out"], prep["b_out"])

    eps_hat = eps_hat_flat.reshape(B, H, W, c_lat)
    eps = eps_flat.reshape(B, H, W, c_lat)
    return eps_hat, eps


def _reference_forward(params, x_nchw, *, time_steps, beta_1, beta_T, rng_key,
                       temporal_dim=32):
    """Pure-JAX reference with identical bf16-at-matmul casting (separate w_in/w_t)."""
    B, C, H, W = x_nchw.shape
    c_lat = params["w_enc"].shape[1]
    P = H * W
    d_flat = P * c_lat
    x_nhwc = jnp.transpose(x_nchw, (0, 2, 3, 1)).astype(jnp.float32)
    pix = x_nhwc.reshape(B * P, C)
    lat = jnp.maximum(pix @ params["w_enc"] + params["b_enc"], 0.0).reshape(B, d_flat)
    beta = jnp.linspace(beta_1, beta_T, time_steps, dtype=jnp.float32)
    alpha = jnp.cumprod(1.0 - beta)
    k_t, k_eps = jax.random.split(rng_key)
    t = jax.random.randint(k_t, (B,), 0, time_steps)
    eps_flat = jax.random.normal(k_eps, (B, d_flat), jnp.float32)
    a = alpha[t]
    diffused = jnp.sqrt(a)[:, None] * lat + jnp.sqrt(1.0 - a)[:, None] * eps_flat
    t_emb = sinusoidal_time_encoding(t, temporal_dim)
    dot = lambda u, v: jnp.dot(u.astype(jnp.bfloat16), v.astype(jnp.bfloat16),
                               preferred_element_type=jnp.float32)
    h = jnp.maximum(dot(diffused, params["w_in"]) + dot(t_emb, params["w_t"])
                    + params["b_in"], 0.0)
    z = jnp.maximum(dot(h, params["w1"]) + params["b1"], 0.0)
    h = h + dot(z, params["w2"]) + params["b2"]
    eps_hat = dot(h, params["w_out"]) + params["b_out"]
    return eps_hat.reshape(B, H, W, c_lat), eps_flat.reshape(B, H, W, c_lat)


# ---------------------------------- main ------------------------------------ #

if __name__ == "__main__":
    key = jax.random.PRNGKey(0)
    k_x, k_p, k_fwd = jax.random.split(key, 3)

    B, C, H, W = 2, 4, 16, 16          # PyTorch-style NCHW input
    C_LAT = 8                          # latent channels from the frozen encoder
    HIDDEN = 256
    TEMPORAL_DIM = 32
    TIME_STEPS = 100
    BETA_1, BETA_T = 1e-4, 0.02

    x = jax.random.normal(k_x, (B, C, H, W), jnp.float32)
    params = init_params(k_p, C, C_LAT, H * W * C_LAT, HIDDEN, TEMPORAL_DIM)

    # one-time weight layout plumbing (outside the per-step jitted path)
    prep = prepare_model(params, H=H, W=W, time_steps=TIME_STEPS,
                         beta_1=BETA_1, beta_T=BETA_T, temporal_dim=TEMPORAL_DIM)

    fwd = jax.jit(latent_diffusion_forward,
                  static_argnames=("c_lat", "temporal_dim", "t_pad"))
    eps_hat, eps = fwd(prep, x, k_fwd, c_lat=C_LAT, temporal_dim=TEMPORAL_DIM)
    jax.block_until_ready((eps_hat, eps))

    # correctness check against pure-JAX reference (same RNG, same bf16 casts)
    ref_eps_hat, ref_eps = _reference_forward(
        params, x, time_steps=TIME_STEPS, beta_1=BETA_1, beta_T=BETA_T,
        rng_key=k_fwd, temporal_dim=TEMPORAL_DIM)

    assert eps_hat.shape == (B, H, W, C_LAT) and eps.shape == (B, H, W, C_LAT)
    assert jnp.all(jnp.isfinite(eps_hat)) and jnp.all(jnp.isfinite(eps))
    assert jnp.allclose(eps, ref_eps)
    assert jnp.allclose(eps_hat, ref_eps_hat, atol=5e-2, rtol=5e-2)
    print("KERNEL_OK")
</pallas_src>

<mosaic_0001>
module attributes {stable_mosaic.version = 11 : i64} {
  func.func @_fused_ldm_kernel(%arg0: i32, %arg1: memref<4x2x2048xf32, #tpu.memory_space<vmem>>, %arg2: memref<4x1x2048xf32, #tpu.memory_space<vmem>>, %arg3: memref<1x2048xf32, #tpu.memory_space<vmem>>, %arg4: memref<2x2048xf32, #tpu.memory_space<vmem>>, %arg5: memref<2x1xf32, #tpu.memory_space<vmem>>, %arg6: memref<2x1xf32, #tpu.memory_space<vmem>>, %arg7: memref<2x128xf32, #tpu.memory_space<vmem>>, %arg8: memref<2176x256xbf16, #tpu.memory_space<vmem>>, %arg9: memref<1x256xf32, #tpu.memory_space<vmem>>, %arg10: memref<256x256xbf16, #tpu.memory_space<vmem>>, %arg11: memref<1x256xf32, #tpu.memory_space<vmem>>, %arg12: memref<256x256xbf16, #tpu.memory_space<vmem>>, %arg13: memref<1x256xf32, #tpu.memory_space<vmem>>, %arg14: memref<256x1024xbf16, #tpu.memory_space<vmem>>, %arg15: memref<1x1024xf32, #tpu.memory_space<vmem>>, %arg16: memref<2x1024xf32, #tpu.memory_space<vmem>>, %arg17: memref<2x2176xf32, #tpu.memory_space<vmem>>) attributes {dimension_semantics = [#tpu.dimension_semantics<parallel>], iteration_bounds = array<i64: 2>, scalar_prefetch = 0 : i64, scratch_operands = 1 : i64, tpu.core_type = #tpu.core_type<tc>, window_params = [{pipeline_mode = #tpu.pipeline_mode<synchronous>, transform_indices = @transform_0, window_bounds = array<i64: 4, 2, 2048>}, {pipeline_mode = #tpu.pipeline_mode<synchronous>, transform_indices = @transform_1, window_bounds = array<i64: 4, 1, 2048>}, {pipeline_mode = #tpu.pipeline_mode<synchronous>, transform_indices = @transform_2, window_bounds = array<i64: 1, 2048>}, {pipeline_mode = #tpu.pipeline_mode<synchronous>, transform_indices = @transform_3, window_bounds = array<i64: 2, 2048>}, {pipeline_mode = #tpu.pipeline_mode<synchronous>, transform_indices = @transform_4, window_bounds = array<i64: 2, 1>}, {pipeline_mode = #tpu.pipeline_mode<synchronous>, transform_indices = @transform_5, window_bounds = array<i64: 2, 1>}, {pipeline_mode = #tpu.pipeline_mode<synchronous>, transform_indices = @transform_6, window_bounds = array<i64: 2, 128>}, {pipeline_mode = #tpu.pipeline_mode<synchronous>, transform_indices = @transform_7, window_bounds = array<i64: 2176, 256>}, {pipeline_mode = #tpu.pipeline_mode<synchronous>, transform_indices = @transform_8, window_bounds = array<i64: 1, 256>}, {pipeline_mode = #tpu.pipeline_mode<synchronous>, transform_indices = @transform_9, window_bounds = array<i64: 256, 256>}, {pipeline_mode = #tpu.pipeline_mode<synchronous>, transform_indices = @transform_10, window_bounds = array<i64: 1, 256>}, {pipeline_mode = #tpu.pipeline_mode<synchronous>, transform_indices = @transform_11, window_bounds = array<i64: 256, 256>}, {pipeline_mode = #tpu.pipeline_mode<synchronous>, transform_indices = @transform_12, window_bounds = array<i64: 1, 256>}, {transform_indices = @transform_13, window_bounds = array<i64: 256, 1024>}, {transform_indices = @transform_14, window_bounds = array<i64: 1, 1024>}, {transform_indices = @transform_15, window_bounds = array<i64: 2, 1024>}]} {
    %c0 = arith.constant 0 : index
    %c0_0 = arith.constant 0 : index
    %0 = vector.load %arg3[%c0, %c0_0] : memref<1x2048xf32, #tpu.memory_space<vmem>>, vector<1x2048xf32>
    %c0_1 = arith.constant 0 : index
    %c0_2 = arith.constant 0 : index
    %c0_3 = arith.constant 0 : index
    %1 = vector.load %arg1[%c0_1, %c0_2, %c0_3] : memref<4x2x2048xf32, #tpu.memory_space<vmem>>, vector<1x2x2048xf32>
    %2 = vector.shape_cast %1 : vector<1x2x2048xf32> to vector<2x2048xf32>
    %c0_4 = arith.constant 0 : index
    %c0_5 = arith.constant 0 : index
    %c0_6 = arith.constant 0 : index
    %3 = vector.load %arg2[%c0_4, %c0_5, %c0_6] : memref<4x1x2048xf32, #tpu.memory_space<vmem>>, vector<1x1x2048xf32>
    %4 = vector.shape_cast %3 : vector<1x1x2048xf32> to vector<1x2048xf32>
    %5 = vector.broadcast %4 : vector<1x2048xf32> to vector<2x2048xf32>
    %6 = arith.mulf %2, %5 : vector<2x2048xf32>
    %7 = vector.broadcast %0 : vector<1x2048xf32> to vector<2x2048xf32>
    %8 = arith.addf %7, %6 : vector<2x2048xf32>
    %c1 = arith.constant 1 : index
    %c0_7 = arith.constant 0 : index
    %c0_8 = arith.constant 0 : index
    %9 = vector.load %arg1[%c1, %c0_7, %c0_8] : memref<4x2x2048xf32, #tpu.memory_space<vmem>>, vector<1x2x2048xf32>
    %10 = vector.shape_cast %9 : vector<1x2x2048xf32> to vector<2x2048xf32>
    %c1_9 = arith.constant 1 : index
    %c0_10 = arith.constant 0 : index
    %c0_11 = arith.constant 0 : index
    %11 = vector.load %arg2[%c1_9, %c0_10, %c0_11] : memref<4x1x2048xf32, #tpu.memory_space<vmem>>, vector<1x1x2048xf32>
    %12 = vector.shape_cast %11 : vector<1x1x2048xf32> to vector<1x2048xf32>
    %13 = vector.broadcast %12 : vector<1x2048xf32> to vector<2x2048xf32>
    %14 = arith.mulf %10, %13 : vector<2x2048xf32>
    %15 = arith.addf %8, %14 : vector<2x2048xf32>
    %c2 = arith.constant 2 : index
    %c0_12 = arith.constant 0 : index
    %c0_13 = arith.constant 0 : index
    %16 = vector.load %arg1[%c2, %c0_12, %c0_13] : memref<4x2x2048xf32, #tpu.memory_space<vmem>>, vector<1x2x2048xf32>
    %17 = vector.shape_cast %16 : vector<1x2x2048xf32> to vector<2x2048xf32>
    %c2_14 = arith.constant 2 : index
    %c0_15 = arith.constant 0 : index
    %c0_16 = arith.constant 0 : index
    %18 = vector.load %arg2[%c2_14, %c0_15, %c0_16] : memref<4x1x2048xf32, #tpu.memory_space<vmem>>, vector<1x1x2048xf32>
    %19 = vector.shape_cast %18 : vector<1x1x2048xf32> to vector<1x2048xf32>
    %20 = vector.broadcast %19 : vector<1x2048xf32> to vector<2x2048xf32>
    %21 = arith.mulf %17, %20 : vector<2x2048xf32>
    %22 = arith.addf %15, %21 : vector<2x2048xf32>
    %c3 = arith.constant 3 : index
    %c0_17 = arith.constant 0 : index
    %c0_18 = arith.constant 0 : index
    %23 = vector.load %arg1[%c3, %c0_17, %c0_18] : memref<4x2x2048xf32, #tpu.memory_space<vmem>>, vector<1x2x2048xf32>
    %24 = vector.shape_cast %23 : vector<1x2x2048xf32> to vector<2x2048xf32>
    %c3_19 = arith.constant 3 : index
    %c0_20 = arith.constant 0 : index
    %c0_21 = arith.constant 0 : index
    %25 = vector.load %arg2[%c3_19, %c0_20, %c0_21] : memref<4x1x2048xf32, #tpu.memory_space<vmem>>, vector<1x1x2048xf32>
    %26 = vector.shape_cast %25 : vector<1x1x2048xf32> to vector<1x2048xf32>
    %27 = vector.broadcast %26 : vector<1x2048xf32> to vector<2x2048xf32>
    %28 = arith.mulf %24, %27 : vector<2x2048xf32>
    %29 = arith.addf %22, %28 : vector<2x2048xf32>
    %cst = arith.constant 0.000000e+00 : f32
    %30 = vector.broadcast %cst : f32 to vector<2x2048xf32>
    %31 = arith.maximumf %29, %30 : vector<2x2048xf32>
    %c0_22 = arith.constant 0 : index
    %c0_23 = arith.constant 0 : index
    %32 = vector.load %arg5[%c0_22, %c0_23] : memref<2x1xf32, #tpu.memory_space<vmem>>, vector<2x1xf32>
    %33 = vector.broadcast %32 : vector<2x1xf32> to vector<2x2048xf32>
    %34 = arith.mulf %33, %31 : vector<2x2048xf32>
    %c0_24 = arith.constant 0 : index
    %c0_25 = arith.constant 0 : index
    %35 = vector.load %arg6[%c0_24, %c0_25] : memref<2x1xf32, #tpu.memory_space<vmem>>, vector<2x1xf32>
    %c0_26 = arith.constant 0 : index
    %c0_27 = arith.constant 0 : index
    %36 = vector.load %arg4[%c0_26, %c0_27] : memref<2x2048xf32, #tpu.memory_space<vmem>>, vector<2x2048xf32>
    %37 = vector.broadcast %35 : vector<2x1xf32> to vector<2x2048xf32>
    %38 = arith.mulf %37, %36 : vector<2x2048xf32>
    %39 = arith.addf %34, %38 : vector<2x2048xf32>
    %c0_28 = arith.constant 0 : index
    %c0_29 = arith.constant 0 : index
    %40 = vector.load %arg17[%c0_28, %c0_29] : memref<2x2176xf32, #tpu.memory_space<vmem>>, vector<2x2048xf32>
    tpu.vector_store %arg17[%c0_28, %c0_29], %39 {strides = array<i32>} : memref<2x2176xf32, #tpu.memory_space<vmem>>, vector<2x2048xf32>,
    %c0_30 = arith.constant 0 : index
    %c0_31 = arith.constant 0 : index
    %41 = vector.load %arg7[%c0_30, %c0_31] : memref<2x128xf32, #tpu.memory_space<vmem>>, vector<2x128xf32>
    %c0_32 = arith.constant 0 : index
    %c2048 = arith.constant 2048 : index
    %42 = vector.load %arg17[%c0_32, %c2048] : memref<2x2176xf32, #tpu.memory_space<vmem>>, vector<2x128xf32>
    tpu.vector_store %arg17[%c0_32, %c2048], %41 {strides = array<i32>} : memref<2x2176xf32, #tpu.memory_space<vmem>>, vector<2x128xf32>,
    %c0_33 = arith.constant 0 : index
    %c0_34 = arith.constant 0 : index
    %43 = vector.load %arg17[%c0_33, %c0_34] : memref<2x2176xf32, #tpu.memory_space<vmem>>, vector<2x2176xf32>
    %44 = arith.truncf %43 : vector<2x2176xf32> to vector<2x2176xbf16>
    %c0_35 = arith.constant 0 : index
    %c0_36 = arith.constant 0 : index
    %45 = vector.load %arg8[%c0_35, %c0_36] : memref<2176x256xbf16, #tpu.memory_space<vmem>>, vector<2176x256xbf16>
    %cst_37 = arith.constant dense<0.000000e+00> : vector<2x256xf32>
    %46 = tpu.matmul %44, %45, %cst_37 {dimension_numbers = #tpu.dot_dimension_numbers<[1], [0], [0], [1], [0, 0, 1, 1], [], []>} : vector<2x2176xbf16>, vector<2176x256xbf16>, vector<2x256xf32> -> vector<2x256xf32>
    %c0_38 = arith.constant 0 : index
    %c0_39 = arith.constant 0 : index
    %47 = vector.load %arg9[%c0_38, %c0_39] : memref<1x256xf32, #tpu.memory_space<vmem>>, vector<1x256xf32>
    %48 = vector.broadcast %47 : vector<1x256xf32> to vector<2x256xf32>
    %49 = arith.addf %46, %48 : vector<2x256xf32>
    %cst_40 = arith.constant 0.000000e+00 : f32
    %50 = vector.broadcast %cst_40 : f32 to vector<2x256xf32>
    %51 = arith.maximumf %49, %50 : vector<2x256xf32>
    %52 = arith.truncf %51 : vector<2x256xf32> to vector<2x256xbf16>
    %c0_41 = arith.constant 0 : index
    %c0_42 = arith.constant 0 : index
    %53 = vector.load %arg10[%c0_41, %c0_42] : memref<256x256xbf16, #tpu.memory_space<vmem>>, vector<256x256xbf16>
    %cst_43 = arith.constant dense<0.000000e+00> : vector<2x256xf32>
    %54 = tpu.matmul %52, %53, %cst_43 {dimension_numbers = #tpu.dot_dimension_numbers<[1], [0], [0], [1], [0, 0, 1, 1], [], []>} : vector<2x256xbf16>, vector<256x256xbf16>, vector<2x256xf32> -> vector<2x256xf32>
    %c0_44 = arith.constant 0 : index
    %c0_45 = arith.constant 0 : index
    %55 = vector.load %arg11[%c0_44, %c0_45] : memref<1x256xf32, #tpu.memory_space<vmem>>, vector<1x256xf32>
    %56 = vector.broadcast %55 : vector<1x256xf32> to vector<2x256xf32>
    %57 = arith.addf %54, %56 : vector<2x256xf32>
    %cst_46 = arith.constant 0.000000e+00 : f32
    %58 = vector.broadcast %cst_46 : f32 to vector<2x256xf32>
    %59 = arith.maximumf %57, %58 : vector<2x256xf32>
    %60 = arith.truncf %59 : vector<2x256xf32> to vector<2x256xbf16>
    %c0_47 = arith.constant 0 : index
    %c0_48 = arith.constant 0 : index
    %61 = vector.load %arg12[%c0_47, %c0_48] : memref<256x256xbf16, #tpu.memory_space<vmem>>, vector<256x256xbf16>
    %cst_49 = arith.constant dense<0.000000e+00> : vector<2x256xf32>
    %62 = tpu.matmul %60, %61, %cst_49 {dimension_numbers = #tpu.dot_dimension_numbers<[1], [0], [0], [1], [0, 0, 1, 1], [], []>} : vector<2x256xbf16>, vector<256x256xbf16>, vector<2x256xf32> -> vector<2x256xf32>
    %63 = arith.addf %51, %62 : vector<2x256xf32>
    %c0_50 = arith.constant 0 : index
    %c0_51 = arith.constant 0 : index
    %64 = vector.load %arg13[%c0_50, %c0_51] : memref<1x256xf32, #tpu.memory_space<vmem>>, vector<1x256xf32>
    %65 = vector.broadcast %64 : vector<1x256xf32> to vector<2x256xf32>
    %66 = arith.addf %63, %65 : vector<2x256xf32>
    %67 = arith.truncf %66 : vector<2x256xf32> to vector<2x256xbf16>
    %c0_52 = arith.constant 0 : index
    %c0_53 = arith.constant 0 : index
    %68 = vector.load %arg14[%c0_52, %c0_53] : memref<256x1024xbf16, #tpu.memory_space<vmem>>, vector<256x1024xbf16>
    %cst_54 = arith.constant dense<0.000000e+00> : vector<2x1024xf32>
    %69 = tpu.matmul %67, %68, %cst_54 {dimension_numbers = #tpu.dot_dimension_numbers<[1], [0], [0], [1], [0, 0, 1, 1], [], []>} : vector<2x256xbf16>, vector<256x1024xbf16>, vector<2x1024xf32> -> vector<2x1024xf32>
    %c0_55 = arith.constant 0 : index
    %c0_56 = arith.constant 0 : index
    %70 = vector.load %arg15[%c0_55, %c0_56] : memref<1x1024xf32, #tpu.memory_space<vmem>>, vector<1x1024xf32>
    %71 = vector.broadcast %70 : vector<1x1024xf32> to vector<2x1024xf32>
    %72 = arith.addf %69, %71 : vector<2x1024xf32>
    %c0_57 = arith.constant 0 : index
    %c0_58 = arith.constant 0 : index
    %73 = vector.load %arg16[%c0_57, %c0_58] : memref<2x1024xf32, #tpu.memory_space<vmem>>, vector<2x1024xf32>
    tpu.vector_store %arg16[%c0_57, %c0_58], %72 {strides = array<i32>} : memref<2x1024xf32, #tpu.memory_space<vmem>>, vector<2x1024xf32>,
    return
  }
  func.func @transform_0(%arg0: i32) -> (i32, i32, i32) {
    %c0_i32 = arith.constant 0 : i32
    %c0_i32_0 = arith.constant 0 : i32
    %c0_i32_1 = arith.constant 0 : i32
    %c0_i32_2 = arith.constant 0 : i32
    return %c0_i32, %c0_i32_0, %c0_i32_1 : i32, i32, i32
  }
  func.func @transform_1(%arg0: i32) -> (i32, i32, i32) {
    %c0_i32 = arith.constant 0 : i32
    %c0_i32_0 = arith.constant 0 : i32
    %c0_i32_1 = arith.constant 0 : i32
    %c0_i32_2 = arith.constant 0 : i32
    return %c0_i32, %c0_i32_0, %c0_i32_1 : i32, i32, i32
  }
  func.func @transform_2(%arg0: i32) -> (i32, i32) {
    %c0_i32 = arith.constant 0 : i32
    %c0_i32_0 = arith.constant 0 : i32
    %c0_i32_1 = arith.constant 0 : i32
    return %c0_i32, %c0_i32_0 : i32, i32
  }
  func.func @transform_3(%arg0: i32) -> (i32, i32) {
    %c0_i32 = arith.constant 0 : i32
    %c0_i32_0 = arith.constant 0 : i32
    %c0_i32_1 = arith.constant 0 : i32
    return %c0_i32, %c0_i32_0 : i32, i32
  }
  func.func @transform_4(%arg0: i32) -> (i32, i32) {
    %c0_i32 = arith.constant 0 : i32
    %c0_i32_0 = arith.constant 0 : i32
    %c0_i32_1 = arith.constant 0 : i32
    return %c0_i32, %c0_i32_0 : i32, i32
  }
  func.func @transform_5(%arg0: i32) -> (i32, i32) {
    %c0_i32 = arith.constant 0 : i32
    %c0_i32_0 = arith.constant 0 : i32
    %c0_i32_1 = arith.constant 0 : i32
    return %c0_i32, %c0_i32_0 : i32, i32
  }
  func.func @transform_6(%arg0: i32) -> (i32, i32) {
    %c0_i32 = arith.constant 0 : i32
    %c0_i32_0 = arith.constant 0 : i32
    %c0_i32_1 = arith.constant 0 : i32
    return %c0_i32, %c0_i32_0 : i32, i32
  }
  func.func @transform_7(%arg0: i32) -> (i32, i32) {
    %c0_i32 = arith.constant 0 : i32
    %c0_i32_0 = arith.constant 0 : i32
    %c0_i32_1 = arith.constant 0 : i32
    return %c0_i32, %c0_i32_0 : i32, i32
  }
  func.func @transform_8(%arg0: i32) -> (i32, i32) {
    %c0_i32 = arith.constant 0 : i32
    %c0_i32_0 = arith.constant 0 : i32
    %c0_i32_1 = arith.constant 0 : i32
    return %c0_i32, %c0_i32_0 : i32, i32
  }
  func.func @transform_9(%arg0: i32) -> (i32, i32) {
    %c0_i32 = arith.constant 0 : i32
    %c0_i32_0 = arith.constant 0 : i32
    %c0_i32_1 = arith.constant 0 : i32
    return %c0_i32, %c0_i32_0 : i32, i32
  }
  func.func @transform_10(%arg0: i32) -> (i32, i32) {
    %c0_i32 = arith.constant 0 : i32
    %c0_i32_0 = arith.constant 0 : i32
    %c0_i32_1 = arith.constant 0 : i32
    return %c0_i32, %c0_i32_0 : i32, i32
  }
  func.func @transform_11(%arg0: i32) -> (i32, i32) {
    %c0_i32 = arith.constant 0 : i32
    %c0_i32_0 = arith.constant 0 : i32
    %c0_i32_1 = arith.constant 0 : i32
    return %c0_i32, %c0_i32_0 : i32, i32
  }
  func.func @transform_12(%arg0: i32) -> (i32, i32) {
    %c0_i32 = arith.constant 0 : i32
    %c0_i32_0 = arith.constant 0 : i32
    %c0_i32_1 = arith.constant 0 : i32
    return %c0_i32, %c0_i32_0 : i32, i32
  }
  func.func @transform_13(%arg0: i32) -> (i32, i32) {
    %c0_i32 = arith.constant 0 : i32
    %c0_i32_0 = arith.constant 0 : i32
    return %c0_i32, %arg0 : i32, i32
  }
  func.func @transform_14(%arg0: i32) -> (i32, i32) {
    %c0_i32 = arith.constant 0 : i32
    %c0_i32_0 = arith.constant 0 : i32
    return %c0_i32, %arg0 : i32, i32
  }
  func.func @transform_15(%arg0: i32) -> (i32, i32) {
    %c0_i32 = arith.constant 0 : i32
    %c0_i32_0 = arith.constant 0 : i32
    return %c0_i32, %arg0 : i32, i32
  }
}

</mosaic_0001>

<llo_original>
// kernel: latent_diffusion_forward.21
$region0: #{latent_diffusion_forward.21}
  #allocation0 [shape = 'u32[]', space=smem, size = 0x4, offset = 0x4, fixed_abs, tag = 'smem constant byte address 0x4 - core index']
  #allocation1 [shape = 'u32[144,128]{1,0:T(1,128)}', space=vmem, size = 0x12000, scoped, tag = 'internal scratch']
  #allocation2 [shape = 'f32[2,2176]{1,0:T(2,128)}', space=vmem, size = 0x4400, scoped, tag = 'scratch operand']
  %s0 = inlined_call_operand.vmem [shape: f32[4,2,2048], index: 0, kind: input, shape index: {}]
  %s1 = inlined_call_operand.vmem [shape: f32[4,1,2048], index: 1, kind: input, shape index: {}]
  %s2 = inlined_call_operand.vmem [shape: f32[1,2048], index: 2, kind: input, shape index: {}]
  %s3 = inlined_call_operand.vmem [shape: f32[2,2048], index: 3, kind: input, shape index: {}]
  %s4 = inlined_call_operand.vmem [shape: f32[2,1], index: 4, kind: input, shape index: {}]
  %s5 = inlined_call_operand.vmem [shape: f32[2,1], index: 5, kind: input, shape index: {}]
  %s6 = inlined_call_operand.vmem [shape: f32[2,128], index: 6, kind: input, shape index: {}]
  %s7 = inlined_call_operand.vmem [shape: bf16[2176,256], index: 7, kind: input, shape index: {}]
  %s8 = inlined_call_operand.vmem [shape: f32[1,256], index: 8, kind: input, shape index: {}]
  %s9 = inlined_call_operand.vmem [shape: bf16[256,256], index: 9, kind: input, shape index: {}]
  %s10 = inlined_call_operand.vmem [shape: f32[1,256], index: 10, kind: input, shape index: {}]
  %s11 = inlined_call_operand.vmem [shape: bf16[256,256], index: 11, kind: input, shape index: {}]
  %s12 = inlined_call_operand.vmem [shape: f32[1,256], index: 12, kind: input, shape index: {}]
  %s13 = inlined_call_operand.vmem [shape: bf16[256,2048], index: 13, kind: input, shape index: {}]
  %s14 = inlined_call_operand.vmem [shape: f32[1,2048], index: 14, kind: input, shape index: {}]
  %s15 = inlined_call_operand.vmem [shape: f32[2,2048], index: 15, kind: output, shape index: {}]
  %s16 = sld [smem:[#allocation0]]
  $region116: #{latent_diffusion_forward.21} parent=0
    _
  %s18 = ssub.s32 1, %s16
  %s19 = scalar_select 0, %s18, %s16
  $region1: #{latent_diffusion_forward.21} parent=0
    #allocation3 [shape = 'u8[1048576]{0}', space=vmem, size = 0x100000, scoped, tag = 'input window, operand 13']
    loop: start=0, step=1, limit=4
    $region2: #{latent_diffusion_forward.21} parent=1 // loop_pre_header
      _
    $region3: #{latent_diffusion_forward.21} parent=1 // loop_header
      %s21 = sphi 0, %s25
      %p22 = scmp.ge.s32.totalorder %s21, 4
      %s29 = sphi 0, %s29
      %s31 = sphi 0, %s29
      %s32 = sphi 0, %s31
      %s46 = sphi 0, %s32
      %s50 = sphi 0, %s50
      %s52 = sphi 0, %s50
      %s53 = sphi 0, %s52
      %s67 = sphi 0, %s53
      %s71 = sphi 0, %s71
      %s73 = sphi 0, %s71
      %s74 = sphi 0, %s73
      %s88 = sphi 0, %s74
      %s92 = sphi 0, %s92
      %s94 = sphi 0, %s92
      %s95 = sphi 0, %s94
      %s109 = sphi 0, %s95
      %s113 = sphi 0, %s113
      %s115 = sphi 0, %s113
      %s116 = sphi 0, %s115
      %s130 = sphi 0, %s116
      %s134 = sphi 0, %s134
      %s136 = sphi 0, %s134
      %s137 = sphi 0, %s136
      %s151 = sphi 0, %s137
      %s155 = sphi 0, %s155
      %s157 = sphi 0, %s155
      %s158 = sphi 0, %s157
      %s172 = sphi 0, %s158
      %s176 = sphi 0, %s176
      %s178 = sphi 0, %s176
      %s179 = sphi 0, %s178
      %s193 = sphi 0, %s179
      %s197 = sphi 0, %s197
      %s199 = sphi 0, %s197
      %s200 = sphi 0, %s199
      %s214 = sphi 0, %s200
      %s218 = sphi 0, %s218
      %s220 = sphi 0, %s218
      %s221 = sphi 0, %s220
      %s235 = sphi 0, %s221
      %s239 = sphi 0, %s239
      %s241 = sphi 0, %s239
      %s242 = sphi 0, %s241
      %s256 = sphi 0, %s242
      %s260 = sphi 0, %s260
      %s262 = sphi 0, %s260
      %s263 = sphi 0, %s262
      %s277 = sphi 0, %s263
      %s281 = sphi 0, %s281
      %s283 = sphi 0, %s281
      %s284 = sphi 0, %s283
      %s298 = sphi 0, %s284
      %s304 = sphi 0, %s306
      %s307 = sphi 0, %s304
      %s308 = sphi 0, %s307
      %s324 = sphi 0, %s308
      %s330 = sphi 0, %s332
      %s333 = sphi 0, %s330
      %s334 = sphi 0, %s333
      %s350 = sphi 0, %s334
      %s356 = sphi 0, %s358
      %s359 = sphi 0, %s356
      %s360 = sphi 0, %s359
      %s376 = sphi 0, %s360
    $region4: #{latent_diffusion_forward.21} parent=1 // loop_header_branch
      %24 = sbr.rel (%p22) target = $region8
    $region5: #{latent_diffusion_forward.21} parent=1 // loop_body
      %s26 = ssub.s32 %s21, 1
      %s27 = ssub.s32 %s21, 2
      %s28 = sadd.s32 %s21, 1
      %s30 = sadd.s32 %s29, 1
      %p33 = scmp.eq.s32.totalorder %s21, 1
      %p34 = scmp.ne.s32.totalorder %s29, %s31
      %p35 = scmp.eq.s32.totalorder %s21, 0
      %p36 = por %p34, %p35
      %p37 = scmp.ne.s32.totalorder %s29, %s31
      %p38 = scmp.eq.s32.totalorder %s26, 1
      %p39 = por %p37, %p38
      %p40 = scmp.ne.s32.totalorder %s31, %s32
      %p41 = scmp.eq.s32.totalorder %s26, 0
      %p42 = por %p40, %p41
      %p43 = scmp.ne.s32.totalorder %s31, %s32
      %p44 = scmp.eq.s32.totalorder %s27, 1
      %p45 = por %p43, %p44
      %p47 = scmp.ne.s32.totalorder %s32, %s46
      %p48 = scmp.eq.s32.totalorder %s27, 0
      %p49 = por %p47, %p48
      %s51 = sadd.s32 %s50, 1
      %p54 = scmp.eq.s32.totalorder %s21, 1
      %p55 = scmp.ne.s32.totalorder %s50, %s52
      %p56 = scmp.eq.s32.totalorder %s21, 0
      %p57 = por %p55, %p56
      %p58 = scmp.ne.s32.totalorder %s50, %s52
      %p59 = scmp.eq.s32.totalorder %s26, 1
      %p60 = por %p58, %p59
      %p61 = scmp.ne.s32.totalorder %s52, %s53
      %p62 = scmp.eq.s32.totalorder %s26, 0
      %p63 = por %p61, %p62
      %p64 = scmp.ne.s32.totalorder %s52, %s53
      %p65 = scmp.eq.s32.totalorder %s27, 1
      %p66 = por %p64, %p65
      %p68 = scmp.ne.s32.totalorder %s53, %s67
      %p69 = scmp.eq.s32.totalorder %s27, 0
      %p70 = por %p68, %p69
      %s72 = sadd.s32 %s71, 1
      %p75 = scmp.eq.s32.totalorder %s21, 1
      %p76 = scmp.ne.s32.totalorder %s71, %s73
      %p77 = scmp.eq.s32.totalorder %s21, 0
      %p78 = por %p76, %p77
      %p79 = scmp.ne.s32.totalorder %s71, %s73
      %p80 = scmp.eq.s32.totalorder %s26, 1
      %p81 = por %p79, %p80
      %p82 = scmp.ne.s32.totalorder %s73, %s74
      %p83 = scmp.eq.s32.totalorder %s26, 0
      %p84 = por %p82, %p83
      %p85 = scmp.ne.s32.totalorder %s73, %s74
      %p86 = scmp.eq.s32.totalorder %s27, 1
      %p87 = por %p85, %p86
      %p89 = scmp.ne.s32.totalorder %s74, %s88
      %p90 = scmp.eq.s32.totalorder %s27, 0
      %p91 = por %p89, %p90
      %s93 = sadd.s32 %s92, 1
      %p96 = scmp.eq.s32.totalorder %s21, 1
      %p97 = scmp.ne.s32.totalorder %s92, %s94
      %p98 = scmp.eq.s32.totalorder %s21, 0
      %p99 = por %p97, %p98
      %p100 = scmp.ne.s32.totalorder %s92, %s94
      %p101 = scmp.eq.s32.totalorder %s26, 1
      %p102 = por %p100, %p101
      %p103 = scmp.ne.s32.totalorder %s94, %s95
      %p104 = scmp.eq.s32.totalorder %s26, 0
      %p105 = por %p103, %p104
      %p106 = scmp.ne.s32.totalorder %s94, %s95
      %p107 = scmp.eq.s32.totalorder %s27, 1
      %p108 = por %p106, %p107
      %p110 = scmp.ne.s32.totalorder %s95, %s109
      %p111 = scmp.eq.s32.totalorder %s27, 0
      %p112 = por %p110, %p111
      %s114 = sadd.s32 %s113, 1
      %p117 = scmp.eq.s32.totalorder %s21, 1
      %p118 = scmp.ne.s32.totalorder %s113, %s115
      %p119 = scmp.eq.s32.totalorder %s21, 0
      %p120 = por %p118, %p119
      %p121 = scmp.ne.s32.totalorder %s113, %s115
      %p122 = scmp.eq.s32.totalorder %s26, 1
      %p123 = por %p121, %p122
      %p124 = scmp.ne.s32.totalorder %s115, %s116
      %p125 = scmp.eq.s32.totalorder %s26, 0
      %p126 = por %p124, %p125
      %p127 = scmp.ne.s32.totalorder %s115, %s116
      %p128 = scmp.eq.s32.totalorder %s27, 1
      %p129 = por %p127, %p128
      %p131 = scmp.ne.s32.totalorder %s116, %s130
      %p132 = scmp.eq.s32.totalorder %s27, 0
      %p133 = por %p131, %p132
      %s135 = sadd.s32 %s134, 1
      %p138 = scmp.eq.s32.totalorder %s21, 1
      %p139 = scmp.ne.s32.totalorder %s134, %s136
      %p140 = scmp.eq.s32.totalorder %s21, 0
      %p141 = por %p139, %p140
      %p142 = scmp.ne.s32.totalorder %s134, %s136
      %p143 = scmp.eq.s32.totalorder %s26, 1
      %p144 = por %p142, %p143
      %p145 = scmp.ne.s32.totalorder %s136, %s137
      %p146 = scmp.eq.s32.totalorder %s26, 0
      %p147 = por %p145, %p146
      %p148 = scmp.ne.s32.totalorder %s136, %s137
      %p149 = scmp.eq.s32.totalorder %s27, 1
      %p150 = por %p148, %p149
      %p152 = scmp.ne.s32.totalorder %s137, %s151
      %p153 = scmp.eq.s32.totalorder %s27, 0
      %p154 = por %p152, %p153
      %s156 = sadd.s32 %s155, 1
      %p159 = scmp.eq.s32.totalorder %s21, 1
      %p160 = scmp.ne.s32.totalorder %s155, %s157
      %p161 = scmp.eq.s32.totalorder %s21, 0
      %p162 = por %p160, %p161
      %p163 = scmp.ne.s32.totalorder %s155, %s157
      %p164 = scmp.eq.s32.totalorder %s26, 1
      %p165 = por %p163, %p164
      %p166 = scmp.ne.s32.totalorder %s157, %s158
      %p167 = scmp.eq.s32.totalorder %s26, 0
      %p168 = por %p166, %p167
      %p169 = scmp.ne.s32.totalorder %s157, %s158
      %p170 = scmp.eq.s32.totalorder %s27, 1
      %p171 = por %p169, %p170
      %p173 = scmp.ne.s32.totalorder %s158, %s172
      %p174 = scmp.eq.s32.totalorder %s27, 0
      %p175 = por %p173, %p174
      %s177 = sadd.s32 %s176, 1
      %p180 = scmp.eq.s32.totalorder %s21, 1
      %p181 = scmp.ne.s32.totalorder %s176, %s178
      %p182 = scmp.eq.s32.totalorder %s21, 0
      %p183 = por %p181, %p182
      %p184 = scmp.ne.s32.totalorder %s176, %s178
      %p185 = scmp.eq.s32.totalorder %s26, 1
      %p186 = por %p184, %p185
      %p187 = scmp.ne.s32.totalorder %s178, %s179
      %p188 = scmp.eq.s32.totalorder %s26, 0
      %p189 = por %p187, %p188
      %p190 = scmp.ne.s32.totalorder %s178, %s179
      %p191 = scmp.eq.s32.totalorder %s27, 1
      %p192 = por %p190, %p191
      %p194 = scmp.ne.s32.totalorder %s179, %s193
      %p195 = scmp.eq.s32.totalorder %s27, 0
      %p196 = por %p194, %p195
      %s198 = sadd.s32 %s197, 1
      %p201 = scmp.eq.s32.totalorder %s21, 1
      %p202 = scmp.ne.s32.totalorder %s197, %s199
      %p203 = scmp.eq.s32.totalorder %s21, 0
      %p204 = por %p202, %p203
      %p205 = scmp.ne.s32.totalorder %s197, %s199
      %p206 = scmp.eq.s32.totalorder %s26, 1
      %p207 = por %p205, %p206
      %p208 = scmp.ne.s32.totalorder %s199, %s200
      %p209 = scmp.eq.s32.totalorder %s26, 0
      %p210 = por %p208, %p209
      %p211 = scmp.ne.s32.totalorder %s199, %s200
      %p212 = scmp.eq.s32.totalorder %s27, 1
      %p213 = por %p211, %p212
      %p215 = scmp.ne.s32.totalorder %s200, %s214
      %p216 = scmp.eq.s32.totalorder %s27, 0
      %p217 = por %p215, %p216
      %s219 = sadd.s32 %s218, 1
      %p222 = scmp.eq.s32.totalorder %s21, 1
      %p223 = scmp.ne.s32.totalorder %s218, %s220
      %p224 = scmp.eq.s32.totalorder %s21, 0
      %p225 = por %p223, %p224
      %p226 = scmp.ne.s32.totalorder %s218, %s220
      %p227 = scmp.eq.s32.totalorder %s26, 1
      %p228 = por %p226, %p227
      %p229 = scmp.ne.s32.totalorder %s220, %s221
      %p230 = scmp.eq.s32.totalorder %s26, 0
      %p231 = por %p229, %p230
      %p232 = scmp.ne.s32.totalorder %s220, %s221
      %p233 = scmp.eq.s32.totalorder %s27, 1
      %p234 = por %p232, %p233
      %p236 = scmp.ne.s32.totalorder %s221, %s235
      %p237 = scmp.eq.s32.totalorder %s27, 0
      %p238 = por %p236, %p237
      %s240 = sadd.s32 %s239, 1
      %p243 = scmp.eq.s32.totalorder %s21, 1
      %p244 = scmp.ne.s32.totalorder %s239, %s241
      %p245 = scmp.eq.s32.totalorder %s21, 0
      %p246 = por %p244, %p245
      %p247 = scmp.ne.s32.totalorder %s239, %s241
      %p248 = scmp.eq.s32.totalorder %s26, 1
      %p249 = por %p247, %p248
      %p250 = scmp.ne.s32.totalorder %s241, %s242
      %p251 = scmp.eq.s32.totalorder %s26, 0
      %p252 = por %p250, %p251
      %p253 = scmp.ne.s32.totalorder %s241, %s242
      %p254 = scmp.eq.s32.totalorder %s27, 1
      %p255 = por %p253, %p254
      %p257 = scmp.ne.s32.totalorder %s242, %s256
      %p258 = scmp.eq.s32.totalorder %s27, 0
      %p259 = por %p257, %p258
      %s261 = sadd.s32 %s260, 1
      %p264 = scmp.eq.s32.totalorder %s21, 1
      %p265 = scmp.ne.s32.totalorder %s260, %s262
      %p266 = scmp.eq.s32.totalorder %s21, 0
      %p267 = por %p265, %p266
      %p268 = scmp.ne.s32.totalorder %s260, %s262
      %p269 = scmp.eq.s32.totalorder %s26, 1
      %p270 = por %p268, %p269
      %p271 = scmp.ne.s32.totalorder %s262, %s263
      %p272 = scmp.eq.s32.totalorder %s26, 0
      %p273 = por %p271, %p272
      %p274 = scmp.ne.s32.totalorder %s262, %s263
      %p275 = scmp.eq.s32.totalorder %s27, 1
      %p276 = por %p274, %p275
      %p278 = scmp.ne.s32.totalorder %s263, %s277
      %p279 = scmp.eq.s32.totalorder %s27, 0
      %p280 = por %p278, %p279
      %s282 = sadd.s32 %s281, 1
      %p285 = scmp.eq.s32.totalorder %s21, 1
      %p286 = scmp.ne.s32.totalorder %s281, %s283
      %p287 = scmp.eq.s32.totalorder %s21, 0
      %p288 = por %p286, %p287
      %p289 = scmp.ne.s32.totalorder %s281, %s283
      %p290 = scmp.eq.s32.totalorder %s26, 1
      %p291 = por %p289, %p290
      %p292 = scmp.ne.s32.totalorder %s283, %s284
      %p293 = scmp.eq.s32.totalorder %s26, 0
      %p294 = por %p292, %p293
      %p295 = scmp.ne.s32.totalorder %s283, %s284
      %p296 = scmp.eq.s32.totalorder %s27, 1
      %p297 = por %p295, %p296
      %p299 = scmp.ne.s32.totalorder %s284, %s298
      %p300 = scmp.eq.s32.totalorder %s27, 0
      %p301 = por %p299, %p300
      %s302 = ssub.s32 %s21, %s28
      %p303 = scmp.eq.s32.totalorder %s302, 0
      %s305 = sadd.s32 %s304, 1
      %s306 = scalar_select %p303, %s304, %s305
      %p309 = pneg %p303
      %p310 = scmp.eq.s32.totalorder %s21, 1
      %p311 = por %p309, %p310
      %p312 = scmp.ne.s32.totalorder %s304, %s307
      %p313 = scmp.eq.s32.totalorder %s21, 0
      %p314 = por %p312, %p313
      %p315 = scmp.ne.s32.totalorder %s304, %s307
      %p316 = scmp.eq.s32.totalorder %s26, 1
      %p317 = por %p315, %p316
      %p318 = scmp.ne.s32.totalorder %s307, %s308
      %p319 = scmp.eq.s32.totalorder %s26, 0
      %p320 = por %p318, %p319
      %p321 = scmp.ne.s32.totalorder %s307, %s308
      %p322 = scmp.eq.s32.totalorder %s27, 1
      %p323 = por %p321, %p322
      %p325 = scmp.ne.s32.totalorder %s308, %s324
      %p326 = scmp.eq.s32.totalorder %s27, 0
      %p327 = por %p325, %p326
      %s328 = ssub.s32 %s21, %s28
      %p329 = scmp.eq.s32.totalorder %s328, 0
      %s331 = sadd.s32 %s330, 1
      %s332 = scalar_select %p329, %s330, %s331
      %p335 = pneg %p329
      %p336 = scmp.eq.s32.totalorder %s21, 1
      %p337 = por %p335, %p336
      %p338 = scmp.ne.s32.totalorder %s330, %s333
      %p339 = scmp.eq.s32.totalorder %s21, 0
      %p340 = por %p338, %p339
      %p341 = scmp.ne.s32.totalorder %s330, %s333
      %p342 = scmp.eq.s32.totalorder %s26, 1
      %p343 = por %p341, %p342
      %p344 = scmp.ne.s32.totalorder %s333, %s334
      %p345 = scmp.eq.s32.totalorder %s26, 0
      %p346 = por %p344, %p345
      %p347 = scmp.ne.s32.totalorder %s333, %s334
      %p348 = scmp.eq.s32.totalorder %s27, 1
      %p349 = por %p347, %p348
      %p351 = scmp.ne.s32.totalorder %s334, %s350
      %p352 = scmp.eq.s32.totalorder %s27, 0
      %p353 = por %p351, %p352
      %s354 = ssub.s32 %s21, %s28
      %p355 = scmp.eq.s32.totalorder %s354, 0
      %s357 = sadd.s32 %s356, 1
      %s358 = scalar_select %p355, %s356, %s357
      %p361 = pneg %p355
      %p362 = scmp.eq.s32.totalorder %s21, 1
      %p363 = por %p361, %p362
      %p364 = scmp.ne.s32.totalorder %s356, %s359
      %p365 = scmp.eq.s32.totalorder %s21, 0
      %p366 = por %p364, %p365
      %p367 = scmp.ne.s32.totalorder %s356, %s359
      %p368 = scmp.eq.s32.totalorder %s26, 1
      %p369 = por %p367, %p368
      %p370 = scmp.ne.s32.totalorder %s359, %s360
      %p371 = scmp.eq.s32.totalorder %s26, 0
      %p372 = por %p370, %p371
      %p373 = scmp.ne.s32.totalorder %s359, %s360
      %p374 = scmp.eq.s32.totalorder %s27, 1
      %p375 = por %p373, %p374
      %p377 = scmp.ne.s32.totalorder %s360, %s376
      %p378 = scmp.eq.s32.totalorder %s27, 0
      %p379 = por %p377, %p378
      %p380 = scmp.le.s32.totalorder 1, %s21
      %p381 = scmp.lt.s32.totalorder %s21, 3
      %p382 = pnand %p380, %p381
      %p383 = pneg %p382
      // Predicated region
      $region9: #{latent_diffusion_forward.21} parent=5 // pred_check
        _
      $region10: #{latent_diffusion_forward.21} parent=5 // pred_check_branch
        %385 = sbr.rel (%p382) target = $region12
      $region11: #{latent_diffusion_forward.21} parent=5 // pred_region
        %s386 = ssub.s32 %s21, 1
        // Predicated region
        $region13: #{latent_diffusion_forward.21} parent=11 // pred_check
          %p387 = pneg %p42
        $region14: #{latent_diffusion_forward.21} parent=11 // pred_check_branch
          %389 = sbr.rel (%p387) target = $region16
        $region15: #{latent_diffusion_forward.21} parent=11 // pred_region
          _
        $region16: #{latent_diffusion_forward.21} parent=11 // pred_fallthru
          _
        // Predicated region
        $region17: #{latent_diffusion_forward.21} parent=11 // pred_check
          %p390 = pneg %p63
        $region18: #{latent_diffusion_forward.21} parent=11 // pred_check_branch
          %392 = sbr.rel (%p390) target = $region20
        $region19: #{latent_diffusion_forward.21} parent=11 // pred_region
          _
        $region20: #{latent_diffusion_forward.21} parent=11 // pred_fallthru
          _
        // Predicated region
        $region21: #{latent_diffusion_forward.21} parent=11 // pred_check
          %p393 = pneg %p84
        $region22: #{latent_diffusion_forward.21} parent=11 // pred_check_branch
          %395 = sbr.rel (%p393) target = $region24
        $region23: #{latent_diffusion_forward.21} parent=11 // pred_region
          _
        $region24: #{latent_diffusion_forward.21} parent=11 // pred_fallthru
          _
        // Predicated region
        $region25: #{latent_diffusion_forward.21} parent=11 // pred_check
          %p396 = pneg %p105
        $region26: #{latent_diffusion_forward.21} parent=11 // pred_check_branch
          %398 = sbr.rel (%p396) target = $region28
        $region27: #{latent_diffusion_forward.21} parent=11 // pred_region
          _
        $region28: #{latent_diffusion_forward.21} parent=11 // pred_fallthru
          _
        // Predicated region
        $region29: #{latent_diffusion_forward.21} parent=11 // pred_check
          %p399 = pneg %p126
        $region30: #{latent_diffusion_forward.21} parent=11 // pred_check_branch
          %401 = sbr.rel (%p399) target = $region32
        $region31: #{latent_diffusion_forward.21} parent=11 // pred_region
          _
        $region32: #{latent_diffusion_forward.21} parent=11 // pred_fallthru
          _
        // Predicated region
        $region33: #{latent_diffusion_forward.21} parent=11 // pred_check
          %p402 = pneg %p147
        $region34: #{latent_diffusion_forward.21} parent=11 // pred_check_branch
          %404 = sbr.rel (%p402) target = $region36
        $region35: #{latent_diffusion_forward.21} parent=11 // pred_region
          _
        $region36: #{latent_diffusion_forward.21} parent=11 // pred_fallthru
          _
        // Predicated region
        $region37: #{latent_diffusion_forward.21} parent=11 // pred_check
          %p405 = pneg %p168
        $region38: #{latent_diffusion_forward.21} parent=11 // pred_check_branch
          %407 = sbr.rel (%p405) target = $region40
        $region39: #{latent_diffusion_forward.21} parent=11 // pred_region
          _
        $region40: #{latent_diffusion_forward.21} parent=11 // pred_fallthru
          _
        // Predicated region
        $region41: #{latent_diffusion_forward.21} parent=11 // pred_check
          %p408 = pneg %p189
        $region42: #{latent_diffusion_forward.21} parent=11 // pred_check_branch
          %410 = sbr.rel (%p408) target = $region44
        $region43: #{latent_diffusion_forward.21} parent=11 // pred_region
          _
        $region44: #{latent_diffusion_forward.21} parent=11 // pred_fallthru
          _
        // Predicated region
        $region45: #{latent_diffusion_forward.21} parent=11 // pred_check
          %p411 = pneg %p210
        $region46: #{latent_diffusion_forward.21} parent=11 // pred_check_branch
          %413 = sbr.rel (%p411) target = $region48
        $region47: #{latent_diffusion_forward.21} parent=11 // pred_region
          _
        $region48: #{latent_diffusion_forward.21} parent=11 // pred_fallthru
          _
        // Predicated region
        $region49: #{latent_diffusion_forward.21} parent=11 // pred_check
          %p414 = pneg %p231
        $region50: #{latent_diffusion_forward.21} parent=11 // pred_check_branch
          %416 = sbr.rel (%p414) target = $region52
        $region51: #{latent_diffusion_forward.21} parent=11 // pred_region
          _
        $region52: #{latent_diffusion_forward.21} parent=11 // pred_fallthru
          _
        // Predicated region
        $region53: #{latent_diffusion_forward.21} parent=11 // pred_check
          %p417 = pneg %p252
        $region54: #{latent_diffusion_forward.21} parent=11 // pred_check_branch
          %419 = sbr.rel (%p417) target = $region56
        $region55: #{latent_diffusion_forward.21} parent=11 // pred_region
          _
        $region56: #{latent_diffusion_forward.21} parent=11 // pred_fallthru
          _
        // Predicated region
        $region57: #{latent_diffusion_forward.21} parent=11 // pred_check
          %p420 = pneg %p273
        $region58: #{latent_diffusion_forward.21} parent=11 // pred_check_branch
          %422 = sbr.rel (%p420) target = $region60
        $region59: #{latent_diffusion_forward.21} parent=11 // pred_region
          _
        $region60: #{latent_diffusion_forward.21} parent=11 // pred_fallthru
          _
        // Predicated region
        $region61: #{latent_diffusion_forward.21} parent=11 // pred_check
          %p423 = pneg %p294
        $region62: #{latent_diffusion_forward.21} parent=11 // pred_check_branch
          %425 = sbr.rel (%p423) target = $region64
        $region63: #{latent_diffusion_forward.21} parent=11 // pred_region
          _
        $region64: #{latent_diffusion_forward.21} parent=11 // pred_fallthru
          _
      $region12: #{latent_diffusion_forward.21} parent=5 // pred_fallthru
        _
      %p426 = scmp.lt.s32.totalorder %s21, 2
      // Predicated region
      $region65: #{latent_diffusion_forward.21} parent=5 // pred_check
        %p427 = pneg %p426
      $region66: #{latent_diffusion_forward.21} parent=5 // pred_check_branch
        %429 = sbr.rel (%p427) target = $region68
      $region67: #{latent_diffusion_forward.21} parent=5 // pred_region
        // Predicated region
        $region69: #{latent_diffusion_forward.21} parent=67 // pred_check
          %p430 = pneg %p314
        $region70: #{latent_diffusion_forward.21} parent=67 // pred_check_branch
          %432 = sbr.rel (%p430) target = $region72
        $region71: #{latent_diffusion_forward.21} parent=67 // pred_region
          %s433 = sand.u32 %s304, 1
          %s434 = sand.u32 %s304, 1
          %s435 = smul.addr %s434, 1024
          %s436 = scalar_lea.vmem [#allocation3], %s435
          %s437 = smul.u32 8, %s21
          %s438 = smul.addr %s437, 4
          %s439 = scalar_lea.vmem %s13, %s438
          // Predicated region
          $region73: #{latent_diffusion_forward.21} parent=71 // pred_check
            _
          $region74: #{latent_diffusion_forward.21} parent=71 // pred_check_branch
            %441 = sbr.rel (0) target = $region76
          $region75: #{latent_diffusion_forward.21} parent=71 // pred_region
            // Predicated region
            $region77: #{latent_diffusion_forward.21} parent=75 // pred_check
              _
            $region78: #{latent_diffusion_forward.21} parent=75 // pred_check_branch
              %443 = sbr.rel (0) target = $region80
            $region79: #{latent_diffusion_forward.21} parent=75 // pred_region
              loop: start=0, step=1, limit=1
              $region81: #{latent_diffusion_forward.21} parent=79 // loop_pre_header
                _
              $region82: #{latent_diffusion_forward.21} parent=79 // loop_header
                %s445 = sphi 0, %s449
                %p446 = scmp.ge.s32.totalorder %s445, 1
                %s450 = sphi %s439, %s439
                %s451 = sphi %s436, %s436
              $region83: #{latent_diffusion_forward.21} parent=79 // loop_header_branch
                %448 = sbr.rel (%p446) target = $region87
              $region84: #{latent_diffusion_forward.21} parent=79 // loop_body
                %v452 = vld [vmem:[%s450] sm:$0xff]
                %453 = vst [vmem:[%s451] sm:$0xff] %v452
                %v454 = vld [vmem:[%s450 + $0x8] sm:$0xff]
                %455 = vst [vmem:[%s451 + $0x8] sm:$0xff] %v454
                %v456 = vld [vmem:[%s450 + $0x10] sm:$0xff]
                %457 = vst [vmem:[%s451 + $0x10] sm:$0xff] %v456
                %v458 = vld [vmem:[%s450 + $0x18] sm:$0xff]
                %459 = vst [vmem:[%s451 + $0x18] sm:$0xff] %v458
                %v460 = vld [vmem:[%s450 + $0x40] sm:$0xff]
                %461 = vst [vmem:[%s451 + $0x20] sm:$0xff] %v460
                %v462 = vld [vmem:[%s450 + $0x48] sm:$0xff]
                %463 = vst [vmem:[%s451 + $0x28] sm:$0xff] %v462
                %v464 = vld [vmem:[%s450 + $0x50] sm:$0xff]
                %465 = vst [vmem:[%s451 + $0x30] sm:$0xff] %v464
                %v466 = vld [vmem:[%s450 + $0x58] sm:$0xff]
                %467 = vst [vmem:[%s451 + $0x38] sm:$0xff] %v466
                %v468 = vld [vmem:[%s450 + $0x80] sm:$0xff]
                %469 = vst [vmem:[%s451 + $0x40] sm:$0xff] %v468
                %v470 = vld [vmem:[%s450 + $0x88] sm:$0xff]
                %471 = vst [vmem:[%s451 + $0x48] sm:$0xff] %v470
                %v472 = vld [vmem:[%s450 + $0x90] sm:$0xff]
                %473 = vst [vmem:[%s451 + $0x50] sm:$0xff] %v472
                %v474 = vld [vmem:[%s450 + $0x98] sm:$0xff]
                %475 = vst [vmem:[%s451 + $0x58] sm:$0xff] %v474
                %v476 = vld [vmem:[%s450 + $0xc0] sm:$0xff]
                %477 = vst [vmem:[%s451 + $0x60] sm:$0xff] %v476
                %v478 = vld [vmem:[%s450 + $0xc8] sm:$0xff]
                %479 = vst [vmem:[%s451 + $0x68] sm:$0xff] %v478
                %v480 = vld [vmem:[%s450 + $0xd0] sm:$0xff]
                %481 = vst [vmem:[%s451 + $0x70] sm:$0xff] %v480
                %v482 = vld [vmem:[%s450 + $0xd8] sm:$0xff]
                %483 = vst [vmem:[%s451 + $0x78] sm:$0xff] %v482
                %v484 = vld [vmem:[%s450 + $0x100] sm:$0xff]
                %485 = vst [vmem:[%s451 + $0x80] sm:$0xff] %v484
                %v486 = vld [vmem:[%s450 + $0x108] sm:$0xff]
                %487 = vst [vmem:[%s451 + $0x88] sm:$0xff] %v486
                %v488 = vld [vmem:[%s450 + $0x110] sm:$0xff]
                %489 = vst [vmem:[%s451 + $0x90] sm:$0xff] %v488
                %v490 = vld [vmem:[%s450 + $0x118] sm:$0xff]
                %491 = vst [vmem:[%s451 + $0x98] sm:$0xff] %v490
                %v492 = vld [vmem:[%s450 + $0x140] sm:$0xff]
                %493 = vst [vmem:[%s451 + $0xa0] sm:$0xff] %v492
                %v494 = vld [vmem:[%s450 + $0x148] sm:$0xff]
                %495 = vst [vmem:[%s451 + $0xa8] sm:$0xff] %v494
                %v496 = vld [vmem:[%s450 + $0x150] sm:$0xff]
                %497 = vst [vmem:[%s451 + $0xb0] sm:$0xff] %v496
                %v498 = vld [vmem:[%s450 + $0x158] sm:$0xff]
                %499 = vst [vmem:[%s451 + $0xb8] sm:$0xff] %v498
                %v500 = vld [vmem:[%s450 + $0x180] sm:$0xff]
                %501 = vst [vmem:[%s451 + $0xc0] sm:$0xff] %v500
                %v502 = vld [vmem:[%s450 + $0x188] sm:$0xff]
                %503 = vst [vmem:[%s451 + $0xc8] sm:$0xff] %v502
                %v504 = vld [vmem:[%s450 + $0x190] sm:$0xff]
                %505 = vst [vmem:[%s451 + $0xd0] sm:$0xff] %v504
                %v506 = vld [vmem:[%s450 + $0x198] sm:$0xff]
                %507 = vst [vmem:[%s451 + $0xd8] sm:$0xff] %v506
                %v508 = vld [vmem:[%s450 + $0x1c0] sm:$0xff]
                %509 = vst [vmem:[%s451 + $0xe0] sm:$0xff] %v508
                %v510 = vld [vmem:[%s450 + $0x1c8] sm:$0xff]
                %511 = vst [vmem:[%s451 + $0xe8] sm:$0xff] %v510
                %v512 = vld [vmem:[%s450 + $0x1d0] sm:$0xff]
                %513 = vst [vmem:[%s451 + $0xf0] sm:$0xff] %v512
                %v514 = vld [vmem:[%s450 + $0x1d8] sm:$0xff]
                %515 = vst [vmem:[%s451 + $0xf8] sm:$0xff] %v514
                %v516 = vld [vmem:[%s450 + $0x200] sm:$0xff]
                %517 = vst [vmem:[%s451 + $0x100] sm:$0xff] %v516
                %v518 = vld [vmem:[%s450 + $0x208] sm:$0xff]
                %519 = vst [vmem:[%s451 + $0x108] sm:$0xff] %v518
                %v520 = vld [vmem:[%s450 + $0x210] sm:$0xff]
                %521 = vst [vmem:[%s451 + $0x110] sm:$0xff] %v520
                %v522 = vld [vmem:[%s450 + $0x218] sm:$0xff]
                %523 = vst [vmem:[%s451 + $0x118] sm:$0xff] %v522
                %v524 = vld [vmem:[%s450 + $0x240] sm:$0xff]
                %525 = vst [vmem:[%s451 + $0x120] sm:$0xff] %v524
                %v526 = vld [vmem:[%s450 + $0x248] sm:$0xff]
                %527 = vst [vmem:[%s451 + $0x128] sm:$0xff] %v526
                %v528 = vld [vmem:[%s450 + $0x250] sm:$0xff]
                %529 = vst [vmem:[%s451 + $0x130] sm:$0xff] %v528
                %v530 = vld [vmem:[%s450 + $0x258] sm:$0xff]
                %531 = vst [vmem:[%s451 + $0x138] sm:$0xff] %v530
                %v532 = vld [vmem:[%s450 + $0x280] sm:$0xff]
                %533 = vst [vmem:[%s451 + $0x140] sm:$0xff] %v532
                %v534 = vld [vmem:[%s450 + $0x288] sm:$0xff]
                %535 = vst [vmem:[%s451 + $0x148] sm:$0xff] %v534
                %v536 = vld [vmem:[%s450 + $0x290] sm:$0xff]
                %537 = vst [vmem:[%s451 + $0x150] sm:$0xff] %v536
                %v538 = vld [vmem:[%s450 + $0x298] sm:$0xff]
                %539 = vst [vmem:[%s451 + $0x158] sm:$0xff] %v538
                %v540 = vld [vmem:[%s450 + $0x2c0] sm:$0xff]
                %541 = vst [vmem:[%s451 + $0x160] sm:$0xff] %v540
                %v542 = vld [vmem:[%s450 + $0x2c8] sm:$0xff]
                %543 = vst [vmem:[%s451 + $0x168] sm:$0xff] %v542
                %v544 = vld [vmem:[%s450 + $0x2d0] sm:$0xff]
                %545 = vst [vmem:[%s451 + $0x170] sm:$0xff] %v544
                %v546 = vld [vmem:[%s450 + $0x2d8] sm:$0xff]
                %547 = vst [vmem:[%s451 + $0x178] sm:$0xff] %v546
                %v548 = vld [vmem:[%s450 + $0x300] sm:$0xff]
                %549 = vst [vmem:[%s451 + $0x180] sm:$0xff] %v548
                %v550 = vld [vmem:[%s450 + $0x308] sm:$0xff]
                %551 = vst [vmem:[%s451 + $0x188] sm:$0xff] %v550
                %v552 = vld [vmem:[%s450 + $0x310] sm:$0xff]
                %553 = vst [vmem:[%s451 + $0x190] sm:$0xff] %v552
                %v554 = vld [vmem:[%s450 + $0x318] sm:$0xff]
                %555 = vst [vmem:[%s451 + $0x198] sm:$0xff] %v554
                %v556 = vld [vmem:[%s450 + $0x340] sm:$0xff]
                %557 = vst [vmem:[%s451 + $0x1a0] sm:$0xff] %v556
                %v558 = vld [vmem:[%s450 + $0x348] sm:$0xff]
                %559 = vst [vmem:[%s451 + $0x1a8] sm:$0xff] %v558
                %v560 = vld [vmem:[%s450 + $0x350] sm:$0xff]
                %561 = vst [vmem:[%s451 + $0x1b0] sm:$0xff] %v560
                %v562 = vld [vmem:[%s450 + $0x358] sm:$0xff]
                %563 = vst [vmem:[%s451 + $0x1b8] sm:$0xff] %v562
                %v564 = vld [vmem:[%s450 + $0x380] sm:$0xff]
                %565 = vst [vmem:[%s451 + $0x1c0] sm:$0xff] %v564
                %v566 = vld [vmem:[%s450 + $0x388] sm:$0xff]
                %567 = vst [vmem:[%s451 + $0x1c8] sm:$0xff] %v566
                %v568 = vld [vmem:[%s450 + $0x390] sm:$0xff]
                %569 = vst [vmem:[%s451 + $0x1d0] sm:$0xff] %v568
                %v570 = vld [vmem:[%s450 + $0x398] sm:$0xff]
                %571 = vst [vmem:[%s451 + $0x1d8] sm:$0xff] %v570
                %v572 = vld [vmem:[%s450 + $0x3c0] sm:$0xff]
                %573 = vst [vmem:[%s451 + $0x1e0] sm:$0xff] %v572
                %v574 = vld [vmem:[%s450 + $0x3c8] sm:$0xff]
                %575 = vst [vmem:[%s451 + $0x1e8] sm:$0xff] %v574
                %v576 = vld [vmem:[%s450 + $0x3d0] sm:$0xff]
                %577 = vst [vmem:[%s451 + $0x1f0] sm:$0xff] %v576
                %v578 = vld [vmem:[%s450 + $0x3d8] sm:$0xff]
                %579 = vst [vmem:[%s451 + $0x1f8] sm:$0xff] %v578
                %v580 = vld [vmem:[%s450 + $0x400] sm:$0xff]
                %581 = vst [vmem:[%s451 + $0x200] sm:$0xff] %v580
                %v582 = vld [vmem:[%s450 + $0x408] sm:$0xff]
                %583 = vst [vmem:[%s451 + $0x208] sm:$0xff] %v582
                %v584 = vld [vmem:[%s450 + $0x410] sm:$0xff]
                %585 = vst [vmem:[%s451 + $0x210] sm:$0xff] %v584
                %v586 = vld [vmem:[%s450 + $0x418] sm:$0xff]
                %587 = vst [vmem:[%s451 + $0x218] sm:$0xff] %v586
                %v588 = vld [vmem:[%s450 + $0x440] sm:$0xff]
                %589 = vst [vmem:[%s451 + $0x220] sm:$0xff] %v588
                %v590 = vld [vmem:[%s450 + $0x448] sm:$0xff]
                %591 = vst [vmem:[%s451 + $0x228] sm:$0xff] %v590
                %v592 = vld [vmem:[%s450 + $0x450] sm:$0xff]
                %593 = vst [vmem:[%s451 + $0x230] sm:$0xff] %v592
                %v594 = vld [vmem:[%s450 + $0x458] sm:$0xff]
                %595 = vst [vmem:[%s451 + $0x238] sm:$0xff] %v594
                %v596 = vld [vmem:[%s450 + $0x480] sm:$0xff]
                %597 = vst [vmem:[%s451 + $0x240] sm:$0xff] %v596
                %v598 = vld [vmem:[%s450 + $0x488] sm:$0xff]
                %599 = vst [vmem:[%s451 + $0x248] sm:$0xff] %v598
                %v600 = vld [vmem:[%s450 + $0x490] sm:$0xff]
                %601 = vst [vmem:[%s451 + $0x250] sm:$0xff] %v600
                %v602 = vld [vmem:[%s450 + $0x498] sm:$0xff]
                %603 = vst [vmem:[%s451 + $0x258] sm:$0xff] %v602
                %v604 = vld [vmem:[%s450 + $0x4c0] sm:$0xff]
                %605 = vst [vmem:[%s451 + $0x260] sm:$0xff] %v604
                %v606 = vld [vmem:[%s450 + $0x4c8] sm:$0xff]
                %607 = vst [vmem:[%s451 + $0x268] sm:$0xff] %v606
                %v608 = vld [vmem:[%s450 + $0x4d0] sm:$0xff]
                %609 = vst [vmem:[%s451 + $0x270] sm:$0xff] %v608
                %v610 = vld [vmem:[%s450 + $0x4d8] sm:$0xff]
                %611 = vst [vmem:[%s451 + $0x278] sm:$0xff] %v610
                %v612 = vld [vmem:[%s450 + $0x500] sm:$0xff]
                %613 = vst [vmem:[%s451 + $0x280] sm:$0xff] %v612
                %v614 = vld [vmem:[%s450 + $0x508] sm:$0xff]
                %615 = vst [vmem:[%s451 + $0x288] sm:$0xff] %v614
                %v616 = vld [vmem:[%s450 + $0x510] sm:$0xff]
                %617 = vst [vmem:[%s451 + $0x290] sm:$0xff] %v616
                %v618 = vld [vmem:[%s450 + $0x518] sm:$0xff]
                %619 = vst [vmem:[%s451 + $0x298] sm:$0xff] %v618
                %v620 = vld [vmem:[%s450 + $0x540] sm:$0xff]
                %621 = vst [vmem:[%s451 + $0x2a0] sm:$0xff] %v620
                %v622 = vld [vmem:[%s450 + $0x548] sm:$0xff]
                %623 = vst [vmem:[%s451 + $0x2a8] sm:$0xff] %v622
                %v624 = vld [vmem:[%s450 + $0x550] sm:$0xff]
                %625 = vst [vmem:[%s451 + $0x2b0] sm:$0xff] %v624
                %v626 = vld [vmem:[%s450 + $0x558] sm:$0xff]
                %627 = vst [vmem:[%s451 + $0x2b8] sm:$0xff] %v626
                %v628 = vld [vmem:[%s450 + $0x580] sm:$0xff]
                %629 = vst [vmem:[%s451 + $0x2c0] sm:$0xff] %v628
                %v630 = vld [vmem:[%s450 + $0x588] sm:$0xff]
                %631 = vst [vmem:[%s451 + $0x2c8] sm:$0xff] %v630
                %v632 = vld [vmem:[%s450 + $0x590] sm:$0xff]
                %633 = vst [vmem:[%s451 + $0x2d0] sm:$0xff] %v632
                %v634 = vld [vmem:[%s450 + $0x598] sm:$0xff]
                %635 = vst [vmem:[%s451 + $0x2d8] sm:$0xff] %v634
                %v636 = vld [vmem:[%s450 + $0x5c0] sm:$0xff]
                %637 = vst [vmem:[%s451 + $0x2e0] sm:$0xff] %v636
                %v638 = vld [vmem:[%s450 + $0x5c8] sm:$0xff]
                %639 = vst [vmem:[%s451 + $0x2e8] sm:$0xff] %v638
                %v640 = vld [vmem:[%s450 + $0x5d0] sm:$0xff]
                %641 = vst [vmem:[%s451 + $0x2f0] sm:$0xff] %v640
                %v642 = vld [vmem:[%s450 + $0x5d8] sm:$0xff]
                %643 = vst [vmem:[%s451 + $0x2f8] sm:$0xff] %v642
                %v644 = vld [vmem:[%s450 + $0x600] sm:$0xff]
                %645 = vst [vmem:[%s451 + $0x300] sm:$0xff] %v644
                %v646 = vld [vmem:[%s450 + $0x608] sm:$0xff]
                %647 = vst [vmem:[%s451 + $0x308] sm:$0xff] %v646
                %v648 = vld [vmem:[%s450 + $0x610] sm:$0xff]
                %649 = vst [vmem:[%s451 + $0x310] sm:$0xff] %v648
                %v650 = vld [vmem:[%s450 + $0x618] sm:$0xff]
                %651 = vst [vmem:[%s451 + $0x318] sm:$0xff] %v650
                %v652 = vld [vmem:[%s450 + $0x640] sm:$0xff]
                %653 = vst [vmem:[%s451 + $0x320] sm:$0xff] %v652
                %v654 = vld [vmem:[%s450 + $0x648] sm:$0xff]
                %655 = vst [vmem:[%s451 + $0x328] sm:$0xff] %v654
                %v656 = vld [vmem:[%s450 + $0x650] sm:$0xff]
                %657 = vst [vmem:[%s451 + $0x330] sm:$0xff] %v656
                %v658 = vld [vmem:[%s450 + $0x658] sm:$0xff]
                %659 = vst [vmem:[%s451 + $0x338] sm:$0xff] %v658
                %v660 = vld [vmem:[%s450 + $0x680] sm:$0xff]
                %661 = vst [vmem:[%s451 + $0x340] sm:$0xff] %v660
                %v662 = vld [vmem:[%s450 + $0x688] sm:$0xff]
                %663 = vst [vmem:[%s451 + $0x348] sm:$0xff] %v662
                %v664 = vld [vmem:[%s450 + $0x690] sm:$0xff]
                %665 = vst [vmem:[%s451 + $0x350] sm:$0xff] %v664
                %v666 = vld [vmem:[%s450 + $0x698] sm:$0xff]
                %667 = vst [vmem:[%s451 + $0x358] sm:$0xff] %v666
                %v668 = vld [vmem:[%s450 + $0x6c0] sm:$0xff]
                %669 = vst [vmem:[%s451 + $0x360] sm:$0xff] %v668
                %v670 = vld [vmem:[%s450 + $0x6c8] sm:$0xff]
                %671 = vst [vmem:[%s451 + $0x368] sm:$0xff] %v670
                %v672 = vld [vmem:[%s450 + $0x6d0] sm:$0xff]
                %673 = vst [vmem:[%s451 + $0x370] sm:$0xff] %v672
                %v674 = vld [vmem:[%s450 + $0x6d8] sm:$0xff]
                %675 = vst [vmem:[%s451 + $0x378] sm:$0xff] %v674
                %v676 = vld [vmem:[%s450 + $0x700] sm:$0xff]
                %677 = vst [vmem:[%s451 + $0x380] sm:$0xff] %v676
                %v678 = vld [vmem:[%s450 + $0x708] sm:$0xff]
                %679 = vst [vmem:[%s451 + $0x388] sm:$0xff] %v678
                %v680 = vld [vmem:[%s450 + $0x710] sm:$0xff]
                %681 = vst [vmem:[%s451 + $0x390] sm:$0xff] %v680
                %v682 = vld [vmem:[%s450 + $0x718] sm:$0xff]
                %683 = vst [vmem:[%s451 + $0x398] sm:$0xff] %v682
                %v684 = vld [vmem:[%s450 + $0x740] sm:$0xff]
                %685 = vst [vmem:[%s451 + $0x3a0] sm:$0xff] %v684
                %v686 = vld [vmem:[%s450 + $0x748] sm:$0xff]
                %687 = vst [vmem:[%s451 + $0x3a8] sm:$0xff] %v686
                %v688 = vld [vmem:[%s450 + $0x750] sm:$0xff]
                %689 = vst [vmem:[%s451 + $0x3b0] sm:$0xff] %v688
                %v690 = vld [vmem:[%s450 + $0x758] sm:$0xff]
                %691 = vst [vmem:[%s451 + $0x3b8] sm:$0xff] %v690
                %v692 = vld [vmem:[%s450 + $0x780] sm:$0xff]
                %693 = vst [vmem:[%s451 + $0x3c0] sm:$0xff] %v692
                %v694 = vld [vmem:[%s450 + $0x788] sm:$0xff]
                %695 = vst [vmem:[%s451 + $0x3c8] sm:$0xff] %v694
                %v696 = vld [vmem:[%s450 + $0x790] sm:$0xff]
                %697 = vst [vmem:[%s451 + $0x3d0] sm:$0xff] %v696
                %v698 = vld [vmem:[%s450 + $0x798] sm:$0xff]
                %699 = vst [vmem:[%s451 + $0x3d8] sm:$0xff] %v698
                %v700 = vld [vmem:[%s450 + $0x7c0] sm:$0xff]
                %701 = vst [vmem:[%s451 + $0x3e0] sm:$0xff] %v700
                %v702 = vld [vmem:[%s450 + $0x7c8] sm:$0xff]
                %703 = vst [vmem:[%s451 + $0x3e8] sm:$0xff] %v702
                %v704 = vld [vmem:[%s450 + $0x7d0] sm:$0xff]
                %705 = vst [vmem:[%s451 + $0x3f0] sm:$0xff] %v704
                %v706 = vld [vmem:[%s450 + $0x7d8] sm:$0xff]
                %707 = vst [vmem:[%s451 + $0x3f8] sm:$0xff] %v706
              $region85: #{latent_diffusion_forward.21} parent=79 // loop_footer
                %s449 = sadd.s32 1, %s445
              $region86: #{latent_diffusion_forward.21} parent=79 // loop_footer_branch
                %444 = sbr.rel target = $region82
              $region87: #{latent_diffusion_forward.21} parent=79 // loop_exit
                _
            $region80: #{latent_diffusion_forward.21} parent=75 // pred_fallthru
              _
            // Predicated region
            $region88: #{latent_diffusion_forward.21} parent=75 // pred_check
              _
            $region89: #{latent_diffusion_forward.21} parent=75 // pred_check_branch
              %709 = sbr.rel target = $region91
            $region90: #{latent_diffusion_forward.21} parent=75 // pred_region
              _
            $region91: #{latent_diffusion_forward.21} parent=75 // pred_fallthru
              _
          $region76: #{latent_diffusion_forward.21} parent=71 // pred_fallthru
            _
          %710 = vnop
        $region72: #{latent_diffusion_forward.21} parent=67 // pred_fallthru
          _
        // Predicated region
        $region92: #{latent_diffusion_forward.21} parent=67 // pred_check
          %p711 = pneg %p340
        $region93: #{latent_diffusion_forward.21} parent=67 // pred_check_branch
          %713 = sbr.rel (%p711) target = $region95
        $region94: #{latent_diffusion_forward.21} parent=67 // pred_region
          %s714 = smul.u32 8, %s21
          %p715 = scmp.lt.s32.totalorder %s714, 15
          %s716 = scalar_select %p715, %s714, 15
          %s717 = scalar_lea.vmem %s14, %s716
          %s718 = smul.u32 8, %s21
        $region95: #{latent_diffusion_forward.21} parent=67 // pred_fallthru
          _
      $region68: #{latent_diffusion_forward.21} parent=5 // pred_fallthru
        _
      %p719 = scmp.le.s32.totalorder 1, %s21
      %p720 = scmp.lt.s32.totalorder %s21, 3
      %p721 = pnand %p719, %p720
      %p722 = pneg %p721
      // Predicated region
      $region96: #{latent_diffusion_forward.21} parent=5 // pred_check
        _
      $region97: #{latent_diffusion_forward.21} parent=5 // pred_check_branch
        %724 = sbr.rel (%p721) target = $region99
      $region98: #{latent_diffusion_forward.21} parent=5 // pred_region
        %s725 = ssub.s32 %s21, 1
        %s726 = sand.u32 %s307, 1
        %s727 = sand.u32 %s307, 1
        %s728 = smul.addr %s727, 1024
        %s729 = scalar_lea.vmem [#allocation3], %s728
        // Predicated region
        $region100: #{latent_diffusion_forward.21} parent=98 // pred_check
          %p730 = pneg %p320
        $region101: #{latent_diffusion_forward.21} parent=98 // pred_check_branch
          %732 = sbr.rel (%p730) target = $region103
        $region102: #{latent_diffusion_forward.21} parent=98 // pred_region
          _
        $region103: #{latent_diffusion_forward.21} parent=98 // pred_fallthru
          _
        %p733 = pneg %p42
        %p734 = pneg %p39
        %p735 = pneg %p63
        %p736 = pneg %p60
        %p737 = pneg %p84
        %p738 = pneg %p81
        %p739 = pneg %p105
        %p740 = pneg %p102
        %p741 = pneg %p126
        %p742 = pneg %p123
        %p743 = pneg %p147
        %p744 = pneg %p144
        %p745 = pneg %p168
        %p746 = pneg %p165
        %p747 = pneg %p189
        %p748 = pneg %p186
        %p749 = pneg %p210
        %p750 = pneg %p207
        %p751 = pneg %p231
        %p752 = pneg %p228
        %p753 = pneg %p252
        %p754 = pneg %p249
        %p755 = pneg %p273
        %p756 = pneg %p270
        %p757 = pneg %p294
        %p758 = pneg %p291
        %s759 = sand.u32 %s307, 1
        %s760 = sand.u32 %s307, 1
        %s761 = smul.addr %s760, 1024
        %s762 = scalar_lea.vmem [#allocation3], %s761
        %p763 = pneg %p320
        %p764 = pneg %p317
        %s765 = smul.u32 8, %s26
        %p766 = scmp.lt.s32.totalorder %s765, 15
        %s767 = scalar_select %p766, %s765, 15
        %s768 = scalar_lea.vmem %s14, %s767
        %p769 = pneg %p346
        %p770 = pneg %p343
        %p771 = pneg %p372
        %p772 = pneg %p369
        %s773 = smul.u32 8, %s26
        %p774 = scmp.lt.s32.totalorder %s773, 15
        %s775 = scalar_select %p774, %s773, 15
        %s776 = smul.addr %s775, 2
        %s777 = scalar_lea.vmem %s15, %s776
        %s778 = smul.u32 8, %s26
        %s779 = smul.u32 8, %s26
        %p780 = scmp.lt.s32.totalorder %s779, 15
        %s781 = scalar_select %p780, %s779, 15
        %s782 = scalar_lea.vmem %s14, %s781
        %s783 = smul.u32 8, %s26
        %s784 = smul.u32 8, %s26
        %p785 = scmp.lt.s32.totalorder %s784, 15
        %s786 = scalar_select %p785, %s784, 15
        %s787 = smul.addr %s786, 2
        %s788 = scalar_lea.vmem %s15, %s787
        %s789 = smul.u32 8, %s26
        %v791 = vld [vmem:[%s2] sm:$0xff]
        %v792 = vld [vmem:[%s2 + $0x8] sm:$0xff]
        %v793 = vld [vmem:[%s0] sm:$0xff]
        %v794 = vld [vmem:[%s0 + $0x8] sm:$0xff]
        %v795 = vld [vmem:[%s0 + $0x10] sm:$0xff]
        %v796 = vld [vmem:[%s0 + $0x18] sm:$0xff]
        %v797 = vld [vmem:[%s1] sm:$0xff]
        %v798 = vld [vmem:[%s1 + $0x8] sm:$0xff]
        %v801 = vlaneseq
        %v802 = vshrl.u32 %v801, 7
        %v803 = vsub.s32 0, %v802
        %v804 = vrot.slane %v797, %v803
        %v805 = vlaneseq
        %v806 = vshrl.u32 %v805, 7
        %v807 = vsub.s32 1, %v806
        %v808 = vrot.slane %v797, %v807
        %v809 = vlaneseq
        %v810 = vshrl.u32 %v809, 7
        %v811 = vsub.s32 2, %v810
        %v812 = vrot.slane %v797, %v811
        %v813 = vlaneseq
        %v814 = vshrl.u32 %v813, 7
        %v815 = vsub.s32 3, %v814
        %v816 = vrot.slane %v797, %v815
        %v817 = vlaneseq
        %v818 = vshrl.u32 %v817, 7
        %v819 = vsub.s32 4, %v818
        %v820 = vrot.slane %v797, %v819
        %v821 = vlaneseq
        %v822 = vshrl.u32 %v821, 7
        %v823 = vsub.s32 5, %v822
        %v824 = vrot.slane %v797, %v823
        %v825 = vlaneseq
        %v826 = vshrl.u32 %v825, 7
        %v827 = vsub.s32 6, %v826
        %v828 = vrot.slane %v797, %v827
        %v829 = vlaneseq
        %v830 = vshrl.u32 %v829, 7
        %v831 = vsub.s32 7, %v830
        %v832 = vrot.slane %v797, %v831
        %v833 = vlaneseq
        %v834 = vshrl.u32 %v833, 7
        %v835 = vsub.s32 0, %v834
        %v836 = vrot.slane %v798, %v835
        %v837 = vlaneseq
        %v838 = vshrl.u32 %v837, 7
        %v839 = vsub.s32 1, %v838
        %v840 = vrot.slane %v798, %v839
        %v841 = vlaneseq
        %v842 = vshrl.u32 %v841, 7
        %v843 = vsub.s32 2, %v842
        %v844 = vrot.slane %v798, %v843
        %v845 = vlaneseq
        %v846 = vshrl.u32 %v845, 7
        %v847 = vsub.s32 3, %v846
        %v848 = vrot.slane %v798, %v847
        %v849 = vlaneseq
        %v850 = vshrl.u32 %v849, 7
        %v851 = vsub.s32 4, %v850
        %v852 = vrot.slane %v798, %v851
        %v853 = vlaneseq
        %v854 = vshrl.u32 %v853, 7
        %v855 = vsub.s32 5, %v854
        %v856 = vrot.slane %v798, %v855
        %v857 = vlaneseq
        %v858 = vshrl.u32 %v857, 7
        %v859 = vsub.s32 6, %v858
        %v860 = vrot.slane %v798, %v859
        %v861 = vlaneseq
        %v862 = vshrl.u32 %v861, 7
        %v863 = vsub.s32 7, %v862
        %v864 = vrot.slane %v798, %v863
        %v865 = vcombine.low %v804, %v808
        %v866 = vcombine.low %v812, %v816
        %v868 = vunpack.c.l.s4 1983009808
        %v869 = vunpack.c.0.s8 %v868
        %v870 = vlaneseq
        %v871 = vshrl.u32 %v870, 7
        %v872 = vsub.s32 %v869, %v871
        %v873 = vrot.slane %v865, %v872
        %v875 = vunpack.c.l.s4 1983009808
        %v876 = vunpack.c.0.s8 %v875
        %v877 = vlaneseq
        %v878 = vshrl.u32 %v877, 7
        %v879 = vsub.s32 %v876, %v878
        %v880 = vrot.slane %v866, %v879
        %v881 = vcombine.low %v873, %v880
        %v882 = vcombine.low %v820, %v824
        %v883 = vcombine.low %v828, %v832
        %v885 = vunpack.c.l.s4 1983009808
        %v886 = vunpack.c.0.s8 %v885
        %v887 = vlaneseq
        %v888 = vshrl.u32 %v887, 7
        %v889 = vsub.s32 %v886, %v888
        %v890 = vrot.slane %v882, %v889
        %v892 = vunpack.c.l.s4 1983009808
        %v893 = vunpack.c.0.s8 %v892
        %v894 = vlaneseq
        %v895 = vshrl.u32 %v894, 7
        %v896 = vsub.s32 %v893, %v895
        %v897 = vrot.slane %v883, %v896
        %v898 = vcombine.low %v890, %v897
        %v899 = vcombine.low %v836, %v840
        %v900 = vcombine.low %v844, %v848
        %v902 = vunpack.c.l.s4 1983009808
        %v903 = vunpack.c.0.s8 %v902
        %v904 = vlaneseq
        %v905 = vshrl.u32 %v904, 7
        %v906 = vsub.s32 %v903, %v905
        %v907 = vrot.slane %v899, %v906
        %v909 = vunpack.c.l.s4 1983009808
        %v910 = vunpack.c.0.s8 %v909
        %v911 = vlaneseq
        %v912 = vshrl.u32 %v911, 7
        %v913 = vsub.s32 %v910, %v912
        %v914 = vrot.slane %v900, %v913
        %v915 = vcombine.low %v907, %v914
        %v916 = vcombine.low %v852, %v856
        %v917 = vcombine.low %v860, %v864
        %v919 = vunpack.c.l.s4 1983009808
        %v920 = vunpack.c.0.s8 %v919
        %v921 = vlaneseq
        %v922 = vshrl.u32 %v921, 7
        %v923 = vsub.s32 %v920, %v922
        %v924 = vrot.slane %v916, %v923
        %v926 = vunpack.c.l.s4 1983009808
        %v927 = vunpack.c.0.s8 %v926
        %v928 = vlaneseq
        %v929 = vshrl.u32 %v928, 7
        %v930 = vsub.s32 %v927, %v929
        %v931 = vrot.slane %v917, %v930
        %v932 = vcombine.low %v924, %v931
        %v937 = vmul.f32 %v793, %v881
        %v938 = vmul.f32 %v794, %v898
        %v939 = vmul.f32 %v795, %v915
        %v940 = vmul.f32 %v796, %v932
        %v943 = vlaneseq
        %v944 = vshrl.u32 %v943, 7
        %v945 = vsub.s32 0, %v944
        %v946 = vrot.slane %v791, %v945
        %v947 = vlaneseq
        %v948 = vshrl.u32 %v947, 7
        %v949 = vsub.s32 1, %v948
        %v950 = vrot.slane %v791, %v949
        %v951 = vlaneseq
        %v952 = vshrl.u32 %v951, 7
        %v953 = vsub.s32 2, %v952
        %v954 = vrot.slane %v791, %v953
        %v955 = vlaneseq
        %v956 = vshrl.u32 %v955, 7
        %v957 = vsub.s32 3, %v956
        %v958 = vrot.slane %v791, %v957
        %v959 = vlaneseq
        %v960 = vshrl.u32 %v959, 7
        %v961 = vsub.s32 4, %v960
        %v962 = vrot.slane %v791, %v961
        %v963 = vlaneseq
        %v964 = vshrl.u32 %v963, 7
        %v965 = vsub.s32 5, %v964
        %v966 = vrot.slane %v791, %v965
        %v967 = vlaneseq
        %v968 = vshrl.u32 %v967, 7
        %v969 = vsub.s32 6, %v968
        %v970 = vrot.slane %v791, %v969
        %v971 = vlaneseq
        %v972 = vshrl.u32 %v971, 7
        %v973 = vsub.s32 7, %v972
        %v974 = vrot.slane %v791, %v973
        %v975 = vlaneseq
        %v976 = vshrl.u32 %v975, 7
        %v977 = vsub.s32 0, %v976
        %v978 = vrot.slane %v792, %v977
        %v979 = vlaneseq
        %v980 = vshrl.u32 %v979, 7
        %v981 = vsub.s32 1, %v980
        %v982 = vrot.slane %v792, %v981
        %v983 = vlaneseq
        %v984 = vshrl.u32 %v983, 7
        %v985 = vsub.s32 2, %v984
        %v986 = vrot.slane %v792, %v985
        %v987 = vlaneseq
        %v988 = vshrl.u32 %v987, 7
        %v989 = vsub.s32 3, %v988
        %v990 = vrot.slane %v792, %v989
        %v991 = vlaneseq
        %v992 = vshrl.u32 %v991, 7
        %v993 = vsub.s32 4, %v992
        %v994 = vrot.slane %v792, %v993
        %v995 = vlaneseq
        %v996 = vshrl.u32 %v995, 7
        %v997 = vsub.s32 5, %v996
        %v998 = vrot.slane %v792, %v997
        %v999 = vlaneseq
        %v1000 = vshrl.u32 %v999, 7
        %v1001 = vsub.s32 6, %v1000
        %v1002 = vrot.slane %v792, %v1001
        %v1003 = vlaneseq
        %v1004 = vshrl.u32 %v1003, 7
        %v1005 = vsub.s32 7, %v1004
        %v1006 = vrot.slane %v792, %v1005
        %v1027 = vcombine.high %v937, %v937
        %v1029 = vunpack.c.l.s4 1983009808
        %v1030 = vunpack.c.0.s8 %v1029
        %v1031 = vlaneseq
        %v1032 = vshrl.u32 %v1031, 7
        %v1033 = vsub.s32 %v1030, %v1032
        %v1034 = vrot.slane %v937, %v1033
        %v1036 = vunpack.c.l.s4 1983009808
        %v1037 = vunpack.c.0.s8 %v1036
        %v1038 = vlaneseq
        %v1039 = vshrl.u32 %v1038, 7
        %v1040 = vsub.s32 %v1037, %v1039
        %v1041 = vrot.slane %v1027, %v1040
        %v1042 = vcombine.high %v1034, %v1034
        %v1043 = vcombine.high %v1041, %v1041
        %v1044 = vcombine.high %v938, %v938
        %v1046 = vunpack.c.l.s4 1983009808
        %v1047 = vunpack.c.0.s8 %v1046
        %v1048 = vlaneseq
        %v1049 = vshrl.u32 %v1048, 7
        %v1050 = vsub.s32 %v1047, %v1049
        %v1051 = vrot.slane %v938, %v1050
        %v1053 = vunpack.c.l.s4 1983009808
        %v1054 = vunpack.c.0.s8 %v1053
        %v1055 = vlaneseq
        %v1056 = vshrl.u32 %v1055, 7
        %v1057 = vsub.s32 %v1054, %v1056
        %v1058 = vrot.slane %v1044, %v1057
        %v1059 = vcombine.high %v1051, %v1051
        %v1060 = vcombine.high %v1058, %v1058
        %v1061 = vcombine.high %v939, %v939
        %v1063 = vunpack.c.l.s4 1983009808
        %v1064 = vunpack.c.0.s8 %v1063
        %v1065 = vlaneseq
        %v1066 = vshrl.u32 %v1065, 7
        %v1067 = vsub.s32 %v1064, %v1066
        %v1068 = vrot.slane %v939, %v1067
        %v1070 = vunpack.c.l.s4 1983009808
        %v1071 = vunpack.c.0.s8 %v1070
        %v1072 = vlaneseq
        %v1073 = vshrl.u32 %v1072, 7
        %v1074 = vsub.s32 %v1071, %v1073
        %v1075 = vrot.slane %v1061, %v1074
        %v1076 = vcombine.high %v1068, %v1068
        %v1077 = vcombine.high %v1075, %v1075
        %v1078 = vcombine.high %v940, %v940
        %v1080 = vunpack.c.l.s4 1983009808
        %v1081 = vunpack.c.0.s8 %v1080
        %v1082 = vlaneseq
        %v1083 = vshrl.u32 %v1082, 7
        %v1084 = vsub.s32 %v1081, %v1083
        %v1085 = vrot.slane %v940, %v1084
        %v1087 = vunpack.c.l.s4 1983009808
        %v1088 = vunpack.c.0.s8 %v1087
        %v1089 = vlaneseq
        %v1090 = vshrl.u32 %v1089, 7
        %v1091 = vsub.s32 %v1088, %v1090
        %v1092 = vrot.slane %v1078, %v1091
        %v1093 = vcombine.high %v1085, %v1085
        %v1094 = vcombine.high %v1092, %v1092
        %v1111 = vadd.f32 %v946, %v1034
        %v1112 = vadd.f32 %v950, %v1042
        %v1113 = vadd.f32 %v954, %v1041
        %v1114 = vadd.f32 %v958, %v1043
        %v1115 = vadd.f32 %v962, %v1051
        %v1116 = vadd.f32 %v966, %v1059
        %v1117 = vadd.f32 %v970, %v1058
        %v1118 = vadd.f32 %v974, %v1060
        %v1119 = vadd.f32 %v978, %v1068
        %v1120 = vadd.f32 %v982, %v1076
        %v1121 = vadd.f32 %v986, %v1075
        %v1122 = vadd.f32 %v990, %v1077
        %v1123 = vadd.f32 %v994, %v1085
        %v1124 = vadd.f32 %v998, %v1093
        %v1125 = vadd.f32 %v1002, %v1092
        %v1126 = vadd.f32 %v1006, %v1094
        %s1127 = scalar_lea.vmem %s0, 32
        %v1128 = vld [vmem:[%s1127] sm:$0xff]
        %v1129 = vld [vmem:[%s1127 + $0x8] sm:$0xff]
        %v1130 = vld [vmem:[%s1127 + $0x10] sm:$0xff]
        %v1131 = vld [vmem:[%s1127 + $0x18] sm:$0xff]
        %s1132 = scalar_lea.vmem %s1, 16
        %v1133 = vld [vmem:[%s1132] sm:$0xff]
        %v1134 = vld [vmem:[%s1132 + $0x8] sm:$0xff]
        %v1137 = vlaneseq
        %v1138 = vshrl.u32 %v1137, 7
        %v1139 = vsub.s32 0, %v1138
        %v1140 = vrot.slane %v1133, %v1139
        %v1141 = vlaneseq
        %v1142 = vshrl.u32 %v1141, 7
        %v1143 = vsub.s32 1, %v1142
        %v1144 = vrot.slane %v1133, %v1143
        %v1145 = vlaneseq
        %v1146 = vshrl.u32 %v1145, 7
        %v1147 = vsub.s32 2, %v1146
        %v1148 = vrot.slane %v1133, %v1147
        %v1149 = vlaneseq
        %v1150 = vshrl.u32 %v1149, 7
        %v1151 = vsub.s32 3, %v1150
        %v1152 = vrot.slane %v1133, %v1151
        %v1153 = vlaneseq
        %v1154 = vshrl.u32 %v1153, 7
        %v1155 = vsub.s32 4, %v1154
        %v1156 = vrot.slane %v1133, %v1155
        %v1157 = vlaneseq
        %v1158 = vshrl.u32 %v1157, 7
        %v1159 = vsub.s32 5, %v1158
        %v1160 = vrot.slane %v1133, %v1159
        %v1161 = vlaneseq
        %v1162 = vshrl.u32 %v1161, 7
        %v1163 = vsub.s32 6, %v1162
        %v1164 = vrot.slane %v1133, %v1163
        %v1165 = vlaneseq
        %v1166 = vshrl.u32 %v1165, 7
        %v1167 = vsub.s32 7, %v1166
        %v1168 = vrot.slane %v1133, %v1167
        %v1169 = vlaneseq
        %v1170 = vshrl.u32 %v1169, 7
        %v1171 = vsub.s32 0, %v1170
        %v1172 = vrot.slane %v1134, %v1171
        %v1173 = vlaneseq
        %v1174 = vshrl.u32 %v1173, 7
        %v1175 = vsub.s32 1, %v1174
        %v1176 = vrot.slane %v1134, %v1175
        %v1177 = vlaneseq
        %v1178 = vshrl.u32 %v1177, 7
        %v1179 = vsub.s32 2, %v1178
        %v1180 = vrot.slane %v1134, %v1179
        %v1181 = vlaneseq
        %v1182 = vshrl.u32 %v1181, 7
        %v1183 = vsub.s32 3, %v1182
        %v1184 = vrot.slane %v1134, %v1183
        %v1185 = vlaneseq
        %v1186 = vshrl.u32 %v1185, 7
        %v1187 = vsub.s32 4, %v1186
        %v1188 = vrot.slane %v1134, %v1187
        %v1189 = vlaneseq
        %v1190 = vshrl.u32 %v1189, 7
        %v1191 = vsub.s32 5, %v1190
        %v1192 = vrot.slane %v1134, %v1191
        %v1193 = vlaneseq
        %v1194 = vshrl.u32 %v1193, 7
        %v1195 = vsub.s32 6, %v1194
        %v1196 = vrot.slane %v1134, %v1195
        %v1197 = vlaneseq
        %v1198 = vshrl.u32 %v1197, 7
        %v1199 = vsub.s32 7, %v1198
        %v1200 = vrot.slane %v1134, %v1199
        %v1201 = vcombine.low %v1140, %v1144
        %v1202 = vcombine.low %v1148, %v1152
        %v1204 = vunpack.c.l.s4 1983009808
        %v1205 = vunpack.c.0.s8 %v1204
        %v1206 = vlaneseq
        %v1207 = vshrl.u32 %v1206, 7
        %v1208 = vsub.s32 %v1205, %v1207
        %v1209 = vrot.slane %v1201, %v1208
        %v1211 = vunpack.c.l.s4 1983009808
        %v1212 = vunpack.c.0.s8 %v1211
        %v1213 = vlaneseq
        %v1214 = vshrl.u32 %v1213, 7
        %v1215 = vsub.s32 %v1212, %v1214
        %v1216 = vrot.slane %v1202, %v1215
        %v1217 = vcombine.low %v1209, %v1216
        %v1218 = vcombine.low %v1156, %v1160
        %v1219 = vcombine.low %v1164, %v1168
        %v1221 = vunpack.c.l.s4 1983009808
        %v1222 = vunpack.c.0.s8 %v1221
        %v1223 = vlaneseq
        %v1224 = vshrl.u32 %v1223, 7
        %v1225 = vsub.s32 %v1222, %v1224
        %v1226 = vrot.slane %v1218, %v1225
        %v1228 = vunpack.c.l.s4 1983009808
        %v1229 = vunpack.c.0.s8 %v1228
        %v1230 = vlaneseq
        %v1231 = vshrl.u32 %v1230, 7
        %v1232 = vsub.s32 %v1229, %v1231
        %v1233 = vrot.slane %v1219, %v1232
        %v1234 = vcombine.low %v1226, %v1233
        %v1235 = vcombine.low %v1172, %v1176
        %v1236 = vcombine.low %v1180, %v1184
        %v1238 = vunpack.c.l.s4 1983009808
        %v1239 = vunpack.c.0.s8 %v1238
        %v1240 = vlaneseq
        %v1241 = vshrl.u32 %v1240, 7
        %v1242 = vsub.s32 %v1239, %v1241
        %v1243 = vrot.slane %v1235, %v1242
        %v1245 = vunpack.c.l.s4 1983009808
        %v1246 = vunpack.c.0.s8 %v1245
        %v1247 = vlaneseq
        %v1248 = vshrl.u32 %v1247, 7
        %v1249 = vsub.s32 %v1246, %v1248
        %v1250 = vrot.slane %v1236, %v1249
        %v1251 = vcombine.low %v1243, %v1250
        %v1252 = vcombine.low %v1188, %v1192
        %v1253 = vcombine.low %v1196, %v1200
        %v1255 = vunpack.c.l.s4 1983009808
        %v1256 = vunpack.c.0.s8 %v1255
        %v1257 = vlaneseq
        %v1258 = vshrl.u32 %v1257, 7
        %v1259 = vsub.s32 %v1256, %v1258
        %v1260 = vrot.slane %v1252, %v1259
        %v1262 = vunpack.c.l.s4 1983009808
        %v1263 = vunpack.c.0.s8 %v1262
        %v1264 = vlaneseq
        %v1265 = vshrl.u32 %v1264, 7
        %v1266 = vsub.s32 %v1263, %v1265
        %v1267 = vrot.slane %v1253, %v1266
        %v1268 = vcombine.low %v1260, %v1267
        %v1273 = vmul.f32 %v1128, %v1217
        %v1274 = vmul.f32 %v1129, %v1234
        %v1275 = vmul.f32 %v1130, %v1251
        %v1276 = vmul.f32 %v1131, %v1268
        %v1281 = vcombine.high %v1273, %v1273
        %v1283 = vunpack.c.l.s4 1983009808
        %v1284 = vunpack.c.0.s8 %v1283
        %v1285 = vlaneseq
        %v1286 = vshrl.u32 %v1285, 7
        %v1287 = vsub.s32 %v1284, %v1286
        %v1288 = vrot.slane %v1273, %v1287
        %v1290 = vunpack.c.l.s4 1983009808
        %v1291 = vunpack.c.0.s8 %v1290
        %v1292 = vlaneseq
        %v1293 = vshrl.u32 %v1292, 7
        %v1294 = vsub.s32 %v1291, %v1293
        %v1295 = vrot.slane %v1281, %v1294
        %v1296 = vcombine.high %v1288, %v1288
        %v1297 = vcombine.high %v1295, %v1295
        %v1298 = vcombine.high %v1274, %v1274
        %v1300 = vunpack.c.l.s4 1983009808
        %v1301 = vunpack.c.0.s8 %v1300
        %v1302 = vlaneseq
        %v1303 = vshrl.u32 %v1302, 7
        %v1304 = vsub.s32 %v1301, %v1303
        %v1305 = vrot.slane %v1274, %v1304
        %v1307 = vunpack.c.l.s4 1983009808
        %v1308 = vunpack.c.0.s8 %v1307
        %v1309 = vlaneseq
        %v1310 = vshrl.u32 %v1309, 7
        %v1311 = vsub.s32 %v1308, %v1310
        %v1312 = vrot.slane %v1298, %v1311
        %v1313 = vcombine.high %v1305, %v1305
        %v1314 = vcombine.high %v1312, %v1312
        %v1315 = vcombine.high %v1275, %v1275
        %v1317 = vunpack.c.l.s4 1983009808
        %v1318 = vunpack.c.0.s8 %v1317
        %v1319 = vlaneseq
        %v1320 = vshrl.u32 %v1319, 7
        %v1321 = vsub.s32 %v1318, %v1320
        %v1322 = vrot.slane %v1275, %v1321
        %v1324 = vunpack.c.l.s4 1983009808
        %v1325 = vunpack.c.0.s8 %v1324
        %v1326 = vlaneseq
        %v1327 = vshrl.u32 %v1326, 7
        %v1328 = vsub.s32 %v1325, %v1327
        %v1329 = vrot.slane %v1315, %v1328
        %v1330 = vcombine.high %v1322, %v1322
        %v1331 = vcombine.high %v1329, %v1329
        %v1332 = vcombine.high %v1276, %v1276
        %v1334 = vunpack.c.l.s4 1983009808
        %v1335 = vunpack.c.0.s8 %v1334
        %v1336 = vlaneseq
        %v1337 = vshrl.u32 %v1336, 7
        %v1338 = vsub.s32 %v1335, %v1337
        %v1339 = vrot.slane %v1276, %v1338
        %v1341 = vunpack.c.l.s4 1983009808
        %v1342 = vunpack.c.0.s8 %v1341
        %v1343 = vlaneseq
        %v1344 = vshrl.u32 %v1343, 7
        %v1345 = vsub.s32 %v1342, %v1344
        %v1346 = vrot.slane %v1332, %v1345
        %v1347 = vcombine.high %v1339, %v1339
        %v1348 = vcombine.high %v1346, %v1346
        %v1365 = vadd.f32 %v1111, %v1288
        %v1366 = vadd.f32 %v1112, %v1296
        %v1367 = vadd.f32 %v1113, %v1295
        %v1368 = vadd.f32 %v1114, %v1297
        %v1369 = vadd.f32 %v1115, %v1305
        %v1370 = vadd.f32 %v1116, %v1313
        %v1371 = vadd.f32 %v1117, %v1312
        %v1372 = vadd.f32 %v1118, %v1314
        %v1373 = vadd.f32 %v1119, %v1322
        %v1374 = vadd.f32 %v1120, %v1330
        %v1375 = vadd.f32 %v1121, %v1329
        %v1376 = vadd.f32 %v1122, %v1331
        %v1377 = vadd.f32 %v1123, %v1339
        %v1378 = vadd.f32 %v1124, %v1347
        %v1379 = vadd.f32 %v1125, %v1346
        %v1380 = vadd.f32 %v1126, %v1348
        %s1381 = scalar_lea.vmem %s0, 64
        %v1382 = vld [vmem:[%s1381] sm:$0xff]
        %v1383 = vld [vmem:[%s1381 + $0x8] sm:$0xff]
        %v1384 = vld [vmem:[%s1381 + $0x10] sm:$0xff]
        %v1385 = vld [vmem:[%s1381 + $0x18] sm:$0xff]
        %s1386 = scalar_lea.vmem %s1, 32
        %v1387 = vld [vmem:[%s1386] sm:$0xff]
        %v1388 = vld [vmem:[%s1386 + $0x8] sm:$0xff]
        %v1391 = vlaneseq
        %v1392 = vshrl.u32 %v1391, 7
        %v1393 = vsub.s32 0, %v1392
        %v1394 = vrot.slane %v1387, %v1393
        %v1395 = vlaneseq
        %v1396 = vshrl.u32 %v1395, 7
        %v1397 = vsub.s32 1, %v1396
        %v1398 = vrot.slane %v1387, %v1397
        %v1399 = vlaneseq
        %v1400 = vshrl.u32 %v1399, 7
        %v1401 = vsub.s32 2, %v1400
        %v1402 = vrot.slane %v1387, %v1401
        %v1403 = vlaneseq
        %v1404 = vshrl.u32 %v1403, 7
        %v1405 = vsub.s32 3, %v1404
        %v1406 = vrot.slane %v1387, %v1405
        %v1407 = vlaneseq
        %v1408 = vshrl.u32 %v1407, 7
        %v1409 = vsub.s32 4, %v1408
        %v1410 = vrot.slane %v1387, %v1409
        %v1411 = vlaneseq
        %v1412 = vshrl.u32 %v1411, 7
        %v1413 = vsub.s32 5, %v1412
        %v1414 = vrot.slane %v1387, %v1413
        %v1415 = vlaneseq
        %v1416 = vshrl.u32 %v1415, 7
        %v1417 = vsub.s32 6, %v1416
        %v1418 = vrot.slane %v1387, %v1417
        %v1419 = vlaneseq
        %v1420 = vshrl.u32 %v1419, 7
        %v1421 = vsub.s32 7, %v1420
        %v1422 = vrot.slane %v1387, %v1421
        %v1423 = vlaneseq
        %v1424 = vshrl.u32 %v1423, 7
        %v1425 = vsub.s32 0, %v1424
        %v1426 = vrot.slane %v1388, %v1425
        %v1427 = vlaneseq
        %v1428 = vshrl.u32 %v1427, 7
        %v1429 = vsub.s32 1, %v1428
        %v1430 = vrot.slane %v1388, %v1429
        %v1431 = vlaneseq
        %v1432 = vshrl.u32 %v1431, 7
        %v1433 = vsub.s32 2, %v1432
        %v1434 = vrot.slane %v1388, %v1433
        %v1435 = vlaneseq
        %v1436 = vshrl.u32 %v1435, 7
        %v1437 = vsub.s32 3, %v1436
        %v1438 = vrot.slane %v1388, %v1437
        %v1439 = vlaneseq
        %v1440 = vshrl.u32 %v1439, 7
        %v1441 = vsub.s32 4, %v1440
        %v1442 = vrot.slane %v1388, %v1441
        %v1443 = vlaneseq
        %v1444 = vshrl.u32 %v1443, 7
        %v1445 = vsub.s32 5, %v1444
        %v1446 = vrot.slane %v1388, %v1445
        %v1447 = vlaneseq
        %v1448 = vshrl.u32 %v1447, 7
        %v1449 = vsub.s32 6, %v1448
        %v1450 = vrot.slane %v1388, %v1449
        %v1451 = vlaneseq
        %v1452 = vshrl.u32 %v1451, 7
        %v1453 = vsub.s32 7, %v1452
        %v1454 = vrot.slane %v1388, %v1453
        %v1455 = vcombine.low %v1394, %v1398
        %v1456 = vcombine.low %v1402, %v1406
        %v1458 = vunpack.c.l.s4 1983009808
        %v1459 = vunpack.c.0.s8 %v1458
        %v1460 = vlaneseq
        %v1461 = vshrl.u32 %v1460, 7
        %v1462 = vsub.s32 %v1459, %v1461
        %v1463 = vrot.slane %v1455, %v1462
        %v1465 = vunpack.c.l.s4 1983009808
        %v1466 = vunpack.c.0.s8 %v1465
        %v1467 = vlaneseq
        %v1468 = vshrl.u32 %v1467, 7
        %v1469 = vsub.s32 %v1466, %v1468
        %v1470 = vrot.slane %v1456, %v1469
        %v1471 = vcombine.low %v1463, %v1470
        %v1472 = vcombine.low %v1410, %v1414
        %v1473 = vcombine.low %v1418, %v1422
        %v1475 = vunpack.c.l.s4 1983009808
        %v1476 = vunpack.c.0.s8 %v1475
        %v1477 = vlaneseq
        %v1478 = vshrl.u32 %v1477, 7
        %v1479 = vsub.s32 %v1476, %v1478
        %v1480 = vrot.slane %v1472, %v1479
        %v1482 = vunpack.c.l.s4 1983009808
        %v1483 = vunpack.c.0.s8 %v1482
        %v1484 = vlaneseq
        %v1485 = vshrl.u32 %v1484, 7
        %v1486 = vsub.s32 %v1483, %v1485
        %v1487 = vrot.slane %v1473, %v1486
        %v1488 = vcombine.low %v1480, %v1487
        %v1489 = vcombine.low %v1426, %v1430
        %v1490 = vcombine.low %v1434, %v1438
        %v1492 = vunpack.c.l.s4 1983009808
        %v1493 = vunpack.c.0.s8 %v1492
        %v1494 = vlaneseq
        %v1495 = vshrl.u32 %v1494, 7
        %v1496 = vsub.s32 %v1493, %v1495
        %v1497 = vrot.slane %v1489, %v1496
        %v1499 = vunpack.c.l.s4 1983009808
        %v1500 = vunpack.c.0.s8 %v1499
        %v1501 = vlaneseq
        %v1502 = vshrl.u32 %v1501, 7
        %v1503 = vsub.s32 %v1500, %v1502
        %v1504 = vrot.slane %v1490, %v1503
        %v1505 = vcombine.low %v1497, %v1504
        %v1506 = vcombine.low %v1442, %v1446
        %v1507 = vcombine.low %v1450, %v1454
        %v1509 = vunpack.c.l.s4 1983009808
        %v1510 = vunpack.c.0.s8 %v1509
        %v1511 = vlaneseq
        %v1512 = vshrl.u32 %v1511, 7
        %v1513 = vsub.s32 %v1510, %v1512
        %v1514 = vrot.slane %v1506, %v1513
        %v1516 = vunpack.c.l.s4 1983009808
        %v1517 = vunpack.c.0.s8 %v1516
        %v1518 = vlaneseq
        %v1519 = vshrl.u32 %v1518, 7
        %v1520 = vsub.s32 %v1517, %v1519
        %v1521 = vrot.slane %v1507, %v1520
        %v1522 = vcombine.low %v1514, %v1521
        %v1527 = vmul.f32 %v1382, %v1471
        %v1528 = vmul.f32 %v1383, %v1488
        %v1529 = vmul.f32 %v1384, %v1505
        %v1530 = vmul.f32 %v1385, %v1522
        %v1535 = vcombine.high %v1527, %v1527
        %v1537 = vunpack.c.l.s4 1983009808
        %v1538 = vunpack.c.0.s8 %v1537
        %v1539 = vlaneseq
        %v1540 = vshrl.u32 %v1539, 7
        %v1541 = vsub.s32 %v1538, %v1540
        %v1542 = vrot.slane %v1527, %v1541
        %v1544 = vunpack.c.l.s4 1983009808
        %v1545 = vunpack.c.0.s8 %v1544
        %v1546 = vlaneseq
        %v1547 = vshrl.u32 %v1546, 7
        %v1548 = vsub.s32 %v1545, %v1547
        %v1549 = vrot.slane %v1535, %v1548
        %v1550 = vcombine.high %v1542, %v1542
        %v1551 = vcombine.high %v1549, %v1549
        %v1552 = vcombine.high %v1528, %v1528
        %v1554 = vunpack.c.l.s4 1983009808
        %v1555 = vunpack.c.0.s8 %v1554
        %v1556 = vlaneseq
        %v1557 = vshrl.u32 %v1556, 7
        %v1558 = vsub.s32 %v1555, %v1557
        %v1559 = vrot.slane %v1528, %v1558
        %v1561 = vunpack.c.l.s4 1983009808
        %v1562 = vunpack.c.0.s8 %v1561
        %v1563 = vlaneseq
        %v1564 = vshrl.u32 %v1563, 7
        %v1565 = vsub.s32 %v1562, %v1564
        %v1566 = vrot.slane %v1552, %v1565
        %v1567 = vcombine.high %v1559, %v1559
        %v1568 = vcombine.high %v1566, %v1566
        %v1569 = vcombine.high %v1529, %v1529
        %v1571 = vunpack.c.l.s4 1983009808
        %v1572 = vunpack.c.0.s8 %v1571
        %v1573 = vlaneseq
        %v1574 = vshrl.u32 %v1573, 7
        %v1575 = vsub.s32 %v1572, %v1574
        %v1576 = vrot.slane %v1529, %v1575
        %v1578 = vunpack.c.l.s4 1983009808
        %v1579 = vunpack.c.0.s8 %v1578
        %v1580 = vlaneseq
        %v1581 = vshrl.u32 %v1580, 7
        %v1582 = vsub.s32 %v1579, %v1581
        %v1583 = vrot.slane %v1569, %v1582
        %v1584 = vcombine.high %v1576, %v1576
        %v1585 = vcombine.high %v1583, %v1583
        %v1586 = vcombine.high %v1530, %v1530
        %v1588 = vunpack.c.l.s4 1983009808
        %v1589 = vunpack.c.0.s8 %v1588
        %v1590 = vlaneseq
        %v1591 = vshrl.u32 %v1590, 7
        %v1592 = vsub.s32 %v1589, %v1591
        %v1593 = vrot.slane %v1530, %v1592
        %v1595 = vunpack.c.l.s4 1983009808
        %v1596 = vunpack.c.0.s8 %v1595
        %v1597 = vlaneseq
        %v1598 = vshrl.u32 %v1597, 7
        %v1599 = vsub.s32 %v1596, %v1598
        %v1600 = vrot.slane %v1586, %v1599
        %v1601 = vcombine.high %v1593, %v1593
        %v1602 = vcombine.high %v1600, %v1600
        %v1619 = vadd.f32 %v1365, %v1542
        %v1620 = vadd.f32 %v1366, %v1550
        %v1621 = vadd.f32 %v1367, %v1549
        %v1622 = vadd.f32 %v1368, %v1551
        %v1623 = vadd.f32 %v1369, %v1559
        %v1624 = vadd.f32 %v1370, %v1567
        %v1625 = vadd.f32 %v1371, %v1566
        %v1626 = vadd.f32 %v1372, %v1568
        %v1627 = vadd.f32 %v1373, %v1576
        %v1628 = vadd.f32 %v1374, %v1584
        %v1629 = vadd.f32 %v1375, %v1583
        %v1630 = vadd.f32 %v1376, %v1585
        %v1631 = vadd.f32 %v1377, %v1593
        %v1632 = vadd.f32 %v1378, %v1601
        %v1633 = vadd.f32 %v1379, %v1600
        %v1634 = vadd.f32 %v1380, %v1602
        %s1635 = scalar_lea.vmem %s0, 96
        %v1636 = vld [vmem:[%s1635] sm:$0xff]
        %v1637 = vld [vmem:[%s1635 + $0x8] sm:$0xff]
        %v1638 = vld [vmem:[%s1635 + $0x10] sm:$0xff]
        %v1639 = vld [vmem:[%s1635 + $0x18] sm:$0xff]
        %s1640 = scalar_lea.vmem %s1, 48
        %v1641 = vld [vmem:[%s1640] sm:$0xff]
        %v1642 = vld [vmem:[%s1640 + $0x8] sm:$0xff]
        %v1645 = vlaneseq
        %v1646 = vshrl.u32 %v1645, 7
        %v1647 = vsub.s32 0, %v1646
        %v1648 = vrot.slane %v1641, %v1647
        %v1649 = vlaneseq
        %v1650 = vshrl.u32 %v1649, 7
        %v1651 = vsub.s32 1, %v1650
        %v1652 = vrot.slane %v1641, %v1651
        %v1653 = vlaneseq
        %v1654 = vshrl.u32 %v1653, 7
        %v1655 = vsub.s32 2, %v1654
        %v1656 = vrot.slane %v1641, %v1655
        %v1657 = vlaneseq
        %v1658 = vshrl.u32 %v1657, 7
        %v1659 = vsub.s32 3, %v1658
        %v1660 = vrot.slane %v1641, %v1659
        %v1661 = vlaneseq
        %v1662 = vshrl.u32 %v1661, 7
        %v1663 = vsub.s32 4, %v1662
        %v1664 = vrot.slane %v1641, %v1663
        %v1665 = vlaneseq
        %v1666 = vshrl.u32 %v1665, 7
        %v1667 = vsub.s32 5, %v1666
        %v1668 = vrot.slane %v1641, %v1667
        %v1669 = vlaneseq
        %v1670 = vshrl.u32 %v1669, 7
        %v1671 = vsub.s32 6, %v1670
        %v1672 = vrot.slane %v1641, %v1671
        %v1673 = vlaneseq
        %v1674 = vshrl.u32 %v1673, 7
        %v1675 = vsub.s32 7, %v1674
        %v1676 = vrot.slane %v1641, %v1675
        %v1677 = vlaneseq
        %v1678 = vshrl.u32 %v1677, 7
        %v1679 = vsub.s32 0, %v1678
        %v1680 = vrot.slane %v1642, %v1679
        %v1681 = vlaneseq
        %v1682 = vshrl.u32 %v1681, 7
        %v1683 = vsub.s32 1, %v1682
        %v1684 = vrot.slane %v1642, %v1683
        %v1685 = vlaneseq
        %v1686 = vshrl.u32 %v1685, 7
        %v1687 = vsub.s32 2, %v1686
        %v1688 = vrot.slane %v1642, %v1687
        %v1689 = vlaneseq
        %v1690 = vshrl.u32 %v1689, 7
        %v1691 = vsub.s32 3, %v1690
        %v1692 = vrot.slane %v1642, %v1691
        %v1693 = vlaneseq
        %v1694 = vshrl.u32 %v1693, 7
        %v1695 = vsub.s32 4, %v1694
        %v1696 = vrot.slane %v1642, %v1695
        %v1697 = vlaneseq
        %v1698 = vshrl.u32 %v1697, 7
        %v1699 = vsub.s32 5, %v1698
        %v1700 = vrot.slane %v1642, %v1699
        %v1701 = vlaneseq
        %v1702 = vshrl.u32 %v1701, 7
        %v1703 = vsub.s32 6, %v1702
        %v1704 = vrot.slane %v1642, %v1703
        %v1705 = vlaneseq
        %v1706 = vshrl.u32 %v1705, 7
        %v1707 = vsub.s32 7, %v1706
        %v1708 = vrot.slane %v1642, %v1707
        %v1709 = vcombine.low %v1648, %v1652
        %v1710 = vcombine.low %v1656, %v1660
        %v1712 = vunpack.c.l.s4 1983009808
        %v1713 = vunpack.c.0.s8 %v1712
        %v1714 = vlaneseq
        %v1715 = vshrl.u32 %v1714, 7
        %v1716 = vsub.s32 %v1713, %v1715
        %v1717 = vrot.slane %v1709, %v1716
        %v1719 = vunpack.c.l.s4 1983009808
        %v1720 = vunpack.c.0.s8 %v1719
        %v1721 = vlaneseq
        %v1722 = vshrl.u32 %v1721, 7
        %v1723 = vsub.s32 %v1720, %v1722
        %v1724 = vrot.slane %v1710, %v1723
        %v1725 = vcombine.low %v1717, %v1724
        %v1726 = vcombine.low %v1664, %v1668
        %v1727 = vcombine.low %v1672, %v1676
        %v1729 = vunpack.c.l.s4 1983009808
        %v1730 = vunpack.c.0.s8 %v1729
        %v1731 = vlaneseq
        %v1732 = vshrl.u32 %v1731, 7
        %v1733 = vsub.s32 %v1730, %v1732
        %v1734 = vrot.slane %v1726, %v1733
        %v1736 = vunpack.c.l.s4 1983009808
        %v1737 = vunpack.c.0.s8 %v1736
        %v1738 = vlaneseq
        %v1739 = vshrl.u32 %v1738, 7
        %v1740 = vsub.s32 %v1737, %v1739
        %v1741 = vrot.slane %v1727, %v1740
        %v1742 = vcombine.low %v1734, %v1741
        %v1743 = vcombine.low %v1680, %v1684
        %v1744 = vcombine.low %v1688, %v1692
        %v1746 = vunpack.c.l.s4 1983009808
        %v1747 = vunpack.c.0.s8 %v1746
        %v1748 = vlaneseq
        %v1749 = vshrl.u32 %v1748, 7
        %v1750 = vsub.s32 %v1747, %v1749
        %v1751 = vrot.slane %v1743, %v1750
        %v1753 = vunpack.c.l.s4 1983009808
        %v1754 = vunpack.c.0.s8 %v1753
        %v1755 = vlaneseq
        %v1756 = vshrl.u32 %v1755, 7
        %v1757 = vsub.s32 %v1754, %v1756
        %v1758 = vrot.slane %v1744, %v1757
        %v1759 = vcombine.low %v1751, %v1758
        %v1760 = vcombine.low %v1696, %v1700
        %v1761 = vcombine.low %v1704, %v1708
        %v1763 = vunpack.c.l.s4 1983009808
        %v1764 = vunpack.c.0.s8 %v1763
        %v1765 = vlaneseq
        %v1766 = vshrl.u32 %v1765, 7
        %v1767 = vsub.s32 %v1764, %v1766
        %v1768 = vrot.slane %v1760, %v1767
        %v1770 = vunpack.c.l.s4 1983009808
        %v1771 = vunpack.c.0.s8 %v1770
        %v1772 = vlaneseq
        %v1773 = vshrl.u32 %v1772, 7
        %v1774 = vsub.s32 %v1771, %v1773
        %v1775 = vrot.slane %v1761, %v1774
        %v1776 = vcombine.low %v1768, %v1775
        %v1781 = vmul.f32 %v1636, %v1725
        %v1782 = vmul.f32 %v1637, %v1742
        %v1783 = vmul.f32 %v1638, %v1759
        %v1784 = vmul.f32 %v1639, %v1776
        %v1789 = vcombine.high %v1781, %v1781
        %v1791 = vunpack.c.l.s4 1983009808
        %v1792 = vunpack.c.0.s8 %v1791
        %v1793 = vlaneseq
        %v1794 = vshrl.u32 %v1793, 7
        %v1795 = vsub.s32 %v1792, %v1794
        %v1796 = vrot.slane %v1781, %v1795
        %v1798 = vunpack.c.l.s4 1983009808
        %v1799 = vunpack.c.0.s8 %v1798
        %v1800 = vlaneseq
        %v1801 = vshrl.u32 %v1800, 7
        %v1802 = vsub.s32 %v1799, %v1801
        %v1803 = vrot.slane %v1789, %v1802
        %v1804 = vcombine.high %v1796, %v1796
        %v1805 = vcombine.high %v1803, %v1803
        %v1806 = vcombine.high %v1782, %v1782
        %v1808 = vunpack.c.l.s4 1983009808
        %v1809 = vunpack.c.0.s8 %v1808
        %v1810 = vlaneseq
        %v1811 = vshrl.u32 %v1810, 7
        %v1812 = vsub.s32 %v1809, %v1811
        %v1813 = vrot.slane %v1782, %v1812
        %v1815 = vunpack.c.l.s4 1983009808
        %v1816 = vunpack.c.0.s8 %v1815
        %v1817 = vlaneseq
        %v1818 = vshrl.u32 %v1817, 7
        %v1819 = vsub.s32 %v1816, %v1818
        %v1820 = vrot.slane %v1806, %v1819
        %v1821 = vcombine.high %v1813, %v1813
        %v1822 = vcombine.high %v1820, %v1820
        %v1823 = vcombine.high %v1783, %v1783
        %v1825 = vunpack.c.l.s4 1983009808
        %v1826 = vunpack.c.0.s8 %v1825
        %v1827 = vlaneseq
        %v1828 = vshrl.u32 %v1827, 7
        %v1829 = vsub.s32 %v1826, %v1828
        %v1830 = vrot.slane %v1783, %v1829
        %v1832 = vunpack.c.l.s4 1983009808
        %v1833 = vunpack.c.0.s8 %v1832
        %v1834 = vlaneseq
        %v1835 = vshrl.u32 %v1834, 7
        %v1836 = vsub.s32 %v1833, %v1835
        %v1837 = vrot.slane %v1823, %v1836
        %v1838 = vcombine.high %v1830, %v1830
        %v1839 = vcombine.high %v1837, %v1837
        %v1840 = vcombine.high %v1784, %v1784
        %v1842 = vunpack.c.l.s4 1983009808
        %v1843 = vunpack.c.0.s8 %v1842
        %v1844 = vlaneseq
        %v1845 = vshrl.u32 %v1844, 7
        %v1846 = vsub.s32 %v1843, %v1845
        %v1847 = vrot.slane %v1784, %v1846
        %v1849 = vunpack.c.l.s4 1983009808
        %v1850 = vunpack.c.0.s8 %v1849
        %v1851 = vlaneseq
        %v1852 = vshrl.u32 %v1851, 7
        %v1853 = vsub.s32 %v1850, %v1852
        %v1854 = vrot.slane %v1840, %v1853
        %v1855 = vcombine.high %v1847, %v1847
        %v1856 = vcombine.high %v1854, %v1854
        %v1873 = vadd.f32 %v1619, %v1796
        %v1874 = vadd.f32 %v1620, %v1804
        %v1875 = vadd.f32 %v1621, %v1803
        %v1876 = vadd.f32 %v1622, %v1805
        %v1877 = vadd.f32 %v1623, %v1813
        %v1878 = vadd.f32 %v1624, %v1821
        %v1879 = vadd.f32 %v1625, %v1820
        %v1880 = vadd.f32 %v1626, %v1822
        %v1881 = vadd.f32 %v1627, %v1830
        %v1882 = vadd.f32 %v1628, %v1838
        %v1883 = vadd.f32 %v1629, %v1837
        %v1884 = vadd.f32 %v1630, %v1839
        %v1885 = vadd.f32 %v1631, %v1847
        %v1886 = vadd.f32 %v1632, %v1855
        %v1887 = vadd.f32 %v1633, %v1854
        %v1888 = vadd.f32 %v1634, %v1856
        %v1889 = vmax.f32 %v1873, 0.0
        %v1890 = vmax.f32 %v1874, 0.0
        %v1891 = vmax.f32 %v1875, 0.0
        %v1892 = vmax.f32 %v1876, 0.0
        %v1893 = vmax.f32 %v1877, 0.0
        %v1894 = vmax.f32 %v1878, 0.0
        %v1895 = vmax.f32 %v1879, 0.0
        %v1896 = vmax.f32 %v1880, 0.0
        %v1897 = vmax.f32 %v1881, 0.0
        %v1898 = vmax.f32 %v1882, 0.0
        %v1899 = vmax.f32 %v1883, 0.0
        %v1900 = vmax.f32 %v1884, 0.0
        %v1901 = vmax.f32 %v1885, 0.0
        %v1902 = vmax.f32 %v1886, 0.0
        %v1903 = vmax.f32 %v1887, 0.0
        %v1904 = vmax.f32 %v1888, 0.0
        %v1905 = vld [vmem:[%s4] sm:$0x3]
        %1907 = vset.pattern.permute.xlu0 0
        %1908 = vperm.xlu0 %1907, %v1905
        %v1909 = vpop.permute.xlu0 %1908
        %v1911 = vmul.f32 %v1909, %v1889
        %v1912 = vmul.f32 %v1909, %v1890
        %v1913 = vmul.f32 %v1909, %v1891
        %v1914 = vmul.f32 %v1909, %v1892
        %v1915 = vmul.f32 %v1909, %v1893
        %v1916 = vmul.f32 %v1909, %v1894
        %v1917 = vmul.f32 %v1909, %v1895
        %v1918 = vmul.f32 %v1909, %v1896
        %v1919 = vmul.f32 %v1909, %v1897
        %v1920 = vmul.f32 %v1909, %v1898
        %v1921 = vmul.f32 %v1909, %v1899
        %v1922 = vmul.f32 %v1909, %v1900
        %v1923 = vmul.f32 %v1909, %v1901
        %v1924 = vmul.f32 %v1909, %v1902
        %v1925 = vmul.f32 %v1909, %v1903
        %v1926 = vmul.f32 %v1909, %v1904
        %v1927 = vld [vmem:[%s5] sm:$0x3]
        %v1928 = vld [vmem:[%s3] sm:$0xff]
        %v1929 = vld [vmem:[%s3 + $0x8] sm:$0xff]
        %v1930 = vld [vmem:[%s3 + $0x10] sm:$0xff]
        %v1931 = vld [vmem:[%s3 + $0x18] sm:$0xff]
        %1933 = vset.pattern.permute.xlu0 0
        %1934 = vperm.xlu0 %1933, %v1927
        %v1935 = vpop.permute.xlu0 %1934
        %v1941 = vcombine.high %v1928, %v1928
        %v1943 = vunpack.c.l.s4 1983009808
        %v1944 = vunpack.c.0.s8 %v1943
        %v1945 = vlaneseq
        %v1946 = vshrl.u32 %v1945, 7
        %v1947 = vsub.s32 %v1944, %v1946
        %v1948 = vrot.slane %v1928, %v1947
        %v1950 = vunpack.c.l.s4 1983009808
        %v1951 = vunpack.c.0.s8 %v1950
        %v1952 = vlaneseq
        %v1953 = vshrl.u32 %v1952, 7
        %v1954 = vsub.s32 %v1951, %v1953
        %v1955 = vrot.slane %v1941, %v1954
        %v1956 = vcombine.high %v1948, %v1948
        %v1957 = vcombine.high %v1955, %v1955
        %v1958 = vcombine.high %v1929, %v1929
        %v1960 = vunpack.c.l.s4 1983009808
        %v1961 = vunpack.c.0.s8 %v1960
        %v1962 = vlaneseq
        %v1963 = vshrl.u32 %v1962, 7
        %v1964 = vsub.s32 %v1961, %v1963
        %v1965 = vrot.slane %v1929, %v1964
        %v1967 = vunpack.c.l.s4 1983009808
        %v1968 = vunpack.c.0.s8 %v1967
        %v1969 = vlaneseq
        %v1970 = vshrl.u32 %v1969, 7
        %v1971 = vsub.s32 %v1968, %v1970
        %v1972 = vrot.slane %v1958, %v1971
        %v1973 = vcombine.high %v1965, %v1965
        %v1974 = vcombine.high %v1972, %v1972
        %v1975 = vcombine.high %v1930, %v1930
        %v1977 = vunpack.c.l.s4 1983009808
        %v1978 = vunpack.c.0.s8 %v1977
        %v1979 = vlaneseq
        %v1980 = vshrl.u32 %v1979, 7
        %v1981 = vsub.s32 %v1978, %v1980
        %v1982 = vrot.slane %v1930, %v1981
        %v1984 = vunpack.c.l.s4 1983009808
        %v1985 = vunpack.c.0.s8 %v1984
        %v1986 = vlaneseq
        %v1987 = vshrl.u32 %v1986, 7
        %v1988 = vsub.s32 %v1985, %v1987
        %v1989 = vrot.slane %v1975, %v1988
        %v1990 = vcombine.high %v1982, %v1982
        %v1991 = vcombine.high %v1989, %v1989
        %v1992 = vcombine.high %v1931, %v1931
        %v1994 = vunpack.c.l.s4 1983009808
        %v1995 = vunpack.c.0.s8 %v1994
        %v1996 = vlaneseq
        %v1997 = vshrl.u32 %v1996, 7
        %v1998 = vsub.s32 %v1995, %v1997
        %v1999 = vrot.slane %v1931, %v1998
        %v2001 = vunpack.c.l.s4 1983009808
        %v2002 = vunpack.c.0.s8 %v2001
        %v2003 = vlaneseq
        %v2004 = vshrl.u32 %v2003, 7
        %v2005 = vsub.s32 %v2002, %v2004
        %v2006 = vrot.slane %v1992, %v2005
        %v2007 = vcombine.high %v1999, %v1999
        %v2008 = vcombine.high %v2006, %v2006
        %v2025 = vmul.f32 %v1935, %v1948
        %v2026 = vmul.f32 %v1935, %v1956
        %v2027 = vmul.f32 %v1935, %v1955
        %v2028 = vmul.f32 %v1935, %v1957
        %v2029 = vmul.f32 %v1935, %v1965
        %v2030 = vmul.f32 %v1935, %v1973
        %v2031 = vmul.f32 %v1935, %v1972
        %v2032 = vmul.f32 %v1935, %v1974
        %v2033 = vmul.f32 %v1935, %v1982
        %v2034 = vmul.f32 %v1935, %v1990
        %v2035 = vmul.f32 %v1935, %v1989
        %v2036 = vmul.f32 %v1935, %v1991
        %v2037 = vmul.f32 %v1935, %v1999
        %v2038 = vmul.f32 %v1935, %v2007
        %v2039 = vmul.f32 %v1935, %v2006
        %v2040 = vmul.f32 %v1935, %v2008
        %v2041 = vadd.f32 %v1911, %v2025
        %v2042 = vadd.f32 %v1912, %v2026
        %v2043 = vadd.f32 %v1913, %v2027
        %v2044 = vadd.f32 %v1914, %v2028
        %v2045 = vadd.f32 %v1915, %v2029
        %v2046 = vadd.f32 %v1916, %v2030
        %v2047 = vadd.f32 %v1917, %v2031
        %v2048 = vadd.f32 %v1918, %v2032
        %v2049 = vadd.f32 %v1919, %v2033
        %v2050 = vadd.f32 %v1920, %v2034
        %v2051 = vadd.f32 %v1921, %v2035
        %v2052 = vadd.f32 %v1922, %v2036
        %v2053 = vadd.f32 %v1923, %v2037
        %v2054 = vadd.f32 %v1924, %v2038
        %v2055 = vadd.f32 %v1925, %v2039
        %v2056 = vadd.f32 %v1926, %v2040
        %v2073 = vcombine.low %v2041, %v2042
        %v2074 = vcombine.low %v2043, %v2044
        %v2076 = vunpack.c.l.s4 1983009808
        %v2077 = vunpack.c.0.s8 %v2076
        %v2078 = vlaneseq
        %v2079 = vshrl.u32 %v2078, 7
        %v2080 = vsub.s32 %v2077, %v2079
        %v2081 = vrot.slane %v2073, %v2080
        %v2083 = vunpack.c.l.s4 1983009808
        %v2084 = vunpack.c.0.s8 %v2083
        %v2085 = vlaneseq
        %v2086 = vshrl.u32 %v2085, 7
        %v2087 = vsub.s32 %v2084, %v2086
        %v2088 = vrot.slane %v2074, %v2087
        %v2089 = vcombine.low %v2081, %v2088
        %v2090 = vcombine.low %v2045, %v2046
        %v2091 = vcombine.low %v2047, %v2048
        %v2093 = vunpack.c.l.s4 1983009808
        %v2094 = vunpack.c.0.s8 %v2093
        %v2095 = vlaneseq
        %v2096 = vshrl.u32 %v2095, 7
        %v2097 = vsub.s32 %v2094, %v2096
        %v2098 = vrot.slane %v2090, %v2097
        %v2100 = vunpack.c.l.s4 1983009808
        %v2101 = vunpack.c.0.s8 %v2100
        %v2102 = vlaneseq
        %v2103 = vshrl.u32 %v2102, 7
        %v2104 = vsub.s32 %v2101, %v2103
        %v2105 = vrot.slane %v2091, %v2104
        %v2106 = vcombine.low %v2098, %v2105
        %v2107 = vcombine.low %v2049, %v2050
        %v2108 = vcombine.low %v2051, %v2052
        %v2110 = vunpack.c.l.s4 1983009808
        %v2111 = vunpack.c.0.s8 %v2110
        %v2112 = vlaneseq
        %v2113 = vshrl.u32 %v2112, 7
        %v2114 = vsub.s32 %v2111, %v2113
        %v2115 = vrot.slane %v2107, %v2114
        %v2117 = vunpack.c.l.s4 1983009808
        %v2118 = vunpack.c.0.s8 %v2117
        %v2119 = vlaneseq
        %v2120 = vshrl.u32 %v2119, 7
        %v2121 = vsub.s32 %v2118, %v2120
        %v2122 = vrot.slane %v2108, %v2121
        %v2123 = vcombine.low %v2115, %v2122
        %v2124 = vcombine.low %v2053, %v2054
        %v2125 = vcombine.low %v2055, %v2056
        %v2127 = vunpack.c.l.s4 1983009808
        %v2128 = vunpack.c.0.s8 %v2127
        %v2129 = vlaneseq
        %v2130 = vshrl.u32 %v2129, 7
        %v2131 = vsub.s32 %v2128, %v2130
        %v2132 = vrot.slane %v2124, %v2131
        %v2134 = vunpack.c.l.s4 1983009808
        %v2135 = vunpack.c.0.s8 %v2134
        %v2136 = vlaneseq
        %v2137 = vshrl.u32 %v2136, 7
        %v2138 = vsub.s32 %v2135, %v2137
        %v2139 = vrot.slane %v2125, %v2138
        %v2140 = vcombine.low %v2132, %v2139
        %2145 = vst [vmem:[#allocation2] sm:$0xff] %v2089
        %2146 = vst [vmem:[#allocation2 + $0x8] sm:$0xff] %v2106
        %2147 = vst [vmem:[#allocation2 + $0x10] sm:$0xff] %v2123
        %2148 = vst [vmem:[#allocation2 + $0x18] sm:$0xff] %v2140
        %v2149 = vld [vmem:[%s6] sm:$0x3]
        %2150 = vst [vmem:[#allocation2 + $0x20] sm:$0x3] %v2149
        %v2151 = vld [vmem:[#allocation2] sm:$0xff]
        %v2152 = vld [vmem:[#allocation2 + $0x8] sm:$0xff]
        %v2153 = vld [vmem:[#allocation2 + $0x10] sm:$0xff]
        %v2154 = vld [vmem:[#allocation2 + $0x18] sm:$0xff]
        %v2155 = vld [vmem:[#allocation2 + $0x20] sm:$0x3]
        %v2161 = vcombine.high %v2151, %v2151
        %v2163 = vunpack.c.l.s4 1983009808
        %v2164 = vunpack.c.0.s8 %v2163
        %v2165 = vlaneseq
        %v2166 = vshrl.u32 %v2165, 7
        %v2167 = vsub.s32 %v2164, %v2166
        %v2168 = vrot.slane %v2151, %v2167
        %v2170 = vunpack.c.l.s4 1983009808
        %v2171 = vunpack.c.0.s8 %v2170
        %v2172 = vlaneseq
        %v2173 = vshrl.u32 %v2172, 7
        %v2174 = vsub.s32 %v2171, %v2173
        %v2175 = vrot.slane %v2161, %v2174
        %v2176 = vcombine.high %v2168, %v2168
        %v2177 = vcombine.high %v2175, %v2175
        %v2178 = vcombine.high %v2152, %v2152
        %v2180 = vunpack.c.l.s4 1983009808
        %v2181 = vunpack.c.0.s8 %v2180
        %v2182 = vlaneseq
        %v2183 = vshrl.u32 %v2182, 7
        %v2184 = vsub.s32 %v2181, %v2183
        %v2185 = vrot.slane %v2152, %v2184
        %v2187 = vunpack.c.l.s4 1983009808
        %v2188 = vunpack.c.0.s8 %v2187
        %v2189 = vlaneseq
        %v2190 = vshrl.u32 %v2189, 7
        %v2191 = vsub.s32 %v2188, %v2190
        %v2192 = vrot.slane %v2178, %v2191
        %v2193 = vcombine.high %v2185, %v2185
        %v2194 = vcombine.high %v2192, %v2192
        %v2195 = vcombine.high %v2153, %v2153
        %v2197 = vunpack.c.l.s4 1983009808
        %v2198 = vunpack.c.0.s8 %v2197
        %v2199 = vlaneseq
        %v2200 = vshrl.u32 %v2199, 7
        %v2201 = vsub.s32 %v2198, %v2200
        %v2202 = vrot.slane %v2153, %v2201
        %v2204 = vunpack.c.l.s4 1983009808
        %v2205 = vunpack.c.0.s8 %v2204
        %v2206 = vlaneseq
        %v2207 = vshrl.u32 %v2206, 7
        %v2208 = vsub.s32 %v2205, %v2207
        %v2209 = vrot.slane %v2195, %v2208
        %v2210 = vcombine.high %v2202, %v2202
        %v2211 = vcombine.high %v2209, %v2209
        %v2212 = vcombine.high %v2154, %v2154
        %v2214 = vunpack.c.l.s4 1983009808
        %v2215 = vunpack.c.0.s8 %v2214
        %v2216 = vlaneseq
        %v2217 = vshrl.u32 %v2216, 7
        %v2218 = vsub.s32 %v2215, %v2217
        %v2219 = vrot.slane %v2154, %v2218
        %v2221 = vunpack.c.l.s4 1983009808
        %v2222 = vunpack.c.0.s8 %v2221
        %v2223 = vlaneseq
        %v2224 = vshrl.u32 %v2223, 7
        %v2225 = vsub.s32 %v2222, %v2224
        %v2226 = vrot.slane %v2212, %v2225
        %v2227 = vcombine.high %v2219, %v2219
        %v2228 = vcombine.high %v2226, %v2226
        %v2230 = vunpack.c.l.s4 1983009808
        %v2231 = vunpack.c.0.s8 %v2230
        %v2232 = vlaneseq
        %v2233 = vshrl.u32 %v2232, 7
        %v2234 = vsub.s32 %v2231, %v2233
        %v2235 = vrot.slane %v2155, %v2234
        %v2253 = vpack.c.bf16 %v2168, %v2168
        %v2254 = vpack.c.bf16 %v2176, %v2176
        %v2255 = vpack.c.bf16 %v2175, %v2175
        %v2256 = vpack.c.bf16 %v2177, %v2177
        %v2257 = vpack.c.bf16 %v2185, %v2185
        %v2258 = vpack.c.bf16 %v2193, %v2193
        %v2259 = vpack.c.bf16 %v2192, %v2192
        %v2260 = vpack.c.bf16 %v2194, %v2194
        %v2261 = vpack.c.bf16 %v2202, %v2202
        %v2262 = vpack.c.bf16 %v2210, %v2210
        %v2263 = vpack.c.bf16 %v2209, %v2209
        %v2264 = vpack.c.bf16 %v2211, %v2211
        %v2265 = vpack.c.bf16 %v2219, %v2219
        %v2266 = vpack.c.bf16 %v2227, %v2227
        %v2267 = vpack.c.bf16 %v2226, %v2226
        %v2268 = vpack.c.bf16 %v2228, %v2228
        %v2269 = vpack.c.bf16 %v2235, %v2235
        %v2270 = vld [vmem:[%s7] sm:$0xff]
        %v2271 = vld [vmem:[%s7 + $0x8] sm:$0xff]
        %v2272 = vld [vmem:[%s7 + $0x10] sm:$0xff]
        %v2273 = vld [vmem:[%s7 + $0x18] sm:$0xff]
        %v2274 = vld [vmem:[%s7 + $0x20] sm:$0xff]
        %v2275 = vld [vmem:[%s7 + $0x28] sm:$0xff]
        %v2276 = vld [vmem:[%s7 + $0x30] sm:$0xff]
        %v2277 = vld [vmem:[%s7 + $0x38] sm:$0xff]
        %v2278 = vld [vmem:[%s7 + $0x40] sm:$0xff]
        %v2279 = vld [vmem:[%s7 + $0x48] sm:$0xff]
        %v2280 = vld [vmem:[%s7 + $0x50] sm:$0xff]
        %v2281 = vld [vmem:[%s7 + $0x58] sm:$0xff]
        %v2282 = vld [vmem:[%s7 + $0x60] sm:$0xff]
        %v2283 = vld [vmem:[%s7 + $0x68] sm:$0xff]
        %v2284 = vld [vmem:[%s7 + $0x70] sm:$0xff]
        %v2285 = vld [vmem:[%s7 + $0x78] sm:$0xff]
        %v2286 = vld [vmem:[%s7 + $0x80] sm:$0xff]
        %v2287 = vld [vmem:[%s7 + $0x88] sm:$0xff]
        %v2288 = vld [vmem:[%s7 + $0x90] sm:$0xff]
        %v2289 = vld [vmem:[%s7 + $0x98] sm:$0xff]
        %v2290 = vld [vmem:[%s7 + $0xa0] sm:$0xff]
        %v2291 = vld [vmem:[%s7 + $0xa8] sm:$0xff]
        %v2292 = vld [vmem:[%s7 + $0xb0] sm:$0xff]
        %v2293 = vld [vmem:[%s7 + $0xb8] sm:$0xff]
        %v2294 = vld [vmem:[%s7 + $0xc0] sm:$0xff]
        %v2295 = vld [vmem:[%s7 + $0xc8] sm:$0xff]
        %v2296 = vld [vmem:[%s7 + $0xd0] sm:$0xff]
        %v2297 = vld [vmem:[%s7 + $0xd8] sm:$0xff]
        %v2298 = vld [vmem:[%s7 + $0xe0] sm:$0xff]
        %v2299 = vld [vmem:[%s7 + $0xe8] sm:$0xff]
        %v2300 = vld [vmem:[%s7 + $0xf0] sm:$0xff]
        %v2301 = vld [vmem:[%s7 + $0xf8] sm:$0xff]
        %v2302 = vld [vmem:[%s7 + $0x100] sm:$0xff]
        %v2303 = vld [vmem:[%s7 + $0x108] sm:$0xff]
        %v2304 = vld [vmem:[%s7 + $0x110] sm:$0xff]
        %v2305 = vld [vmem:[%s7 + $0x118] sm:$0xff]
        %v2306 = vld [vmem:[%s7 + $0x120] sm:$0xff]
        %v2307 = vld [vmem:[%s7 + $0x128] sm:$0xff]
        %v2308 = vld [vmem:[%s7 + $0x130] sm:$0xff]
        %v2309 = vld [vmem:[%s7 + $0x138] sm:$0xff]
        %v2310 = vld [vmem:[%s7 + $0x140] sm:$0xff]
        %v2311 = vld [vmem:[%s7 + $0x148] sm:$0xff]
        %v2312 = vld [vmem:[%s7 + $0x150] sm:$0xff]
        %v2313 = vld [vmem:[%s7 + $0x158] sm:$0xff]
        %v2314 = vld [vmem:[%s7 + $0x160] sm:$0xff]
        %v2315 = vld [vmem:[%s7 + $0x168] sm:$0xff]
        %v2316 = vld [vmem:[%s7 + $0x170] sm:$0xff]
        %v2317 = vld [vmem:[%s7 + $0x178] sm:$0xff]
        %v2318 = vld [vmem:[%s7 + $0x180] sm:$0xff]
        %v2319 = vld [vmem:[%s7 + $0x188] sm:$0xff]
        %v2320 = vld [vmem:[%s7 + $0x190] sm:$0xff]
        %v2321 = vld [vmem:[%s7 + $0x198] sm:$0xff]
        %v2322 = vld [vmem:[%s7 + $0x1a0] sm:$0xff]
        %v2323 = vld [vmem:[%s7 + $0x1a8] sm:$0xff]
        %v2324 = vld [vmem:[%s7 + $0x1b0] sm:$0xff]
        %v2325 = vld [vmem:[%s7 + $0x1b8] sm:$0xff]
        %v2326 = vld [vmem:[%s7 + $0x1c0] sm:$0xff]
        %v2327 = vld [vmem:[%s7 + $0x1c8] sm:$0xff]
        %v2328 = vld [vmem:[%s7 + $0x1d0] sm:$0xff]
        %v2329 = vld [vmem:[%s7 + $0x1d8] sm:$0xff]
        %v2330 = vld [vmem:[%s7 + $0x1e0] sm:$0xff]
        %v2331 = vld [vmem:[%s7 + $0x1e8] sm:$0xff]
        %v2332 = vld [vmem:[%s7 + $0x1f0] sm:$0xff]
        %v2333 = vld [vmem:[%s7 + $0x1f8] sm:$0xff]
        %v2334 = vld [vmem:[%s7 + $0x200] sm:$0xff]
        %v2335 = vld [vmem:[%s7 + $0x208] sm:$0xff]
        %v2336 = vld [vmem:[%s7 + $0x210] sm:$0xff]
        %v2337 = vld [vmem:[%s7 + $0x218] sm:$0xff]
        %v2338 = vld [vmem:[%s7 + $0x220] sm:$0xff]
        %v2339 = vld [vmem:[%s7 + $0x228] sm:$0xff]
        %v2340 = vld [vmem:[%s7 + $0x230] sm:$0xff]
        %v2341 = vld [vmem:[%s7 + $0x238] sm:$0xff]
        %v2342 = vld [vmem:[%s7 + $0x240] sm:$0xff]
        %v2343 = vld [vmem:[%s7 + $0x248] sm:$0xff]
        %v2344 = vld [vmem:[%s7 + $0x250] sm:$0xff]
        %v2345 = vld [vmem:[%s7 + $0x258] sm:$0xff]
        %v2346 = vld [vmem:[%s7 + $0x260] sm:$0xff]
        %v2347 = vld [vmem:[%s7 + $0x268] sm:$0xff]
        %v2348 = vld [vmem:[%s7 + $0x270] sm:$0xff]
        %v2349 = vld [vmem:[%s7 + $0x278] sm:$0xff]
        %v2350 = vld [vmem:[%s7 + $0x280] sm:$0xff]
        %v2351 = vld [vmem:[%s7 + $0x288] sm:$0xff]
        %v2352 = vld [vmem:[%s7 + $0x290] sm:$0xff]
        %v2353 = vld [vmem:[%s7 + $0x298] sm:$0xff]
        %v2354 = vld [vmem:[%s7 + $0x2a0] sm:$0xff]
        %v2355 = vld [vmem:[%s7 + $0x2a8] sm:$0xff]
        %v2356 = vld [vmem:[%s7 + $0x2b0] sm:$0xff]
        %v2357 = vld [vmem:[%s7 + $0x2b8] sm:$0xff]
        %v2358 = vld [vmem:[%s7 + $0x2c0] sm:$0xff]
        %v2359 = vld [vmem:[%s7 + $0x2c8] sm:$0xff]
        %v2360 = vld [vmem:[%s7 + $0x2d0] sm:$0xff]
        %v2361 = vld [vmem:[%s7 + $0x2d8] sm:$0xff]
        %v2362 = vld [vmem:[%s7 + $0x2e0] sm:$0xff]
        %v2363 = vld [vmem:[%s7 + $0x2e8] sm:$0xff]
        %v2364 = vld [vmem:[%s7 + $0x2f0] sm:$0xff]
        %v2365 = vld [vmem:[%s7 + $0x2f8] sm:$0xff]
        %v2366 = vld [vmem:[%s7 + $0x300] sm:$0xff]
        %v2367 = vld [vmem:[%s7 + $0x308] sm:$0xff]
        %v2368 = vld [vmem:[%s7 + $0x310] sm:$0xff]
        %v2369 = vld [vmem:[%s7 + $0x318] sm:$0xff]
        %v2370 = vld [vmem:[%s7 + $0x320] sm:$0xff]
        %v2371 = vld [vmem:[%s7 + $0x328] sm:$0xff]
        %v2372 = vld [vmem:[%s7 + $0x330] sm:$0xff]
        %v2373 = vld [vmem:[%s7 + $0x338] sm:$0xff]
        %v2374 = vld [vmem:[%s7 + $0x340] sm:$0xff]
        %v2375 = vld [vmem:[%s7 + $0x348] sm:$0xff]
        %v2376 = vld [vmem:[%s7 + $0x350] sm:$0xff]
        %v2377 = vld [vmem:[%s7 + $0x358] sm:$0xff]
        %v2378 = vld [vmem:[%s7 + $0x360] sm:$0xff]
        %v2379 = vld [vmem:[%s7 + $0x368] sm:$0xff]
        %v2380 = vld [vmem:[%s7 + $0x370] sm:$0xff]
        %v2381 = vld [vmem:[%s7 + $0x378] sm:$0xff]
        %v2382 = vld [vmem:[%s7 + $0x380] sm:$0xff]
        %v2383 = vld [vmem:[%s7 + $0x388] sm:$0xff]
        %v2384 = vld [vmem:[%s7 + $0x390] sm:$0xff]
        %v2385 = vld [vmem:[%s7 + $0x398] sm:$0xff]
        %v2386 = vld [vmem:[%s7 + $0x3a0] sm:$0xff]
        %v2387 = vld [vmem:[%s7 + $0x3a8] sm:$0xff]
        %v2388 = vld [vmem:[%s7 + $0x3b0] sm:$0xff]
        %v2389 = vld [vmem:[%s7 + $0x3b8] sm:$0xff]
        %v2390 = vld [vmem:[%s7 + $0x3c0] sm:$0xff]
        %v2391 = vld [vmem:[%s7 + $0x3c8] sm:$0xff]
        %v2392 = vld [vmem:[%s7 + $0x3d0] sm:$0xff]
        %v2393 = vld [vmem:[%s7 + $0x3d8] sm:$0xff]
        %v2394 = vld [vmem:[%s7 + $0x3e0] sm:$0xff]
        %v2395 = vld [vmem:[%s7 + $0x3e8] sm:$0xff]
        %v2396 = vld [vmem:[%s7 + $0x3f0] sm:$0xff]
        %v2397 = vld [vmem:[%s7 + $0x3f8] sm:$0xff]
        %v2398 = vld [vmem:[%s7 + $0x400] sm:$0xff]
        %v2399 = vld [vmem:[%s7 + $0x408] sm:$0xff]
        %v2400 = vld [vmem:[%s7 + $0x410] sm:$0xff]
        %v2401 = vld [vmem:[%s7 + $0x418] sm:$0xff]
        %v2402 = vld [vmem:[%s7 + $0x420] sm:$0xff]
        %v2403 = vld [vmem:[%s7 + $0x428] sm:$0xff]
        %v2404 = vld [vmem:[%s7 + $0x430] sm:$0xff]
        %v2405 = vld [vmem:[%s7 + $0x438] sm:$0xff]
        %v2406 = vld [vmem:[%s7 + $0x440] sm:$0xff]
        %v2407 = vld [vmem:[%s7 + $0x448] sm:$0xff]
        %v2408 = vld [vmem:[%s7 + $0x450] sm:$0xff]
        %v2409 = vld [vmem:[%s7 + $0x458] sm:$0xff]
        %v2410 = vld [vmem:[%s7 + $0x460] sm:$0xff]
        %v2411 = vld [vmem:[%s7 + $0x468] sm:$0xff]
        %v2412 = vld [vmem:[%s7 + $0x470] sm:$0xff]
        %v2413 = vld [vmem:[%s7 + $0x478] sm:$0xff]
        %v2414 = vld [vmem:[%s7 + $0x480] sm:$0xff]
        %v2415 = vld [vmem:[%s7 + $0x488] sm:$0xff]
        %v2416 = vld [vmem:[%s7 + $0x490] sm:$0xff]
        %v2417 = vld [vmem:[%s7 + $0x498] sm:$0xff]
        %v2418 = vld [vmem:[%s7 + $0x4a0] sm:$0xff]
        %v2419 = vld [vmem:[%s7 + $0x4a8] sm:$0xff]
        %v2420 = vld [vmem:[%s7 + $0x4b0] sm:$0xff]
        %v2421 = vld [vmem:[%s7 + $0x4b8] sm:$0xff]
        %v2422 = vld [vmem:[%s7 + $0x4c0] sm:$0xff]
        %v2423 = vld [vmem:[%s7 + $0x4c8] sm:$0xff]
        %v2424 = vld [vmem:[%s7 + $0x4d0] sm:$0xff]
        %v2425 = vld [vmem:[%s7 + $0x4d8] sm:$0xff]
        %v2426 = vld [vmem:[%s7 + $0x4e0] sm:$0xff]
        %v2427 = vld [vmem:[%s7 + $0x4e8] sm:$0xff]
        %v2428 = vld [vmem:[%s7 + $0x4f0] sm:$0xff]
        %v2429 = vld [vmem:[%s7 + $0x4f8] sm:$0xff]
        %v2430 = vld [vmem:[%s7 + $0x500] sm:$0xff]
        %v2431 = vld [vmem:[%s7 + $0x508] sm:$0xff]
        %v2432 = vld [vmem:[%s7 + $0x510] sm:$0xff]
        %v2433 = vld [vmem:[%s7 + $0x518] sm:$0xff]
        %v2434 = vld [vmem:[%s7 + $0x520] sm:$0xff]
        %v2435 = vld [vmem:[%s7 + $0x528] sm:$0xff]
        %v2436 = vld [vmem:[%s7 + $0x530] sm:$0xff]
        %v2437 = vld [vmem:[%s7 + $0x538] sm:$0xff]
        %v2438 = vld [vmem:[%s7 + $0x540] sm:$0xff]
        %v2439 = vld [vmem:[%s7 + $0x548] sm:$0xff]
        %v2440 = vld [vmem:[%s7 + $0x550] sm:$0xff]
        %v2441 = vld [vmem:[%s7 + $0x558] sm:$0xff]
        %v2442 = vld [vmem:[%s7 + $0x560] sm:$0xff]
        %v2443 = vld [vmem:[%s7 + $0x568] sm:$0xff]
        %v2444 = vld [vmem:[%s7 + $0x570] sm:$0xff]
        %v2445 = vld [vmem:[%s7 + $0x578] sm:$0xff]
        %v2446 = vld [vmem:[%s7 + $0x580] sm:$0xff]
        %v2447 = vld [vmem:[%s7 + $0x588] sm:$0xff]
        %v2448 = vld [vmem:[%s7 + $0x590] sm:$0xff]
        %v2449 = vld [vmem:[%s7 + $0x598] sm:$0xff]
        %v2450 = vld [vmem:[%s7 + $0x5a0] sm:$0xff]
        %v2451 = vld [vmem:[%s7 + $0x5a8] sm:$0xff]
        %v2452 = vld [vmem:[%s7 + $0x5b0] sm:$0xff]
        %v2453 = vld [vmem:[%s7 + $0x5b8] sm:$0xff]
        %v2454 = vld [vmem:[%s7 + $0x5c0] sm:$0xff]
        %v2455 = vld [vmem:[%s7 + $0x5c8] sm:$0xff]
        %v2456 = vld [vmem:[%s7 + $0x5d0] sm:$0xff]
        %v2457 = vld [vmem:[%s7 + $0x5d8] sm:$0xff]
        %v2458 = vld [vmem:[%s7 + $0x5e0] sm:$0xff]
        %v2459 = vld [vmem:[%s7 + $0x5e8] sm:$0xff]
        %v2460 = vld [vmem:[%s7 + $0x5f0] sm:$0xff]
        %v2461 = vld [vmem:[%s7 + $0x5f8] sm:$0xff]
        %v2462 = vld [vmem:[%s7 + $0x600] sm:$0xff]
        %v2463 = vld [vmem:[%s7 + $0x608] sm:$0xff]
        %v2464 = vld [vmem:[%s7 + $0x610] sm:$0xff]
        %v2465 = vld [vmem:[%s7 + $0x618] sm:$0xff]
        %v2466 = vld [vmem:[%s7 + $0x620] sm:$0xff]
        %v2467 = vld [vmem:[%s7 + $0x628] sm:$0xff]
        %v2468 = vld [vmem:[%s7 + $0x630] sm:$0xff]
        %v2469 = vld [vmem:[%s7 + $0x638] sm:$0xff]
        %v2470 = vld [vmem:[%s7 + $0x640] sm:$0xff]
        %v2471 = vld [vmem:[%s7 + $0x648] sm:$0xff]
        %v2472 = vld [vmem:[%s7 + $0x650] sm:$0xff]
        %v2473 = vld [vmem:[%s7 + $0x658] sm:$0xff]
        %v2474 = vld [vmem:[%s7 + $0x660] sm:$0xff]
        %v2475 = vld [vmem:[%s7 + $0x668] sm:$0xff]
        %v2476 = vld [vmem:[%s7 + $0x670] sm:$0xff]
        %v2477 = vld [vmem:[%s7 + $0x678] sm:$0xff]
        %v2478 = vld [vmem:[%s7 + $0x680] sm:$0xff]
        %v2479 = vld [vmem:[%s7 + $0x688] sm:$0xff]
        %v2480 = vld [vmem:[%s7 + $0x690] sm:$0xff]
        %v2481 = vld [vmem:[%s7 + $0x698] sm:$0xff]
        %v2482 = vld [vmem:[%s7 + $0x6a0] sm:$0xff]
        %v2483 = vld [vmem:[%s7 + $0x6a8] sm:$0xff]
        %v2484 = vld [vmem:[%s7 + $0x6b0] sm:$0xff]
        %v2485 = vld [vmem:[%s7 + $0x6b8] sm:$0xff]
        %v2486 = vld [vmem:[%s7 + $0x6c0] sm:$0xff]
        %v2487 = vld [vmem:[%s7 + $0x6c8] sm:$0xff]
        %v2488 = vld [vmem:[%s7 + $0x6d0] sm:$0xff]
        %v2489 = vld [vmem:[%s7 + $0x6d8] sm:$0xff]
        %v2490 = vld [vmem:[%s7 + $0x6e0] sm:$0xff]
        %v2491 = vld [vmem:[%s7 + $0x6e8] sm:$0xff]
        %v2492 = vld [vmem:[%s7 + $0x6f0] sm:$0xff]
        %v2493 = vld [vmem:[%s7 + $0x6f8] sm:$0xff]
        %v2494 = vld [vmem:[%s7 + $0x700] sm:$0xff]
        %v2495 = vld [vmem:[%s7 + $0x708] sm:$0xff]
        %v2496 = vld [vmem:[%s7 + $0x710] sm:$0xff]
        %v2497 = vld [vmem:[%s7 + $0x718] sm:$0xff]
        %v2498 = vld [vmem:[%s7 + $0x720] sm:$0xff]
        %v2499 = vld [vmem:[%s7 + $0x728] sm:$0xff]
        %v2500 = vld [vmem:[%s7 + $0x730] sm:$0xff]
        %v2501 = vld [vmem:[%s7 + $0x738] sm:$0xff]
        %v2502 = vld [vmem:[%s7 + $0x740] sm:$0xff]
        %v2503 = vld [vmem:[%s7 + $0x748] sm:$0xff]
        %v2504 = vld [vmem:[%s7 + $0x750] sm:$0xff]
        %v2505 = vld [vmem:[%s7 + $0x758] sm:$0xff]
        %v2506 = vld [vmem:[%s7 + $0x760] sm:$0xff]
        %v2507 = vld [vmem:[%s7 + $0x768] sm:$0xff]
        %v2508 = vld [vmem:[%s7 + $0x770] sm:$0xff]
        %v2509 = vld [vmem:[%s7 + $0x778] sm:$0xff]
        %v2510 = vld [vmem:[%s7 + $0x780] sm:$0xff]
        %v2511 = vld [vmem:[%s7 + $0x788] sm:$0xff]
        %v2512 = vld [vmem:[%s7 + $0x790] sm:$0xff]
        %v2513 = vld [vmem:[%s7 + $0x798] sm:$0xff]
        %v2514 = vld [vmem:[%s7 + $0x7a0] sm:$0xff]
        %v2515 = vld [vmem:[%s7 + $0x7a8] sm:$0xff]
        %v2516 = vld [vmem:[%s7 + $0x7b0] sm:$0xff]
        %v2517 = vld [vmem:[%s7 + $0x7b8] sm:$0xff]
        %v2518 = vld [vmem:[%s7 + $0x7c0] sm:$0xff]
        %v2519 = vld [vmem:[%s7 + $0x7c8] sm:$0xff]
        %v2520 = vld [vmem:[%s7 + $0x7d0] sm:$0xff]
        %v2521 = vld [vmem:[%s7 + $0x7d8] sm:$0xff]
        %v2522 = vld [vmem:[%s7 + $0x7e0] sm:$0xff]
        %v2523 = vld [vmem:[%s7 + $0x7e8] sm:$0xff]
        %v2524 = vld [vmem:[%s7 + $0x7f0] sm:$0xff]
        %v2525 = vld [vmem:[%s7 + $0x7f8] sm:$0xff]
        %v2526 = vld [vmem:[%s7 + $0x800] sm:$0xff]
        %v2527 = vld [vmem:[%s7 + $0x808] sm:$0xff]
        %v2528 = vld [vmem:[%s7 + $0x810] sm:$0xff]
        %v2529 = vld [vmem:[%s7 + $0x818] sm:$0xff]
        %v2530 = vld [vmem:[%s7 + $0x820] sm:$0xff]
        %v2531 = vld [vmem:[%s7 + $0x828] sm:$0xff]
        %v2532 = vld [vmem:[%s7 + $0x830] sm:$0xff]
        %v2533 = vld [vmem:[%s7 + $0x838] sm:$0xff]
        %v2534 = vld [vmem:[%s7 + $0x840] sm:$0xff]
        %v2535 = vld [vmem:[%s7 + $0x848] sm:$0xff]
        %v2536 = vld [vmem:[%s7 + $0x850] sm:$0xff]
        %v2537 = vld [vmem:[%s7 + $0x858] sm:$0xff]
        %v2538 = vld [vmem:[%s7 + $0x860] sm:$0xff]
        %v2539 = vld [vmem:[%s7 + $0x868] sm:$0xff]
        %v2540 = vld [vmem:[%s7 + $0x870] sm:$0xff]
        %v2541 = vld [vmem:[%s7 + $0x878] sm:$0xff]
        %v2542 = vld [vmem:[%s8] sm:$0x3]
        %v2544 = vlaneseq
        %v2545 = vshrl.u32 %v2544, 7
        %v2546 = vsub.s32 0, %v2545
        %v2547 = vrot.slane %v2542, %v2546
        %v2548 = vlaneseq
        %v2549 = vshrl.u32 %v2548, 7
        %v2550 = vsub.s32 1, %v2549
        %v2551 = vrot.slane %v2542, %v2550
        %v2826 = vunpack.c.l.b16 %v2270
        %v2827 = vunpack.c.h.b16 %v2270
        %v2828 = vunpack.c.l.b16 %v2271
        %v2829 = vunpack.c.h.b16 %v2271
        %v2830 = vunpack.c.l.b16 %v2272
        %v2831 = vunpack.c.h.b16 %v2272
        %v2832 = vunpack.c.l.b16 %v2273
        %v2833 = vunpack.c.h.b16 %v2273
        %v2834 = vunpack.c.l.b16 %v2274
        %v2835 = vunpack.c.h.b16 %v2274
        %v2836 = vunpack.c.l.b16 %v2275
        %v2837 = vunpack.c.h.b16 %v2275
        %v2838 = vunpack.c.l.b16 %v2276
        %v2839 = vunpack.c.h.b16 %v2276
        %v2840 = vunpack.c.l.b16 %v2277
        %v2841 = vunpack.c.h.b16 %v2277
        %v2842 = vunpack.c.l.b16 %v2278
        %v2843 = vunpack.c.h.b16 %v2278
        %v2844 = vunpack.c.l.b16 %v2279
        %v2845 = vunpack.c.h.b16 %v2279
        %v2846 = vunpack.c.l.b16 %v2280
        %v2847 = vunpack.c.h.b16 %v2280
        %v2848 = vunpack.c.l.b16 %v2281
        %v2849 = vunpack.c.h.b16 %v2281
        %v2850 = vunpack.c.l.b16 %v2282
        %v2851 = vunpack.c.h.b16 %v2282
        %v2852 = vunpack.c.l.b16 %v2283
        %v2853 = vunpack.c.h.b16 %v2283
        %v2854 = vunpack.c.l.b16 %v2284
        %v2855 = vunpack.c.h.b16 %v2284
        %v2856 = vunpack.c.l.b16 %v2285
        %v2857 = vunpack.c.h.b16 %v2285
        %v2858 = vunpack.c.l.b16 %v2286
        %v2859 = vunpack.c.h.b16 %v2286
        %v2860 = vunpack.c.l.b16 %v2287
        %v2861 = vunpack.c.h.b16 %v2287
        %v2862 = vunpack.c.l.b16 %v2288
        %v2863 = vunpack.c.h.b16 %v2288
        %v2864 = vunpack.c.l.b16 %v2289
        %v2865 = vunpack.c.h.b16 %v2289
        %v2866 = vunpack.c.l.b16 %v2290
        %v2867 = vunpack.c.h.b16 %v2290
        %v2868 = vunpack.c.l.b16 %v2291
        %v2869 = vunpack.c.h.b16 %v2291
        %v2870 = vunpack.c.l.b16 %v2292
        %v2871 = vunpack.c.h.b16 %v2292
        %v2872 = vunpack.c.l.b16 %v2293
        %v2873 = vunpack.c.h.b16 %v2293
        %v2874 = vunpack.c.l.b16 %v2294
        %v2875 = vunpack.c.h.b16 %v2294
        %v2876 = vunpack.c.l.b16 %v2295
        %v2877 = vunpack.c.h.b16 %v2295
        %v2878 = vunpack.c.l.b16 %v2296
        %v2879 = vunpack.c.h.b16 %v2296
        %v2880 = vunpack.c.l.b16 %v2297
        %v2881 = vunpack.c.h.b16 %v2297
        %v2882 = vunpack.c.l.b16 %v2298
        %v2883 = vunpack.c.h.b16 %v2298
        %v2884 = vunpack.c.l.b16 %v2299
        %v2885 = vunpack.c.h.b16 %v2299
        %v2886 = vunpack.c.l.b16 %v2300
        %v2887 = vunpack.c.h.b16 %v2300
        %v2888 = vunpack.c.l.b16 %v2301
        %v2889 = vunpack.c.h.b16 %v2301
        %v2890 = vunpack.c.l.b16 %v2302
        %v2891 = vunpack.c.h.b16 %v2302
        %v2892 = vunpack.c.l.b16 %v2303
        %v2893 = vunpack.c.h.b16 %v2303
        %v2894 = vunpack.c.l.b16 %v2304
        %v2895 = vunpack.c.h.b16 %v2304
        %v2896 = vunpack.c.l.b16 %v2305
        %v2897 = vunpack.c.h.b16 %v2305
        %v2898 = vunpack.c.l.b16 %v2306
        %v2899 = vunpack.c.h.b16 %v2306
        %v2900 = vunpack.c.l.b16 %v2307
        %v2901 = vunpack.c.h.b16 %v2307
        %v2902 = vunpack.c.l.b16 %v2308
        %v2903 = vunpack.c.h.b16 %v2308
        %v2904 = vunpack.c.l.b16 %v2309
        %v2905 = vunpack.c.h.b16 %v2309
        %v2906 = vunpack.c.l.b16 %v2310
        %v2907 = vunpack.c.h.b16 %v2310
        %v2908 = vunpack.c.l.b16 %v2311
        %v2909 = vunpack.c.h.b16 %v2311
        %v2910 = vunpack.c.l.b16 %v2312
        %v2911 = vunpack.c.h.b16 %v2312
        %v2912 = vunpack.c.l.b16 %v2313
        %v2913 = vunpack.c.h.b16 %v2313
        %v2914 = vunpack.c.l.b16 %v2314
        %v2915 = vunpack.c.h.b16 %v2314
        %v2916 = vunpack.c.l.b16 %v2315
        %v2917 = vunpack.c.h.b16 %v2315
        %v2918 = vunpack.c.l.b16 %v2316
        %v2919 = vunpack.c.h.b16 %v2316
        %v2920 = vunpack.c.l.b16 %v2317
        %v2921 = vunpack.c.h.b16 %v2317
        %v2922 = vunpack.c.l.b16 %v2318
        %v2923 = vunpack.c.h.b16 %v2318
        %v2924 = vunpack.c.l.b16 %v2319
        %v2925 = vunpack.c.h.b16 %v2319
        %v2926 = vunpack.c.l.b16 %v2320
        %v2927 = vunpack.c.h.b16 %v2320
        %v2928 = vunpack.c.l.b16 %v2321
        %v2929 = vunpack.c.h.b16 %v2321
        %v2930 = vunpack.c.l.b16 %v2322
        %v2931 = vunpack.c.h.b16 %v2322
        %v2932 = vunpack.c.l.b16 %v2323
        %v2933 = vunpack.c.h.b16 %v2323
        %v2934 = vunpack.c.l.b16 %v2324
        %v2935 = vunpack.c.h.b16 %v2324
        %v2936 = vunpack.c.l.b16 %v2325
        %v2937 = vunpack.c.h.b16 %v2325
        %v2938 = vunpack.c.l.b16 %v2326
        %v2939 = vunpack.c.h.b16 %v2326
        %v2940 = vunpack.c.l.b16 %v2327
        %v2941 = vunpack.c.h.b16 %v2327
        %v2942 = vunpack.c.l.b16 %v2328
        %v2943 = vunpack.c.h.b16 %v2328
        %v2944 = vunpack.c.l.b16 %v2329
        %v2945 = vunpack.c.h.b16 %v2329
        %v2946 = vunpack.c.l.b16 %v2330
        %v2947 = vunpack.c.h.b16 %v2330
        %v2948 = vunpack.c.l.b16 %v2331
        %v2949 = vunpack.c.h.b16 %v2331
        %v2950 = vunpack.c.l.b16 %v2332
        %v2951 = vunpack.c.h.b16 %v2332
        %v2952 = vunpack.c.l.b16 %v2333
        %v2953 = vunpack.c.h.b16 %v2333
        %v2954 = vunpack.c.l.b16 %v2334
        %v2955 = vunpack.c.h.b16 %v2334
        %v2956 = vunpack.c.l.b16 %v2335
        %v2957 = vunpack.c.h.b16 %v2335
        %v2958 = vunpack.c.l.b16 %v2336
        %v2959 = vunpack.c.h.b16 %v2336
        %v2960 = vunpack.c.l.b16 %v2337
        %v2961 = vunpack.c.h.b16 %v2337
        %v2962 = vunpack.c.l.b16 %v2338
        %v2963 = vunpack.c.h.b16 %v2338
        %v2964 = vunpack.c.l.b16 %v2339
        %v2965 = vunpack.c.h.b16 %v2339
        %v2966 = vunpack.c.l.b16 %v2340
        %v2967 = vunpack.c.h.b16 %v2340
        %v2968 = vunpack.c.l.b16 %v2341
        %v2969 = vunpack.c.h.b16 %v2341
        %v2970 = vunpack.c.l.b16 %v2342
        %v2971 = vunpack.c.h.b16 %v2342
        %v2972 = vunpack.c.l.b16 %v2343
        %v2973 = vunpack.c.h.b16 %v2343
        %v2974 = vunpack.c.l.b16 %v2344
        %v2975 = vunpack.c.h.b16 %v2344
        %v2976 = vunpack.c.l.b16 %v2345
        %v2977 = vunpack.c.h.b16 %v2345
        %v2978 = vunpack.c.l.b16 %v2346
        %v2979 = vunpack.c.h.b16 %v2346
        %v2980 = vunpack.c.l.b16 %v2347
        %v2981 = vunpack.c.h.b16 %v2347
        %v2982 = vunpack.c.l.b16 %v2348
        %v2983 = vunpack.c.h.b16 %v2348
        %v2984 = vunpack.c.l.b16 %v2349
        %v2985 = vunpack.c.h.b16 %v2349
        %v2986 = vunpack.c.l.b16 %v2350
        %v2987 = vunpack.c.h.b16 %v2350
        %v2988 = vunpack.c.l.b16 %v2351
        %v2989 = vunpack.c.h.b16 %v2351
        %v2990 = vunpack.c.l.b16 %v2352
        %v2991 = vunpack.c.h.b16 %v2352
        %v2992 = vunpack.c.l.b16 %v2353
        %v2993 = vunpack.c.h.b16 %v2353
        %v2994 = vunpack.c.l.b16 %v2354
        %v2995 = vunpack.c.h.b16 %v2354
        %v2996 = vunpack.c.l.b16 %v2355
        %v2997 = vunpack.c.h.b16 %v2355
        %v2998 = vunpack.c.l.b16 %v2356
        %v2999 = vunpack.c.h.b16 %v2356
        %v3000 = vunpack.c.l.b16 %v2357
        %v3001 = vunpack.c.h.b16 %v2357
        %v3002 = vunpack.c.l.b16 %v2358
        %v3003 = vunpack.c.h.b16 %v2358
        %v3004 = vunpack.c.l.b16 %v2359
        %v3005 = vunpack.c.h.b16 %v2359
        %v3006 = vunpack.c.l.b16 %v2360
        %v3007 = vunpack.c.h.b16 %v2360
        %v3008 = vunpack.c.l.b16 %v2361
        %v3009 = vunpack.c.h.b16 %v2361
        %v3010 = vunpack.c.l.b16 %v2362
        %v3011 = vunpack.c.h.b16 %v2362
        %v3012 = vunpack.c.l.b16 %v2363
        %v3013 = vunpack.c.h.b16 %v2363
        %v3014 = vunpack.c.l.b16 %v2364
        %v3015 = vunpack.c.h.b16 %v2364
        %v3016 = vunpack.c.l.b16 %v2365
        %v3017 = vunpack.c.h.b16 %v2365
        %v3018 = vunpack.c.l.b16 %v2366
        %v3019 = vunpack.c.h.b16 %v2366
        %v3020 = vunpack.c.l.b16 %v2367
        %v3021 = vunpack.c.h.b16 %v2367
        %v3022 = vunpack.c.l.b16 %v2368
        %v3023 = vunpack.c.h.b16 %v2368
        %v3024 = vunpack.c.l.b16 %v2369
        %v3025 = vunpack.c.h.b16 %v2369
        %v3026 = vunpack.c.l.b16 %v2370
        %v3027 = vunpack.c.h.b16 %v2370
        %v3028 = vunpack.c.l.b16 %v2371
        %v3029 = vunpack.c.h.b16 %v2371
        %v3030 = vunpack.c.l.b16 %v2372
        %v3031 = vunpack.c.h.b16 %v2372
        %v3032 = vunpack.c.l.b16 %v2373
        %v3033 = vunpack.c.h.b16 %v2373
        %v3034 = vunpack.c.l.b16 %v2374
        %v3035 = vunpack.c.h.b16 %v2374
        %v3036 = vunpack.c.l.b16 %v2375
        %v3037 = vunpack.c.h.b16 %v2375
        %v3038 = vunpack.c.l.b16 %v2376
        %v3039 = vunpack.c.h.b16 %v2376
        %v3040 = vunpack.c.l.b16 %v2377
        %v3041 = vunpack.c.h.b16 %v2377
        %v3042 = vunpack.c.l.b16 %v2378
        %v3043 = vunpack.c.h.b16 %v2378
        %v3044 = vunpack.c.l.b16 %v2379
        %v3045 = vunpack.c.h.b16 %v2379
        %v3046 = vunpack.c.l.b16 %v2380
        %v3047 = vunpack.c.h.b16 %v2380
        %v3048 = vunpack.c.l.b16 %v2381
        %v3049 = vunpack.c.h.b16 %v2381
        %v3050 = vunpack.c.l.b16 %v2382
        %v3051 = vunpack.c.h.b16 %v2382
        %v3052 = vunpack.c.l.b16 %v2383
        %v3053 = vunpack.c.h.b16 %v2383
        %v3054 = vunpack.c.l.b16 %v2384
        %v3055 = vunpack.c.h.b16 %v2384
        %v3056 = vunpack.c.l.b16 %v2385
        %v3057 = vunpack.c.h.b16 %v2385
        %v3058 = vunpack.c.l.b16 %v2386
        %v3059 = vunpack.c.h.b16 %v2386
        %v3060 = vunpack.c.l.b16 %v2387
        %v3061 = vunpack.c.h.b16 %v2387
        %v3062 = vunpack.c.l.b16 %v2388
        %v3063 = vunpack.c.h.b16 %v2388
        %v3064 = vunpack.c.l.b16 %v2389
        %v3065 = vunpack.c.h.b16 %v2389
        %v3066 = vunpack.c.l.b16 %v2390
        %v3067 = vunpack.c.h.b16 %v2390
        %v3068 = vunpack.c.l.b16 %v2391
        %v3069 = vunpack.c.h.b16 %v2391
        %v3070 = vunpack.c.l.b16 %v2392
        %v3071 = vunpack.c.h.b16 %v2392
        %v3072 = vunpack.c.l.b16 %v2393
        %v3073 = vunpack.c.h.b16 %v2393
        %v3074 = vunpack.c.l.b16 %v2394
        %v3075 = vunpack.c.h.b16 %v2394
        %v3076 = vunpack.c.l.b16 %v2395
        %v3077 = vunpack.c.h.b16 %v2395
        %v3078 = vunpack.c.l.b16 %v2396
        %v3079 = vunpack.c.h.b16 %v2396
        %v3080 = vunpack.c.l.b16 %v2397
        %v3081 = vunpack.c.h.b16 %v2397
        %v3082 = vunpack.c.l.b16 %v2398
        %v3083 = vunpack.c.h.b16 %v2398
        %v3084 = vunpack.c.l.b16 %v2399
        %v3085 = vunpack.c.h.b16 %v2399
        %v3086 = vunpack.c.l.b16 %v2400
        %v3087 = vunpack.c.h.b16 %v2400
        %v3088 = vunpack.c.l.b16 %v2401
        %v3089 = vunpack.c.h.b16 %v2401
        %v3090 = vunpack.c.l.b16 %v2402
        %v3091 = vunpack.c.h.b16 %v2402
        %v3092 = vunpack.c.l.b16 %v2403
        %v3093 = vunpack.c.h.b16 %v2403
        %v3094 = vunpack.c.l.b16 %v2404
        %v3095 = vunpack.c.h.b16 %v2404
        %v3096 = vunpack.c.l.b16 %v2405
        %v3097 = vunpack.c.h.b16 %v2405
        %v3098 = vunpack.c.l.b16 %v2406
        %v3099 = vunpack.c.h.b16 %v2406
        %v3100 = vunpack.c.l.b16 %v2407
        %v3101 = vunpack.c.h.b16 %v2407
        %v3102 = vunpack.c.l.b16 %v2408
        %v3103 = vunpack.c.h.b16 %v2408
        %v3104 = vunpack.c.l.b16 %v2409
        %v3105 = vunpack.c.h.b16 %v2409
        %v3106 = vunpack.c.l.b16 %v2410
        %v3107 = vunpack.c.h.b16 %v2410
        %v3108 = vunpack.c.l.b16 %v2411
        %v3109 = vunpack.c.h.b16 %v2411
        %v3110 = vunpack.c.l.b16 %v2412
        %v3111 = vunpack.c.h.b16 %v2412
        %v3112 = vunpack.c.l.b16 %v2413
        %v3113 = vunpack.c.h.b16 %v2413
        %v3114 = vunpack.c.l.b16 %v2414
        %v3115 = vunpack.c.h.b16 %v2414
        %v3116 = vunpack.c.l.b16 %v2415
        %v3117 = vunpack.c.h.b16 %v2415
        %v3118 = vunpack.c.l.b16 %v2416
        %v3119 = vunpack.c.h.b16 %v2416
        %v3120 = vunpack.c.l.b16 %v2417
        %v3121 = vunpack.c.h.b16 %v2417
        %v3122 = vunpack.c.l.b16 %v2418
        %v3123 = vunpack.c.h.b16 %v2418
        %v3124 = vunpack.c.l.b16 %v2419
        %v3125 = vunpack.c.h.b16 %v2419
        %v3126 = vunpack.c.l.b16 %v2420
        %v3127 = vunpack.c.h.b16 %v2420
        %v3128 = vunpack.c.l.b16 %v2421
        %v3129 = vunpack.c.h.b16 %v2421
        %v3130 = vunpack.c.l.b16 %v2422
        %v3131 = vunpack.c.h.b16 %v2422
        %v3132 = vunpack.c.l.b16 %v2423
        %v3133 = vunpack.c.h.b16 %v2423
        %v3134 = vunpack.c.l.b16 %v2424
        %v3135 = vunpack.c.h.b16 %v2424
        %v3136 = vunpack.c.l.b16 %v2425
        %v3137 = vunpack.c.h.b16 %v2425
        %v3138 = vunpack.c.l.b16 %v2426
        %v3139 = vunpack.c.h.b16 %v2426
        %v3140 = vunpack.c.l.b16 %v2427
        %v3141 = vunpack.c.h.b16 %v2427
        %v3142 = vunpack.c.l.b16 %v2428
        %v3143 = vunpack.c.h.b16 %v2428
        %v3144 = vunpack.c.l.b16 %v2429
        %v3145 = vunpack.c.h.b16 %v2429
        %v3146 = vunpack.c.l.b16 %v2430
        %v3147 = vunpack.c.h.b16 %v2430
        %v3148 = vunpack.c.l.b16 %v2431
        %v3149 = vunpack.c.h.b16 %v2431
        %v3150 = vunpack.c.l.b16 %v2432
        %v3151 = vunpack.c.h.b16 %v2432
        %v3152 = vunpack.c.l.b16 %v2433
        %v3153 = vunpack.c.h.b16 %v2433
        %v3154 = vunpack.c.l.b16 %v2434
        %v3155 = vunpack.c.h.b16 %v2434
        %v3156 = vunpack.c.l.b16 %v2435
        %v3157 = vunpack.c.h.b16 %v2435
        %v3158 = vunpack.c.l.b16 %v2436
        %v3159 = vunpack.c.h.b16 %v2436
        %v3160 = vunpack.c.l.b16 %v2437
        %v3161 = vunpack.c.h.b16 %v2437
        %v3162 = vunpack.c.l.b16 %v2438
        %v3163 = vunpack.c.h.b16 %v2438
        %v3164 = vunpack.c.l.b16 %v2439
        %v3165 = vunpack.c.h.b16 %v2439
        %v3166 = vunpack.c.l.b16 %v2440
        %v3167 = vunpack.c.h.b16 %v2440
        %v3168 = vunpack.c.l.b16 %v2441
        %v3169 = vunpack.c.h.b16 %v2441
        %v3170 = vunpack.c.l.b16 %v2442
        %v3171 = vunpack.c.h.b16 %v2442
        %v3172 = vunpack.c.l.b16 %v2443
        %v3173 = vunpack.c.h.b16 %v2443
        %v3174 = vunpack.c.l.b16 %v2444
        %v3175 = vunpack.c.h.b16 %v2444
        %v3176 = vunpack.c.l.b16 %v2445
        %v3177 = vunpack.c.h.b16 %v2445
        %v3178 = vunpack.c.l.b16 %v2446
        %v3179 = vunpack.c.h.b16 %v2446
        %v3180 = vunpack.c.l.b16 %v2447
        %v3181 = vunpack.c.h.b16 %v2447
        %v3182 = vunpack.c.l.b16 %v2448
        %v3183 = vunpack.c.h.b16 %v2448
        %v3184 = vunpack.c.l.b16 %v2449
        %v3185 = vunpack.c.h.b16 %v2449
        %v3186 = vunpack.c.l.b16 %v2450
        %v3187 = vunpack.c.h.b16 %v2450
        %v3188 = vunpack.c.l.b16 %v2451
        %v3189 = vunpack.c.h.b16 %v2451
        %v3190 = vunpack.c.l.b16 %v2452
        %v3191 = vunpack.c.h.b16 %v2452
        %v3192 = vunpack.c.l.b16 %v2453
        %v3193 = vunpack.c.h.b16 %v2453
        %v3194 = vunpack.c.l.b16 %v2454
        %v3195 = vunpack.c.h.b16 %v2454
        %v3196 = vunpack.c.l.b16 %v2455
        %v3197 = vunpack.c.h.b16 %v2455
        %v3198 = vunpack.c.l.b16 %v2456
        %v3199 = vunpack.c.h.b16 %v2456
        %v3200 = vunpack.c.l.b16 %v2457
        %v3201 = vunpack.c.h.b16 %v2457
        %v3202 = vunpack.c.l.b16 %v2458
        %v3203 = vunpack.c.h.b16 %v2458
        %v3204 = vunpack.c.l.b16 %v2459
        %v3205 = vunpack.c.h.b16 %v2459
        %v3206 = vunpack.c.l.b16 %v2460
        %v3207 = vunpack.c.h.b16 %v2460
        %v3208 = vunpack.c.l.b16 %v2461
        %v3209 = vunpack.c.h.b16 %v2461
        %v3210 = vunpack.c.l.b16 %v2462
        %v3211 = vunpack.c.h.b16 %v2462
        %v3212 = vunpack.c.l.b16 %v2463
        %v3213 = vunpack.c.h.b16 %v2463
        %v3214 = vunpack.c.l.b16 %v2464
        %v3215 = vunpack.c.h.b16 %v2464
        %v3216 = vunpack.c.l.b16 %v2465
        %v3217 = vunpack.c.h.b16 %v2465
        %v3218 = vunpack.c.l.b16 %v2466
        %v3219 = vunpack.c.h.b16 %v2466
        %v3220 = vunpack.c.l.b16 %v2467
        %v3221 = vunpack.c.h.b16 %v2467
        %v3222 = vunpack.c.l.b16 %v2468
        %v3223 = vunpack.c.h.b16 %v2468
        %v3224 = vunpack.c.l.b16 %v2469
        %v3225 = vunpack.c.h.b16 %v2469
        %v3226 = vunpack.c.l.b16 %v2470
        %v3227 = vunpack.c.h.b16 %v2470
        %v3228 = vunpack.c.l.b16 %v2471
        %v3229 = vunpack.c.h.b16 %v2471
        %v3230 = vunpack.c.l.b16 %v2472
        %v3231 = vunpack.c.h.b16 %v2472
        %v3232 = vunpack.c.l.b16 %v2473
        %v3233 = vunpack.c.h.b16 %v2473
        %v3234 = vunpack.c.l.b16 %v2474
        %v3235 = vunpack.c.h.b16 %v2474
        %v3236 = vunpack.c.l.b16 %v2475
        %v3237 = vunpack.c.h.b16 %v2475
        %v3238 = vunpack.c.l.b16 %v2476
        %v3239 = vunpack.c.h.b16 %v2476
        %v3240 = vunpack.c.l.b16 %v2477
        %v3241 = vunpack.c.h.b16 %v2477
        %v3242 = vunpack.c.l.b16 %v2478
        %v3243 = vunpack.c.h.b16 %v2478
        %v3244 = vunpack.c.l.b16 %v2479
        %v3245 = vunpack.c.h.b16 %v2479
        %v3246 = vunpack.c.l.b16 %v2480
        %v3247 = vunpack.c.h.b16 %v2480
        %v3248 = vunpack.c.l.b16 %v2481
        %v3249 = vunpack.c.h.b16 %v2481
        %v3250 = vunpack.c.l.b16 %v2482
        %v3251 = vunpack.c.h.b16 %v2482
        %v3252 = vunpack.c.l.b16 %v2483
        %v3253 = vunpack.c.h.b16 %v2483
        %v3254 = vunpack.c.l.b16 %v2484
        %v3255 = vunpack.c.h.b16 %v2484
        %v3256 = vunpack.c.l.b16 %v2485
        %v3257 = vunpack.c.h.b16 %v2485
        %v3258 = vunpack.c.l.b16 %v2486
        %v3259 = vunpack.c.h.b16 %v2486
        %v3260 = vunpack.c.l.b16 %v2487
        %v3261 = vunpack.c.h.b16 %v2487
        %v3262 = vunpack.c.l.b16 %v2488
        %v3263 = vunpack.c.h.b16 %v2488
        %v3264 = vunpack.c.l.b16 %v2489
        %v3265 = vunpack.c.h.b16 %v2489
        %v3266 = vunpack.c.l.b16 %v2490
        %v3267 = vunpack.c.h.b16 %v2490
        %v3268 = vunpack.c.l.b16 %v2491
        %v3269 = vunpack.c.h.b16 %v2491
        %v3270 = vunpack.c.l.b16 %v2492
        %v3271 = vunpack.c.h.b16 %v2492
        %v3272 = vunpack.c.l.b16 %v2493
        %v3273 = vunpack.c.h.b16 %v2493
        %v3274 = vunpack.c.l.b16 %v2494
        %v3275 = vunpack.c.h.b16 %v2494
        %v3276 = vunpack.c.l.b16 %v2495
        %v3277 = vunpack.c.h.b16 %v2495
        %v3278 = vunpack.c.l.b16 %v2496
        %v3279 = vunpack.c.h.b16 %v2496
        %v3280 = vunpack.c.l.b16 %v2497
        %v3281 = vunpack.c.h.b16 %v2497
        %v3282 = vunpack.c.l.b16 %v2498
        %v3283 = vunpack.c.h.b16 %v2498
        %v3284 = vunpack.c.l.b16 %v2499
        %v3285 = vunpack.c.h.b16 %v2499
        %v3286 = vunpack.c.l.b16 %v2500
        %v3287 = vunpack.c.h.b16 %v2500
        %v3288 = vunpack.c.l.b16 %v2501
        %v3289 = vunpack.c.h.b16 %v2501
        %v3290 = vunpack.c.l.b16 %v2502
        %v3291 = vunpack.c.h.b16 %v2502
        %v3292 = vunpack.c.l.b16 %v2503
        %v3293 = vunpack.c.h.b16 %v2503
        %v3294 = vunpack.c.l.b16 %v2504
        %v3295 = vunpack.c.h.b16 %v2504
        %v3296 = vunpack.c.l.b16 %v2505
        %v3297 = vunpack.c.h.b16 %v2505
        %v3298 = vunpack.c.l.b16 %v2506
        %v3299 = vunpack.c.h.b16 %v2506
        %v3300 = vunpack.c.l.b16 %v2507
        %v3301 = vunpack.c.h.b16 %v2507
        %v3302 = vunpack.c.l.b16 %v2508
        %v3303 = vunpack.c.h.b16 %v2508
        %v3304 = vunpack.c.l.b16 %v2509
        %v3305 = vunpack.c.h.b16 %v2509
        %v3306 = vunpack.c.l.b16 %v2510
        %v3307 = vunpack.c.h.b16 %v2510
        %v3308 = vunpack.c.l.b16 %v2511
        %v3309 = vunpack.c.h.b16 %v2511
        %v3310 = vunpack.c.l.b16 %v2512
        %v3311 = vunpack.c.h.b16 %v2512
        %v3312 = vunpack.c.l.b16 %v2513
        %v3313 = vunpack.c.h.b16 %v2513
        %v3314 = vunpack.c.l.b16 %v2514
        %v3315 = vunpack.c.h.b16 %v2514
        %v3316 = vunpack.c.l.b16 %v2515
        %v3317 = vunpack.c.h.b16 %v2515
        %v3318 = vunpack.c.l.b16 %v2516
        %v3319 = vunpack.c.h.b16 %v2516
        %v3320 = vunpack.c.l.b16 %v2517
        %v3321 = vunpack.c.h.b16 %v2517
        %v3322 = vunpack.c.l.b16 %v2518
        %v3323 = vunpack.c.h.b16 %v2518
        %v3324 = vunpack.c.l.b16 %v2519
        %v3325 = vunpack.c.h.b16 %v2519
        %v3326 = vunpack.c.l.b16 %v2520
        %v3327 = vunpack.c.h.b16 %v2520
        %v3328 = vunpack.c.l.b16 %v2521
        %v3329 = vunpack.c.h.b16 %v2521
        %v3330 = vunpack.c.l.b16 %v2522
        %v3331 = vunpack.c.h.b16 %v2522
        %v3332 = vunpack.c.l.b16 %v2523
        %v3333 = vunpack.c.h.b16 %v2523
        %v3334 = vunpack.c.l.b16 %v2524
        %v3335 = vunpack.c.h.b16 %v2524
        %v3336 = vunpack.c.l.b16 %v2525
        %v3337 = vunpack.c.h.b16 %v2525
        %v3338 = vunpack.c.l.b16 %v2526
        %v3339 = vunpack.c.h.b16 %v2526
        %v3340 = vunpack.c.l.b16 %v2527
        %v3341 = vunpack.c.h.b16 %v2527
        %v3342 = vunpack.c.l.b16 %v2528
        %v3343 = vunpack.c.h.b16 %v2528
        %v3344 = vunpack.c.l.b16 %v2529
        %v3345 = vunpack.c.h.b16 %v2529
        %v3346 = vunpack.c.l.b16 %v2530
        %v3347 = vunpack.c.h.b16 %v2530
        %v3348 = vunpack.c.l.b16 %v2531
        %v3349 = vunpack.c.h.b16 %v2531
        %v3350 = vunpack.c.l.b16 %v2532
        %v3351 = vunpack.c.h.b16 %v2532
        %v3352 = vunpack.c.l.b16 %v2533
        %v3353 = vunpack.c.h.b16 %v2533
        %v3354 = vunpack.c.l.b16 %v2534
        %v3355 = vunpack.c.h.b16 %v2534
        %v3356 = vunpack.c.l.b16 %v2535
        %v3357 = vunpack.c.h.b16 %v2535
        %v3358 = vunpack.c.l.b16 %v2536
        %v3359 = vunpack.c.h.b16 %v2536
        %v3360 = vunpack.c.l.b16 %v2537
        %v3361 = vunpack.c.h.b16 %v2537
        %v3362 = vunpack.c.l.b16 %v2538
        %v3363 = vunpack.c.h.b16 %v2538
        %v3364 = vunpack.c.l.b16 %v2539
        %v3365 = vunpack.c.h.b16 %v2539
        %v3366 = vunpack.c.l.b16 %v2540
        %v3367 = vunpack.c.h.b16 %v2540
        %v3368 = vunpack.c.l.b16 %v2541
        %v3369 = vunpack.c.h.b16 %v2541
        %v3370 = vpack.c.b16 %v2828, %v2826
        %v3371 = vpack.c.b16 %v2829, %v2827
        %v3372 = vpack.c.b16 %v2832, %v2830
        %v3373 = vpack.c.b16 %v2833, %v2831
        %v3374 = vpack.c.b16 %v2836, %v2834
        %v3375 = vpack.c.b16 %v2837, %v2835
        %v3376 = vpack.c.b16 %v2840, %v2838
        %v3377 = vpack.c.b16 %v2841, %v2839
        %v3378 = vpack.c.b16 %v2844, %v2842
        %v3379 = vpack.c.b16 %v2845, %v2843
        %v3380 = vpack.c.b16 %v2848, %v2846
        %v3381 = vpack.c.b16 %v2849, %v2847
        %v3382 = vpack.c.b16 %v2852, %v2850
        %v3383 = vpack.c.b16 %v2853, %v2851
        %v3384 = vpack.c.b16 %v2856, %v2854
        %v3385 = vpack.c.b16 %v2857, %v2855
        %v3386 = vpack.c.b16 %v2860, %v2858
        %v3387 = vpack.c.b16 %v2861, %v2859
        %v3388 = vpack.c.b16 %v2864, %v2862
        %v3389 = vpack.c.b16 %v2865, %v2863
        %v3390 = vpack.c.b16 %v2868, %v2866
        %v3391 = vpack.c.b16 %v2869, %v2867
        %v3392 = vpack.c.b16 %v2872, %v2870
        %v3393 = vpack.c.b16 %v2873, %v2871
        %v3394 = vpack.c.b16 %v2876, %v2874
        %v3395 = vpack.c.b16 %v2877, %v2875
        %v3396 = vpack.c.b16 %v2880, %v2878
        %v3397 = vpack.c.b16 %v2881, %v2879
        %v3398 = vpack.c.b16 %v2884, %v2882
        %v3399 = vpack.c.b16 %v2885, %v2883
        %v3400 = vpack.c.b16 %v2888, %v2886
        %v3401 = vpack.c.b16 %v2889, %v2887
        %v3402 = vpack.c.b16 %v2892, %v2890
        %v3403 = vpack.c.b16 %v2893, %v2891
        %v3404 = vpack.c.b16 %v2896, %v2894
        %v3405 = vpack.c.b16 %v2897, %v2895
        %v3406 = vpack.c.b16 %v2900, %v2898
        %v3407 = vpack.c.b16 %v2901, %v2899
        %v3408 = vpack.c.b16 %v2904, %v2902
        %v3409 = vpack.c.b16 %v2905, %v2903
        %v3410 = vpack.c.b16 %v2908, %v2906
        %v3411 = vpack.c.b16 %v2909, %v2907
        %v3412 = vpack.c.b16 %v2912, %v2910
        %v3413 = vpack.c.b16 %v2913, %v2911
        %v3414 = vpack.c.b16 %v2916, %v2914
        %v3415 = vpack.c.b16 %v2917, %v2915
        %v3416 = vpack.c.b16 %v2920, %v2918
        %v3417 = vpack.c.b16 %v2921, %v2919
        %v3418 = vpack.c.b16 %v2924, %v2922
        %v3419 = vpack.c.b16 %v2925, %v2923
        %v3420 = vpack.c.b16 %v2928, %v2926
        %v3421 = vpack.c.b16 %v2929, %v2927
        %v3422 = vpack.c.b16 %v2932, %v2930
        %v3423 = vpack.c.b16 %v2933, %v2931
        %v3424 = vpack.c.b16 %v2936, %v2934
        %v3425 = vpack.c.b16 %v2937, %v2935
        %v3426 = vpack.c.b16 %v2940, %v2938
        %v3427 = vpack.c.b16 %v2941, %v2939
        %v3428 = vpack.c.b16 %v2944, %v2942
        %v3429 = vpack.c.b16 %v2945, %v2943
        %v3430 = vpack.c.b16 %v2948, %v2946
        %v3431 = vpack.c.b16 %v2949, %v2947
        %v3432 = vpack.c.b16 %v2952, %v2950
        %v3433 = vpack.c.b16 %v2953, %v2951
        %v3434 = vpack.c.b16 %v2956, %v2954
        %v3435 = vpack.c.b16 %v2957, %v2955
        %v3436 = vpack.c.b16 %v2960, %v2958
        %v3437 = vpack.c.b16 %v2961, %v2959
        %v3438 = vpack.c.b16 %v2964, %v2962
        %v3439 = vpack.c.b16 %v2965, %v2963
        %v3440 = vpack.c.b16 %v2968, %v2966
        %v3441 = vpack.c.b16 %v2969, %v2967
        %v3442 = vpack.c.b16 %v2972, %v2970
        %v3443 = vpack.c.b16 %v2973, %v2971
        %v3444 = vpack.c.b16 %v2976, %v2974
        %v3445 = vpack.c.b16 %v2977, %v2975
        %v3446 = vpack.c.b16 %v2980, %v2978
        %v3447 = vpack.c.b16 %v2981, %v2979
        %v3448 = vpack.c.b16 %v2984, %v2982
        %v3449 = vpack.c.b16 %v2985, %v2983
        %v3450 = vpack.c.b16 %v2988, %v2986
        %v3451 = vpack.c.b16 %v2989, %v2987
        %v3452 = vpack.c.b16 %v2992, %v2990
        %v3453 = vpack.c.b16 %v2993, %v2991
        %v3454 = vpack.c.b16 %v2996, %v2994
        %v3455 = vpack.c.b16 %v2997, %v2995
        %v3456 = vpack.c.b16 %v3000, %v2998
        %v3457 = vpack.c.b16 %v3001, %v2999
        %v3458 = vpack.c.b16 %v3004, %v3002
        %v3459 = vpack.c.b16 %v3005, %v3003
        %v3460 = vpack.c.b16 %v3008, %v3006
        %v3461 = vpack.c.b16 %v3009, %v3007
        %v3462 = vpack.c.b16 %v3012, %v3010
        %v3463 = vpack.c.b16 %v3013, %v3011
        %v3464 = vpack.c.b16 %v3016, %v3014
        %v3465 = vpack.c.b16 %v3017, %v3015
        %v3466 = vpack.c.b16 %v3020, %v3018
        %v3467 = vpack.c.b16 %v3021, %v3019
        %v3468 = vpack.c.b16 %v3024, %v3022
        %v3469 = vpack.c.b16 %v3025, %v3023
        %v3470 = vpack.c.b16 %v3028, %v3026
        %v3471 = vpack.c.b16 %v3029, %v3027
        %v3472 = vpack.c.b16 %v3032, %v3030
        %v3473 = vpack.c.b16 %v3033, %v3031
        %v3474 = vpack.c.b16 %v3036, %v3034
        %v3475 = vpack.c.b16 %v3037, %v3035
        %v3476 = vpack.c.b16 %v3040, %v3038
        %v3477 = vpack.c.b16 %v3041, %v3039
        %v3478 = vpack.c.b16 %v3044, %v3042
        %v3479 = vpack.c.b16 %v3045, %v3043
        %v3480 = vpack.c.b16 %v3048, %v3046
        %v3481 = vpack.c.b16 %v3049, %v3047
        %v3482 = vpack.c.b16 %v3052, %v3050
        %v3483 = vpack.c.b16 %v3053, %v3051
        %v3484 = vpack.c.b16 %v3056, %v3054
        %v3485 = vpack.c.b16 %v3057, %v3055
        %v3486 = vpack.c.b16 %v3060, %v3058
        %v3487 = vpack.c.b16 %v3061, %v3059
        %v3488 = vpack.c.b16 %v3064, %v3062
        %v3489 = vpack.c.b16 %v3065, %v3063
        %v3490 = vpack.c.b16 %v3068, %v3066
        %v3491 = vpack.c.b16 %v3069, %v3067
        %v3492 = vpack.c.b16 %v3072, %v3070
        %v3493 = vpack.c.b16 %v3073, %v3071
        %v3494 = vpack.c.b16 %v3076, %v3074
        %v3495 = vpack.c.b16 %v3077, %v3075
        %v3496 = vpack.c.b16 %v3080, %v3078
        %v3497 = vpack.c.b16 %v3081, %v3079
        %v3498 = vpack.c.b16 %v3084, %v3082
        %v3499 = vpack.c.b16 %v3085, %v3083
        %v3500 = vpack.c.b16 %v3088, %v3086
        %v3501 = vpack.c.b16 %v3089, %v3087
        %v3502 = vpack.c.b16 %v3092, %v3090
        %v3503 = vpack.c.b16 %v3093, %v3091
        %v3504 = vpack.c.b16 %v3096, %v3094
        %v3505 = vpack.c.b16 %v3097, %v3095
        %v3506 = vpack.c.b16 %v3100, %v3098
        %v3507 = vpack.c.b16 %v3101, %v3099
        %v3508 = vpack.c.b16 %v3104, %v3102
        %v3509 = vpack.c.b16 %v3105, %v3103
        %v3510 = vpack.c.b16 %v3108, %v3106
        %v3511 = vpack.c.b16 %v3109, %v3107
        %v3512 = vpack.c.b16 %v3112, %v3110
        %v3513 = vpack.c.b16 %v3113, %v3111
        %v3514 = vpack.c.b16 %v3116, %v3114
        %v3515 = vpack.c.b16 %v3117, %v3115
        %v3516 = vpack.c.b16 %v3120, %v3118
        %v3517 = vpack.c.b16 %v3121, %v3119
        %v3518 = vpack.c.b16 %v3124, %v3122
        %v3519 = vpack.c.b16 %v3125, %v3123
        %v3520 = vpack.c.b16 %v3128, %v3126
        %v3521 = vpack.c.b16 %v3129, %v3127
        %v3522 = vpack.c.b16 %v3132, %v3130
        %v3523 = vpack.c.b16 %v3133, %v3131
        %v3524 = vpack.c.b16 %v3136, %v3134
        %v3525 = vpack.c.b16 %v3137, %v3135
        %v3526 = vpack.c.b16 %v3140, %v3138
        %v3527 = vpack.c.b16 %v3141, %v3139
        %v3528 = vpack.c.b16 %v3144, %v3142
        %v3529 = vpack.c.b16 %v3145, %v3143
        %v3530 = vpack.c.b16 %v3148, %v3146
        %v3531 = vpack.c.b16 %v3149, %v3147
        %v3532 = vpack.c.b16 %v3152, %v3150
        %v3533 = vpack.c.b16 %v3153, %v3151
        %v3534 = vpack.c.b16 %v3156, %v3154
        %v3535 = vpack.c.b16 %v3157, %v3155
        %v3536 = vpack.c.b16 %v3160, %v3158
        %v3537 = vpack.c.b16 %v3161, %v3159
        %v3538 = vpack.c.b16 %v3164, %v3162
        %v3539 = vpack.c.b16 %v3165, %v3163
        %v3540 = vpack.c.b16 %v3168, %v3166
        %v3541 = vpack.c.b16 %v3169, %v3167
        %v3542 = vpack.c.b16 %v3172, %v3170
        %v3543 = vpack.c.b16 %v3173, %v3171
        %v3544 = vpack.c.b16 %v3176, %v3174
        %v3545 = vpack.c.b16 %v3177, %v3175
        %v3546 = vpack.c.b16 %v3180, %v3178
        %v3547 = vpack.c.b16 %v3181, %v3179
        %v3548 = vpack.c.b16 %v3184, %v3182
        %v3549 = vpack.c.b16 %v3185, %v3183
        %v3550 = vpack.c.b16 %v3188, %v3186
        %v3551 = vpack.c.b16 %v3189, %v3187
        %v3552 = vpack.c.b16 %v3192, %v3190
        %v3553 = vpack.c.b16 %v3193, %v3191
        %v3554 = vpack.c.b16 %v3196, %v3194
        %v3555 = vpack.c.b16 %v3197, %v3195
        %v3556 = vpack.c.b16 %v3200, %v3198
        %v3557 = vpack.c.b16 %v3201, %v3199
        %v3558 = vpack.c.b16 %v3204, %v3202
        %v3559 = vpack.c.b16 %v3205, %v3203
        %v3560 = vpack.c.b16 %v3208, %v3206
        %v3561 = vpack.c.b16 %v3209, %v3207
        %v3562 = vpack.c.b16 %v3212, %v3210
        %v3563 = vpack.c.b16 %v3213, %v3211
        %v3564 = vpack.c.b16 %v3216, %v3214
        %v3565 = vpack.c.b16 %v3217, %v3215
        %v3566 = vpack.c.b16 %v3220, %v3218
        %v3567 = vpack.c.b16 %v3221, %v3219
        %v3568 = vpack.c.b16 %v3224, %v3222
        %v3569 = vpack.c.b16 %v3225, %v3223
        %v3570 = vpack.c.b16 %v3228, %v3226
        %v3571 = vpack.c.b16 %v3229, %v3227
        %v3572 = vpack.c.b16 %v3232, %v3230
        %v3573 = vpack.c.b16 %v3233, %v3231
        %v3574 = vpack.c.b16 %v3236, %v3234
        %v3575 = vpack.c.b16 %v3237, %v3235
        %v3576 = vpack.c.b16 %v3240, %v3238
        %v3577 = vpack.c.b16 %v3241, %v3239
        %v3578 = vpack.c.b16 %v3244, %v3242
        %v3579 = vpack.c.b16 %v3245, %v3243
        %v3580 = vpack.c.b16 %v3248, %v3246
        %v3581 = vpack.c.b16 %v3249, %v3247
        %v3582 = vpack.c.b16 %v3252, %v3250
        %v3583 = vpack.c.b16 %v3253, %v3251
        %v3584 = vpack.c.b16 %v3256, %v3254
        %v3585 = vpack.c.b16 %v3257, %v3255
        %v3586 = vpack.c.b16 %v3260, %v3258
        %v3587 = vpack.c.b16 %v3261, %v3259
        %v3588 = vpack.c.b16 %v3264, %v3262
        %v3589 = vpack.c.b16 %v3265, %v3263
        %v3590 = vpack.c.b16 %v3268, %v3266
        %v3591 = vpack.c.b16 %v3269, %v3267
        %v3592 = vpack.c.b16 %v3272, %v3270
        %v3593 = vpack.c.b16 %v3273, %v3271
        %v3594 = vpack.c.b16 %v3276, %v3274
        %v3595 = vpack.c.b16 %v3277, %v3275
        %v3596 = vpack.c.b16 %v3280, %v3278
        %v3597 = vpack.c.b16 %v3281, %v3279
        %v3598 = vpack.c.b16 %v3284, %v3282
        %v3599 = vpack.c.b16 %v3285, %v3283
        %v3600 = vpack.c.b16 %v3288, %v3286
        %v3601 = vpack.c.b16 %v3289, %v3287
        %v3602 = vpack.c.b16 %v3292, %v3290
        %v3603 = vpack.c.b16 %v3293, %v3291
        %v3604 = vpack.c.b16 %v3296, %v3294
        %v3605 = vpack.c.b16 %v3297, %v3295
        %v3606 = vpack.c.b16 %v3300, %v3298
        %v3607 = vpack.c.b16 %v3301, %v3299
        %v3608 = vpack.c.b16 %v3304, %v3302
        %v3609 = vpack.c.b16 %v3305, %v3303
        %v3610 = vpack.c.b16 %v3308, %v3306
        %v3611 = vpack.c.b16 %v3309, %v3307
        %v3612 = vpack.c.b16 %v3312, %v3310
        %v3613 = vpack.c.b16 %v3313, %v3311
        %v3614 = vpack.c.b16 %v3316, %v3314
        %v3615 = vpack.c.b16 %v3317, %v3315
        %v3616 = vpack.c.b16 %v3320, %v3318
        %v3617 = vpack.c.b16 %v3321, %v3319
        %v3618 = vpack.c.b16 %v3324, %v3322
        %v3619 = vpack.c.b16 %v3325, %v3323
        %v3620 = vpack.c.b16 %v3328, %v3326
        %v3621 = vpack.c.b16 %v3329, %v3327
        %v3622 = vpack.c.b16 %v3332, %v3330
        %v3623 = vpack.c.b16 %v3333, %v3331
        %v3624 = vpack.c.b16 %v3336, %v3334
        %v3625 = vpack.c.b16 %v3337, %v3335
        %v3626 = vpack.c.b16 %v3340, %v3338
        %v3627 = vpack.c.b16 %v3341, %v3339
        %v3628 = vpack.c.b16 %v3344, %v3342
        %v3629 = vpack.c.b16 %v3345, %v3343
        %v3630 = vpack.c.b16 %v3348, %v3346
        %v3631 = vpack.c.b16 %v3349, %v3347
        %v3632 = vpack.c.b16 %v3352, %v3350
        %v3633 = vpack.c.b16 %v3353, %v3351
        %v3634 = vpack.c.b16 %v3356, %v3354
        %v3635 = vpack.c.b16 %v3357, %v3355
        %v3636 = vpack.c.b16 %v3360, %v3358
        %v3637 = vpack.c.b16 %v3361, %v3359
        %v3638 = vpack.c.b16 %v3364, %v3362
        %v3639 = vpack.c.b16 %v3365, %v3363
        %v3640 = vpack.c.b16 %v3368, %v3366
        %v3641 = vpack.c.b16 %v3369, %v3367
        %3914 = vmatprep.subr.bf16.mxu0 %v3371
        %3915 = vmatpush1.bf16.msra.mxu0 %v3370
        %3916 = vmatprep.subr.bf16.mxu0 %v3373
        %3917 = vmatpush1.bf16.msra.mxu0 %v3372
        %3918 = vmatprep.subr.bf16.mxu0 %v3375
        %3919 = vmatpush1.bf16.msra.mxu0 %v3374
        %3920 = vmatprep.subr.bf16.mxu0 %v3377
        %3921 = vmatpush1.bf16.msra.mxu0 %v3376
        %3922 = vmatprep.subr.bf16.mxu0 %v3379
        %3923 = vmatpush1.bf16.msra.mxu0 %v3378
        %3924 = vmatprep.subr.bf16.mxu0 %v3381
        %3925 = vmatpush1.bf16.msra.mxu0 %v3380
        %3926 = vmatprep.subr.bf16.mxu0 %v3383
        %3927 = vmatpush1.bf16.msra.mxu0 %v3382
        %3928 = vmatprep.subr.bf16.mxu0 %v3385
        %3929 = vmatpush1.bf16.msra.mxu0 %v3384
        %3930 = vmatprep.subr.bf16.mxu0 %v3387
        %3931 = vmatpush1.bf16.msra.mxu0 %v3386
        %3932 = vmatprep.subr.bf16.mxu0 %v3389
        %3933 = vmatpush1.bf16.msra.mxu0 %v3388
        %3934 = vmatprep.subr.bf16.mxu0 %v3391
        %3935 = vmatpush1.bf16.msra.mxu0 %v3390
        %3936 = vmatprep.subr.bf16.mxu0 %v3393
        %3937 = vmatpush1.bf16.msra.mxu0 %v3392
        %3938 = vmatprep.subr.bf16.mxu0 %v3395
        %3939 = vmatpush1.bf16.msra.mxu0 %v3394
        %3940 = vmatprep.subr.bf16.mxu0 %v3397
        %3941 = vmatpush1.bf16.msra.mxu0 %v3396
        %3942 = vmatprep.subr.bf16.mxu0 %v3399
        %3943 = vmatpush1.bf16.msra.mxu0 %v3398
        %3944 = vmatprep.subr.bf16.mxu0 %v3401
        %3945 = vmatpush1.bf16.msra.mxu0 %v3400
        %3946 = vmatprep.mubr.bf16.mxu0 %v2254
        %3947 = vmatmul.mubr.bf16.gmra.mrb[0].mxu0 %v2253
        %v3948 = vpop.f32.mrb[0].mxu0
        %v3949 = vadd.f32 %v2547, %v3948
        %v3950 = vpop.f32.mrb[0].mxu0
        %v3951 = vadd.f32 %v2551, %v3950
        %v3952 = vpop.f32.mrb[0].mxu0
        %v3953 = vpop.f32.mrb[0].mxu0
        %3954 = vdwg.mxu0
        %3955 = vmatprep.subr.bf16.mxu0 %v3403
        %3956 = vmatpush1.bf16.msra.mxu0 %v3402
        %3957 = vmatprep.subr.bf16.mxu0 %v3405
        %3958 = vmatpush1.bf16.msra.mxu0 %v3404
        %3959 = vmatprep.subr.bf16.mxu0 %v3407
        %3960 = vmatpush1.bf16.msra.mxu0 %v3406
        %3961 = vmatprep.subr.bf16.mxu0 %v3409
        %3962 = vmatpush1.bf16.msra.mxu0 %v3408
        %3963 = vmatprep.subr.bf16.mxu0 %v3411
        %3964 = vmatpush1.bf16.msra.mxu0 %v3410
        %3965 = vmatprep.subr.bf16.mxu0 %v3413
        %3966 = vmatpush1.bf16.msra.mxu0 %v3412
        %3967 = vmatprep.subr.bf16.mxu0 %v3415
        %3968 = vmatpush1.bf16.msra.mxu0 %v3414
        %3969 = vmatprep.subr.bf16.mxu0 %v3417
        %3970 = vmatpush1.bf16.msra.mxu0 %v3416
        %3971 = vmatprep.subr.bf16.mxu0 %v3419
        %3972 = vmatpush1.bf16.msra.mxu0 %v3418
        %3973 = vmatprep.subr.bf16.mxu0 %v3421
        %3974 = vmatpush1.bf16.msra.mxu0 %v3420
        %3975 = vmatprep.subr.bf16.mxu0 %v3423
        %3976 = vmatpush1.bf16.msra.mxu0 %v3422
        %3977 = vmatprep.subr.bf16.mxu0 %v3425
        %3978 = vmatpush1.bf16.msra.mxu0 %v3424
        %3979 = vmatprep.subr.bf16.mxu0 %v3427
        %3980 = vmatpush1.bf16.msra.mxu0 %v3426
        %3981 = vmatprep.subr.bf16.mxu0 %v3429
        %3982 = vmatpush1.bf16.msra.mxu0 %v3428
        %3983 = vmatprep.subr.bf16.mxu0 %v3431
        %3984 = vmatpush1.bf16.msra.mxu0 %v3430
        %3985 = vmatprep.subr.bf16.mxu0 %v3433
        %3986 = vmatpush1.bf16.msra.mxu0 %v3432
        %3987 = vmatprep.mubr.bf16.mxu0 %v2256
        %3988 = vmatmul.mubr.bf16.gmra.mrb[0].mxu0 %v2255
        %v3989 = vpop.f32.mrb[0].mxu0
        %v3990 = vadd.f32 %v3949, %v3989
        %v3991 = vpop.f32.mrb[0].mxu0
        %v3992 = vadd.f32 %v3951, %v3991
        %v3993 = vpop.f32.mrb[0].mxu0
        %v3994 = vpop.f32.mrb[0].mxu0
        %3995 = vdwg.mxu0
        %3996 = vmatprep.subr.bf16.mxu0 %v3435
        %3997 = vmatpush1.bf16.msra.mxu0 %v3434
        %3998 = vmatprep.subr.bf16.mxu0 %v3437
        %3999 = vmatpush1.bf16.msra.mxu0 %v3436
        %4000 = vmatprep.subr.bf16.mxu0 %v3439
        %4001 = vmatpush1.bf16.msra.mxu0 %v3438
        %4002 = vmatprep.subr.bf16.mxu0 %v3441
        %4003 = vmatpush1.bf16.msra.mxu0 %v3440
        %4004 = vmatprep.subr.bf16.mxu0 %v3443
        %4005 = vmatpush1.bf16.msra.mxu0 %v3442
        %4006 = vmatprep.subr.bf16.mxu0 %v3445
        %4007 = vmatpush1.bf16.msra.mxu0 %v3444
        %4008 = vmatprep.subr.bf16.mxu0 %v3447
        %4009 = vmatpush1.bf16.msra.mxu0 %v3446
        %4010 = vmatprep.subr.bf16.mxu0 %v3449
        %4011 = vmatpush1.bf16.msra.mxu0 %v3448
        %4012 = vmatprep.subr.bf16.mxu0 %v3451
        %4013 = vmatpush1.bf16.msra.mxu0 %v3450
        %4014 = vmatprep.subr.bf16.mxu0 %v3453
        %4015 = vmatpush1.bf16.msra.mxu0 %v3452
        %4016 = vmatprep.subr.bf16.mxu0 %v3455
        %4017 = vmatpush1.bf16.msra.mxu0 %v3454
        %4018 = vmatprep.subr.bf16.mxu0 %v3457
        %4019 = vmatpush1.bf16.msra.mxu0 %v3456
        %4020 = vmatprep.subr.bf16.mxu0 %v3459
        %4021 = vmatpush1.bf16.msra.mxu0 %v3458
        %4022 = vmatprep.subr.bf16.mxu0 %v3461
        %4023 = vmatpush1.bf16.msra.mxu0 %v3460
        %4024 = vmatprep.subr.bf16.mxu0 %v3463
        %4025 = vmatpush1.bf16.msra.mxu0 %v3462
        %4026 = vmatprep.subr.bf16.mxu0 %v3465
        %4027 = vmatpush1.bf16.msra.mxu0 %v3464
        %4028 = vmatprep.mubr.bf16.mxu0 %v2258
        %4029 = vmatmul.mubr.bf16.gmra.mrb[0].mxu0 %v2257
        %v4030 = vpop.f32.mrb[0].mxu0
        %v4031 = vadd.f32 %v3990, %v4030
        %v4032 = vpop.f32.mrb[0].mxu0
        %v4033 = vadd.f32 %v3992, %v4032
        %v4034 = vpop.f32.mrb[0].mxu0
        %v4035 = vpop.f32.mrb[0].mxu0
        %4036 = vdwg.mxu0
        %4037 = vmatprep.subr.bf16.mxu0 %v3467
        %4038 = vmatpush1.bf16.msra.mxu0 %v3466
        %4039 = vmatprep.subr.bf16.mxu0 %v3469
        %4040 = vmatpush1.bf16.msra.mxu0 %v3468
        %4041 = vmatprep.subr.bf16.mxu0 %v3471
        %4042 = vmatpush1.bf16.msra.mxu0 %v3470
        %4043 = vmatprep.subr.bf16.mxu0 %v3473
        %4044 = vmatpush1.bf16.msra.mxu0 %v3472
        %4045 = vmatprep.subr.bf16.mxu0 %v3475
        %4046 = vmatpush1.bf16.msra.mxu0 %v3474
        %4047 = vmatprep.subr.bf16.mxu0 %v3477
        %4048 = vmatpush1.bf16.msra.mxu0 %v3476
        %4049 = vmatprep.subr.bf16.mxu0 %v3479
        %4050 = vmatpush1.bf16.msra.mxu0 %v3478
        %4051 = vmatprep.subr.bf16.mxu0 %v3481
        %4052 = vmatpush1.bf16.msra.mxu0 %v3480
        %4053 = vmatprep.subr.bf16.mxu0 %v3483
        %4054 = vmatpush1.bf16.msra.mxu0 %v3482
        %4055 = vmatprep.subr.bf16.mxu0 %v3485
        %4056 = vmatpush1.bf16.msra.mxu0 %v3484
        %4057 = vmatprep.subr.bf16.mxu0 %v3487
        %4058 = vmatpush1.bf16.msra.mxu0 %v3486
        %4059 = vmatprep.subr.bf16.mxu0 %v3489
        %4060 = vmatpush1.bf16.msra.mxu0 %v3488
        %4061 = vmatprep.subr.bf16.mxu0 %v3491
        %4062 = vmatpush1.bf16.msra.mxu0 %v3490
        %4063 = vmatprep.subr.bf16.mxu0 %v3493
        %4064 = vmatpush1.bf16.msra.mxu0 %v3492
        %4065 = vmatprep.subr.bf16.mxu0 %v3495
        %4066 = vmatpush1.bf16.msra.mxu0 %v3494
        %4067 = vmatprep.subr.bf16.mxu0 %v3497
        %4068 = vmatpush1.bf16.msra.mxu0 %v3496
        %4069 = vmatprep.mubr.bf16.mxu0 %v2260
        %4070 = vmatmul.mubr.bf16.gmra.mrb[0].mxu0 %v2259
        %v4071 = vpop.f32.mrb[0].mxu0
        %v4072 = vadd.f32 %v4031, %v4071
        %v4073 = vpop.f32.mrb[0].mxu0
        %v4074 = vadd.f32 %v4033, %v4073
        %v4075 = vpop.f32.mrb[0].mxu0
        %v4076 = vpop.f32.mrb[0].mxu0
        %4077 = vdwg.mxu0
        %4078 = vmatprep.subr.bf16.mxu0 %v3499
        %4079 = vmatpush1.bf16.msra.mxu0 %v3498
        %4080 = vmatprep.subr.bf16.mxu0 %v3501
        %4081 = vmatpush1.bf16.msra.mxu0 %v3500
        %4082 = vmatprep.subr.bf16.mxu0 %v3503
        %4083 = vmatpush1.bf16.msra.mxu0 %v3502
        %4084 = vmatprep.subr.bf16.mxu0 %v3505
        %4085 = vmatpush1.bf16.msra.mxu0 %v3504
        %4086 = vmatprep.subr.bf16.mxu0 %v3507
        %4087 = vmatpush1.bf16.msra.mxu0 %v3506
        %4088 = vmatprep.subr.bf16.mxu0 %v3509
        %4089 = vmatpush1.bf16.msra.mxu0 %v3508
        %4090 = vmatprep.subr.bf16.mxu0 %v3511
        %4091 = vmatpush1.bf16.msra.mxu0 %v3510
        %4092 = vmatprep.subr.bf16.mxu0 %v3513
        %4093 = vmatpush1.bf16.msra.mxu0 %v3512
        %4094 = vmatprep.subr.bf16.mxu0 %v3515
        %4095 = vmatpush1.bf16.msra.mxu0 %v3514
        %4096 = vmatprep.subr.bf16.mxu0 %v3517
        %4097 = vmatpush1.bf16.msra.mxu0 %v3516
        %4098 = vmatprep.subr.bf16.mxu0 %v3519
        %4099 = vmatpush1.bf16.msra.mxu0 %v3518
        %4100 = vmatprep.subr.bf16.mxu0 %v3521
        %4101 = vmatpush1.bf16.msra.mxu0 %v3520
        %4102 = vmatprep.subr.bf16.mxu0 %v3523
        %4103 = vmatpush1.bf16.msra.mxu0 %v3522
        %4104 = vmatprep.subr.bf16.mxu0 %v3525
        %4105 = vmatpush1.bf16.msra.mxu0 %v3524
        %4106 = vmatprep.subr.bf16.mxu0 %v3527
        %4107 = vmatpush1.bf16.msra.mxu0 %v3526
        %4108 = vmatprep.subr.bf16.mxu0 %v3529
        %4109 = vmatpush1.bf16.msra.mxu0 %v3528
        %4110 = vmatprep.mubr.bf16.mxu0 %v2262
        %4111 = vmatmul.mubr.bf16.gmra.mrb[0].mxu0 %v2261
        %v4112 = vpop.f32.mrb[0].mxu0
        %v4113 = vadd.f32 %v4072, %v4112
        %v4114 = vpop.f32.mrb[0].mxu0
        %v4115 = vadd.f32 %v4074, %v4114
        %v4116 = vpop.f32.mrb[0].mxu0
        %v4117 = vpop.f32.mrb[0].mxu0
        %4118 = vdwg.mxu0
        %4119 = vmatprep.subr.bf16.mxu0 %v3531
        %4120 = vmatpush1.bf16.msra.mxu0 %v3530
        %4121 = vmatprep.subr.bf16.mxu0 %v3533
        %4122 = vmatpush1.bf16.msra.mxu0 %v3532
        %4123 = vmatprep.subr.bf16.mxu0 %v3535
        %4124 = vmatpush1.bf16.msra.mxu0 %v3534
        %4125 = vmatprep.subr.bf16.mxu0 %v3537
        %4126 = vmatpush1.bf16.msra.mxu0 %v3536
        %4127 = vmatprep.subr.bf16.mxu0 %v3539
        %4128 = vmatpush1.bf16.msra.mxu0 %v3538
        %4129 = vmatprep.subr.bf16.mxu0 %v3541
        %4130 = vmatpush1.bf16.msra.mxu0 %v3540
        %4131 = vmatprep.subr.bf16.mxu0 %v3543
        %4132 = vmatpush1.bf16.msra.mxu0 %v3542
        %4133 = vmatprep.subr.bf16.mxu0 %v3545
        %4134 = vmatpush1.bf16.msra.mxu0 %v3544
        %4135 = vmatprep.subr.bf16.mxu0 %v3547
        %4136 = vmatpush1.bf16.msra.mxu0 %v3546
        %4137 = vmatprep.subr.bf16.mxu0 %v3549
        %4138 = vmatpush1.bf16.msra.mxu0 %v3548
        %4139 = vmatprep.subr.bf16.mxu0 %v3551
        %4140 = vmatpush1.bf16.msra.mxu0 %v3550
        %4141 = vmatprep.subr.bf16.mxu0 %v3553
        %4142 = vmatpush1.bf16.msra.mxu0 %v3552
        %4143 = vmatprep.subr.bf16.mxu0 %v3555
        %4144 = vmatpush1.bf16.msra.mxu0 %v3554
        %4145 = vmatprep.subr.bf16.mxu0 %v3557
        %4146 = vmatpush1.bf16.msra.mxu0 %v3556
        %4147 = vmatprep.subr.bf16.mxu0 %v3559
        %4148 = vmatpush1.bf16.msra.mxu0 %v3558
        %4149 = vmatprep.subr.bf16.mxu0 %v3561
        %4150 = vmatpush1.bf16.msra.mxu0 %v3560
        %4151 = vmatprep.mubr.bf16.mxu0 %v2264
        %4152 = vmatmul.mubr.bf16.gmra.mrb[0].mxu0 %v2263
        %v4153 = vpop.f32.mrb[0].mxu0
        %v4154 = vadd.f32 %v4113, %v4153
        %v4155 = vpop.f32.mrb[0].mxu0
        %v4156 = vadd.f32 %v4115, %v4155
        %v4157 = vpop.f32.mrb[0].mxu0
        %v4158 = vpop.f32.mrb[0].mxu0
        %4159 = vdwg.mxu0
        %4160 = vmatprep.subr.bf16.mxu0 %v3563
        %4161 = vmatpush1.bf16.msra.mxu0 %v3562
        %4162 = vmatprep.subr.bf16.mxu0 %v3565
        %4163 = vmatpush1.bf16.msra.mxu0 %v3564
        %4164 = vmatprep.subr.bf16.mxu0 %v3567
        %4165 = vmatpush1.bf16.msra.mxu0 %v3566
        %4166 = vmatprep.subr.bf16.mxu0 %v3569
        %4167 = vmatpush1.bf16.msra.mxu0 %v3568
        %4168 = vmatprep.subr.bf16.mxu0 %v3571
        %4169 = vmatpush1.bf16.msra.mxu0 %v3570
        %4170 = vmatprep.subr.bf16.mxu0 %v3573
        %4171 = vmatpush1.bf16.msra.mxu0 %v3572
        %4172 = vmatprep.subr.bf16.mxu0 %v3575
        %4173 = vmatpush1.bf16.msra.mxu0 %v3574
        %4174 = vmatprep.subr.bf16.mxu0 %v3577
        %4175 = vmatpush1.bf16.msra.mxu0 %v3576
        %4176 = vmatprep.subr.bf16.mxu0 %v3579
        %4177 = vmatpush1.bf16.msra.mxu0 %v3578
        %4178 = vmatprep.subr.bf16.mxu0 %v3581
        %4179 = vmatpush1.bf16.msra.mxu0 %v3580
        %4180 = vmatprep.subr.bf16.mxu0 %v3583
        %4181 = vmatpush1.bf16.msra.mxu0 %v3582
        %4182 = vmatprep.subr.bf16.mxu0 %v3585
        %4183 = vmatpush1.bf16.msra.mxu0 %v3584
        %4184 = vmatprep.subr.bf16.mxu0 %v3587
        %4185 = vmatpush1.bf16.msra.mxu0 %v3586
        %4186 = vmatprep.subr.bf16.mxu0 %v3589
        %4187 = vmatpush1.bf16.msra.mxu0 %v3588
        %4188 = vmatprep.subr.bf16.mxu0 %v3591
        %4189 = vmatpush1.bf16.msra.mxu0 %v3590
        %4190 = vmatprep.subr.bf16.mxu0 %v3593
        %4191 = vmatpush1.bf16.msra.mxu0 %v3592
        %4192 = vmatprep.mubr.bf16.mxu0 %v2266
        %4193 = vmatmul.mubr.bf16.gmra.mrb[0].mxu0 %v2265
        %v4194 = vpop.f32.mrb[0].mxu0
        %v4195 = vadd.f32 %v4154, %v4194
        %v4196 = vpop.f32.mrb[0].mxu0
        %v4197 = vadd.f32 %v4156, %v4196
        %v4198 = vpop.f32.mrb[0].mxu0
        %v4199 = vpop.f32.mrb[0].mxu0
        %4200 = vdwg.mxu0
        %4201 = vmatprep.subr.bf16.mxu0 %v3595
        %4202 = vmatpush1.bf16.msra.mxu0 %v3594
        %4203 = vmatprep.subr.bf16.mxu0 %v3597
        %4204 = vmatpush1.bf16.msra.mxu0 %v3596
        %4205 = vmatprep.subr.bf16.mxu0 %v3599
        %4206 = vmatpush1.bf16.msra.mxu0 %v3598
        %4207 = vmatprep.subr.bf16.mxu0 %v3601
        %4208 = vmatpush1.bf16.msra.mxu0 %v3600
        %4209 = vmatprep.subr.bf16.mxu0 %v3603
        %4210 = vmatpush1.bf16.msra.mxu0 %v3602
        %4211 = vmatprep.subr.bf16.mxu0 %v3605
        %4212 = vmatpush1.bf16.msra.mxu0 %v3604
        %4213 = vmatprep.subr.bf16.mxu0 %v3607
        %4214 = vmatpush1.bf16.msra.mxu0 %v3606
        %4215 = vmatprep.subr.bf16.mxu0 %v3609
        %4216 = vmatpush1.bf16.msra.mxu0 %v3608
        %4217 = vmatprep.subr.bf16.mxu0 %v3611
        %4218 = vmatpush1.bf16.msra.mxu0 %v3610
        %4219 = vmatprep.subr.bf16.mxu0 %v3613
        %4220 = vmatpush1.bf16.msra.mxu0 %v3612
        %4221 = vmatprep.subr.bf16.mxu0 %v3615
        %4222 = vmatpush1.bf16.msra.mxu0 %v3614
        %4223 = vmatprep.subr.bf16.mxu0 %v3617
        %4224 = vmatpush1.bf16.msra.mxu0 %v3616
        %4225 = vmatprep.subr.bf16.mxu0 %v3619
        %4226 = vmatpush1.bf16.msra.mxu0 %v3618
        %4227 = vmatprep.subr.bf16.mxu0 %v3621
        %4228 = vmatpush1.bf16.msra.mxu0 %v3620
        %4229 = vmatprep.subr.bf16.mxu0 %v3623
        %4230 = vmatpush1.bf16.msra.mxu0 %v3622
        %4231 = vmatprep.subr.bf16.mxu0 %v3625
        %4232 = vmatpush1.bf16.msra.mxu0 %v3624
        %4233 = vmatprep.mubr.bf16.mxu0 %v2268
        %4234 = vmatmul.mubr.bf16.gmra.mrb[0].mxu0 %v2267
        %v4235 = vpop.f32.mrb[0].mxu0
        %v4236 = vadd.f32 %v4195, %v4235
        %v4237 = vpop.f32.mrb[0].mxu0
        %v4238 = vadd.f32 %v4197, %v4237
        %v4239 = vpop.f32.mrb[0].mxu0
        %v4240 = vpop.f32.mrb[0].mxu0
        %4241 = vdwg.mxu0
        %4242 = vmatprep.subr.bf16.mxu0 %v3627
        %4243 = vmatpush1.bf16.msra.mxu0 %v3626
        %4244 = vmatprep.subr.bf16.mxu0 %v3629
        %4245 = vmatpush1.bf16.msra.mxu0 %v3628
        %4246 = vmatprep.subr.bf16.mxu0 %v3631
        %4247 = vmatpush1.bf16.msra.mxu0 %v3630
        %4248 = vmatprep.subr.bf16.mxu0 %v3633
        %4249 = vmatpush1.bf16.msra.mxu0 %v3632
        %4250 = vmatprep.subr.bf16.mxu0 %v3635
        %4251 = vmatpush1.bf16.msra.mxu0 %v3634
        %4252 = vmatprep.subr.bf16.mxu0 %v3637
        %4253 = vmatpush1.bf16.msra.mxu0 %v3636
        %4254 = vmatprep.subr.bf16.mxu0 %v3639
        %4255 = vmatpush1.bf16.msra.mxu0 %v3638
        %4256 = vmatprep.subr.bf16.mxu0 %v3641
        %4257 = vmatpush1.bf16.msra.mxu0 %v3640
        %4258 = vmatprep.subr.bf16.mxu0 0
        %4259 = vmatpush1.bf16.msra.mxu0 0
        %4260 = vmatprep.subr.bf16.mxu0 0
        %4261 = vmatpush1.bf16.msra.mxu0 0
        %4262 = vmatprep.subr.bf16.mxu0 0
        %4263 = vmatpush1.bf16.msra.mxu0 0
        %4264 = vmatprep.subr.bf16.mxu0 0
        %4265 = vmatpush1.bf16.msra.mxu0 0
        %4266 = vmatprep.subr.bf16.mxu0 0
        %4267 = vmatpush1.bf16.msra.mxu0 0
        %4268 = vmatprep.subr.bf16.mxu0 0
        %4269 = vmatpush1.bf16.msra.mxu0 0
        %4270 = vmatprep.subr.bf16.mxu0 0
        %4271 = vmatpush1.bf16.msra.mxu0 0
        %4272 = vmatprep.subr.bf16.mxu0 0
        %4273 = vmatpush1.bf16.msra.mxu0 0
        %4274 = vmatprep.mubr.bf16.mxu0 0
        %4275 = vmatmul.mubr.bf16.gmra.mrb[0].mxu0 %v2269
        %v4276 = vpop.f32.mrb[0].mxu0
        %v4277 = vadd.f32 %v4236, %v4276
        %v4278 = vpop.f32.mrb[0].mxu0
        %v4279 = vadd.f32 %v4238, %v4278
        %v4280 = vpop.f32.mrb[0].mxu0
        %v4281 = vpop.f32.mrb[0].mxu0
        %4282 = vdwg.mxu0
        %v4283 = vmax.f32 %v4277, 0.0
        %v4284 = vmax.f32 %v4279, 0.0
        %v4285 = vpack.c.bf16 %v4283, %v4283
        %v4286 = vpack.c.bf16 %v4284, %v4284
        %v4287 = vld [vmem:[%s9] sm:$0xff]
        %v4288 = vld [vmem:[%s9 + $0x8] sm:$0xff]
        %v4289 = vld [vmem:[%s9 + $0x10] sm:$0xff]
        %v4290 = vld [vmem:[%s9 + $0x18] sm:$0xff]
        %v4291 = vld [vmem:[%s9 + $0x20] sm:$0xff]
        %v4292 = vld [vmem:[%s9 + $0x28] sm:$0xff]
        %v4293 = vld [vmem:[%s9 + $0x30] sm:$0xff]
        %v4294 = vld [vmem:[%s9 + $0x38] sm:$0xff]
        %v4295 = vld [vmem:[%s9 + $0x40] sm:$0xff]
        %v4296 = vld [vmem:[%s9 + $0x48] sm:$0xff]
        %v4297 = vld [vmem:[%s9 + $0x50] sm:$0xff]
        %v4298 = vld [vmem:[%s9 + $0x58] sm:$0xff]
        %v4299 = vld [vmem:[%s9 + $0x60] sm:$0xff]
        %v4300 = vld [vmem:[%s9 + $0x68] sm:$0xff]
        %v4301 = vld [vmem:[%s9 + $0x70] sm:$0xff]
        %v4302 = vld [vmem:[%s9 + $0x78] sm:$0xff]
        %v4303 = vld [vmem:[%s9 + $0x80] sm:$0xff]
        %v4304 = vld [vmem:[%s9 + $0x88] sm:$0xff]
        %v4305 = vld [vmem:[%s9 + $0x90] sm:$0xff]
        %v4306 = vld [vmem:[%s9 + $0x98] sm:$0xff]
        %v4307 = vld [vmem:[%s9 + $0xa0] sm:$0xff]
        %v4308 = vld [vmem:[%s9 + $0xa8] sm:$0xff]
        %v4309 = vld [vmem:[%s9 + $0xb0] sm:$0xff]
        %v4310 = vld [vmem:[%s9 + $0xb8] sm:$0xff]
        %v4311 = vld [vmem:[%s9 + $0xc0] sm:$0xff]
        %v4312 = vld [vmem:[%s9 + $0xc8] sm:$0xff]
        %v4313 = vld [vmem:[%s9 + $0xd0] sm:$0xff]
        %v4314 = vld [vmem:[%s9 + $0xd8] sm:$0xff]
        %v4315 = vld [vmem:[%s9 + $0xe0] sm:$0xff]
        %v4316 = vld [vmem:[%s9 + $0xe8] sm:$0xff]
        %v4317 = vld [vmem:[%s9 + $0xf0] sm:$0xff]
        %v4318 = vld [vmem:[%s9 + $0xf8] sm:$0xff]
        %v4319 = vld [vmem:[%s10] sm:$0x3]
        %v4321 = vlaneseq
        %v4322 = vshrl.u32 %v4321, 7
        %v4323 = vsub.s32 0, %v4322
        %v4324 = vrot.slane %v4319, %v4323
        %v4325 = vlaneseq
        %v4326 = vshrl.u32 %v4325, 7
        %v4327 = vsub.s32 1, %v4326
        %v4328 = vrot.slane %v4319, %v4327
        %v4363 = vunpack.c.l.b16 %v4287
        %v4364 = vunpack.c.h.b16 %v4287
        %v4365 = vunpack.c.l.b16 %v4288
        %v4366 = vunpack.c.h.b16 %v4288
        %v4367 = vunpack.c.l.b16 %v4289
        %v4368 = vunpack.c.h.b16 %v4289
        %v4369 = vunpack.c.l.b16 %v4290
        %v4370 = vunpack.c.h.b16 %v4290
        %v4371 = vunpack.c.l.b16 %v4291
        %v4372 = vunpack.c.h.b16 %v4291
        %v4373 = vunpack.c.l.b16 %v4292
        %v4374 = vunpack.c.h.b16 %v4292
        %v4375 = vunpack.c.l.b16 %v4293
        %v4376 = vunpack.c.h.b16 %v4293
        %v4377 = vunpack.c.l.b16 %v4294
        %v4378 = vunpack.c.h.b16 %v4294
        %v4379 = vunpack.c.l.b16 %v4295
        %v4380 = vunpack.c.h.b16 %v4295
        %v4381 = vunpack.c.l.b16 %v4296
        %v4382 = vunpack.c.h.b16 %v4296
        %v4383 = vunpack.c.l.b16 %v4297
        %v4384 = vunpack.c.h.b16 %v4297
        %v4385 = vunpack.c.l.b16 %v4298
        %v4386 = vunpack.c.h.b16 %v4298
        %v4387 = vunpack.c.l.b16 %v4299
        %v4388 = vunpack.c.h.b16 %v4299
        %v4389 = vunpack.c.l.b16 %v4300
        %v4390 = vunpack.c.h.b16 %v4300
        %v4391 = vunpack.c.l.b16 %v4301
        %v4392 = vunpack.c.h.b16 %v4301
        %v4393 = vunpack.c.l.b16 %v4302
        %v4394 = vunpack.c.h.b16 %v4302
        %v4395 = vunpack.c.l.b16 %v4303
        %v4396 = vunpack.c.h.b16 %v4303
        %v4397 = vunpack.c.l.b16 %v4304
        %v4398 = vunpack.c.h.b16 %v4304
        %v4399 = vunpack.c.l.b16 %v4305
        %v4400 = vunpack.c.h.b16 %v4305
        %v4401 = vunpack.c.l.b16 %v4306
        %v4402 = vunpack.c.h.b16 %v4306
        %v4403 = vunpack.c.l.b16 %v4307
        %v4404 = vunpack.c.h.b16 %v4307
        %v4405 = vunpack.c.l.b16 %v4308
        %v4406 = vunpack.c.h.b16 %v4308
        %v4407 = vunpack.c.l.b16 %v4309
        %v4408 = vunpack.c.h.b16 %v4309
        %v4409 = vunpack.c.l.b16 %v4310
        %v4410 = vunpack.c.h.b16 %v4310
        %v4411 = vunpack.c.l.b16 %v4311
        %v4412 = vunpack.c.h.b16 %v4311
        %v4413 = vunpack.c.l.b16 %v4312
        %v4414 = vunpack.c.h.b16 %v4312
        %v4415 = vunpack.c.l.b16 %v4313
        %v4416 = vunpack.c.h.b16 %v4313
        %v4417 = vunpack.c.l.b16 %v4314
        %v4418 = vunpack.c.h.b16 %v4314
        %v4419 = vunpack.c.l.b16 %v4315
        %v4420 = vunpack.c.h.b16 %v4315
        %v4421 = vunpack.c.l.b16 %v4316
        %v4422 = vunpack.c.h.b16 %v4316
        %v4423 = vunpack.c.l.b16 %v4317
        %v4424 = vunpack.c.h.b16 %v4317
        %v4425 = vunpack.c.l.b16 %v4318
        %v4426 = vunpack.c.h.b16 %v4318
        %v4427 = vpack.c.b16 %v4365, %v4363
        %v4428 = vpack.c.b16 %v4366, %v4364
        %v4429 = vpack.c.b16 %v4369, %v4367
        %v4430 = vpack.c.b16 %v4370, %v4368
        %v4431 = vpack.c.b16 %v4373, %v4371
        %v4432 = vpack.c.b16 %v4374, %v4372
        %v4433 = vpack.c.b16 %v4377, %v4375
        %v4434 = vpack.c.b16 %v4378, %v4376
        %v4435 = vpack.c.b16 %v4381, %v4379
        %v4436 = vpack.c.b16 %v4382, %v4380
        %v4437 = vpack.c.b16 %v4385, %v4383
        %v4438 = vpack.c.b16 %v4386, %v4384
        %v4439 = vpack.c.b16 %v4389, %v4387
        %v4440 = vpack.c.b16 %v4390, %v4388
        %v4441 = vpack.c.b16 %v4393, %v4391
        %v4442 = vpack.c.b16 %v4394, %v4392
        %v4443 = vpack.c.b16 %v4397, %v4395
        %v4444 = vpack.c.b16 %v4398, %v4396
        %v4445 = vpack.c.b16 %v4401, %v4399
        %v4446 = vpack.c.b16 %v4402, %v4400
        %v4447 = vpack.c.b16 %v4405, %v4403
        %v4448 = vpack.c.b16 %v4406, %v4404
        %v4449 = vpack.c.b16 %v4409, %v4407
        %v4450 = vpack.c.b16 %v4410, %v4408
        %v4451 = vpack.c.b16 %v4413, %v4411
        %v4452 = vpack.c.b16 %v4414, %v4412
        %v4453 = vpack.c.b16 %v4417, %v4415
        %v4454 = vpack.c.b16 %v4418, %v4416
        %v4455 = vpack.c.b16 %v4421, %v4419
        %v4456 = vpack.c.b16 %v4422, %v4420
        %v4457 = vpack.c.b16 %v4425, %v4423
        %v4458 = vpack.c.b16 %v4426, %v4424
        %4491 = vmatprep.subr.bf16.mxu0 %v4428
        %4492 = vmatpush1.bf16.msra.mxu0 %v4427
        %4493 = vmatprep.subr.bf16.mxu0 %v4430
        %4494 = vmatpush1.bf16.msra.mxu0 %v4429
        %4495 = vmatprep.subr.bf16.mxu0 %v4432
        %4496 = vmatpush1.bf16.msra.mxu0 %v4431
        %4497 = vmatprep.subr.bf16.mxu0 %v4434
        %4498 = vmatpush1.bf16.msra.mxu0 %v4433
        %4499 = vmatprep.subr.bf16.mxu0 %v4436
        %4500 = vmatpush1.bf16.msra.mxu0 %v4435
        %4501 = vmatprep.subr.bf16.mxu0 %v4438
        %4502 = vmatpush1.bf16.msra.mxu0 %v4437
        %4503 = vmatprep.subr.bf16.mxu0 %v4440
        %4504 = vmatpush1.bf16.msra.mxu0 %v4439
        %4505 = vmatprep.subr.bf16.mxu0 %v4442
        %4506 = vmatpush1.bf16.msra.mxu0 %v4441
        %4507 = vmatprep.subr.bf16.mxu0 %v4444
        %4508 = vmatpush1.bf16.msra.mxu0 %v4443
        %4509 = vmatprep.subr.bf16.mxu0 %v4446
        %4510 = vmatpush1.bf16.msra.mxu0 %v4445
        %4511 = vmatprep.subr.bf16.mxu0 %v4448
        %4512 = vmatpush1.bf16.msra.mxu0 %v4447
        %4513 = vmatprep.subr.bf16.mxu0 %v4450
        %4514 = vmatpush1.bf16.msra.mxu0 %v4449
        %4515 = vmatprep.subr.bf16.mxu0 %v4452
        %4516 = vmatpush1.bf16.msra.mxu0 %v4451
        %4517 = vmatprep.subr.bf16.mxu0 %v4454
        %4518 = vmatpush1.bf16.msra.mxu0 %v4453
        %4519 = vmatprep.subr.bf16.mxu0 %v4456
        %4520 = vmatpush1.bf16.msra.mxu0 %v4455
        %4521 = vmatprep.subr.bf16.mxu0 %v4458
        %4522 = vmatpush1.bf16.msra.mxu0 %v4457
        %4523 = vmatprep.mubr.bf16.mxu0 %v4286
        %4524 = vmatmul.mubr.bf16.gmra.mrb[0].mxu0 %v4285
        %v4525 = vpop.f32.mrb[0].mxu0
        %v4526 = vadd.f32 %v4324, %v4525
        %v4527 = vpop.f32.mrb[0].mxu0
        %v4528 = vadd.f32 %v4328, %v4527
        %v4529 = vpop.f32.mrb[0].mxu0
        %v4530 = vpop.f32.mrb[0].mxu0
        %4531 = vdwg.mxu0
        %v4532 = vmax.f32 %v4526, 0.0
        %v4533 = vmax.f32 %v4528, 0.0
        %v4534 = vpack.c.bf16 %v4532, %v4532
        %v4535 = vpack.c.bf16 %v4533, %v4533
        %v4536 = vld [vmem:[%s11] sm:$0xff]
        %v4537 = vld [vmem:[%s11 + $0x8] sm:$0xff]
        %v4538 = vld [vmem:[%s11 + $0x10] sm:$0xff]
        %v4539 = vld [vmem:[%s11 + $0x18] sm:$0xff]
        %v4540 = vld [vmem:[%s11 + $0x20] sm:$0xff]
        %v4541 = vld [vmem:[%s11 + $0x28] sm:$0xff]
        %v4542 = vld [vmem:[%s11 + $0x30] sm:$0xff]
        %v4543 = vld [vmem:[%s11 + $0x38] sm:$0xff]
        %v4544 = vld [vmem:[%s11 + $0x40] sm:$0xff]
        %v4545 = vld [vmem:[%s11 + $0x48] sm:$0xff]
        %v4546 = vld [vmem:[%s11 + $0x50] sm:$0xff]
        %v4547 = vld [vmem:[%s11 + $0x58] sm:$0xff]
        %v4548 = vld [vmem:[%s11 + $0x60] sm:$0xff]
        %v4549 = vld [vmem:[%s11 + $0x68] sm:$0xff]
        %v4550 = vld [vmem:[%s11 + $0x70] sm:$0xff]
        %v4551 = vld [vmem:[%s11 + $0x78] sm:$0xff]
        %v4552 = vld [vmem:[%s11 + $0x80] sm:$0xff]
        %v4553 = vld [vmem:[%s11 + $0x88] sm:$0xff]
        %v4554 = vld [vmem:[%s11 + $0x90] sm:$0xff]
        %v4555 = vld [vmem:[%s11 + $0x98] sm:$0xff]
        %v4556 = vld [vmem:[%s11 + $0xa0] sm:$0xff]
        %v4557 = vld [vmem:[%s11 + $0xa8] sm:$0xff]
        %v4558 = vld [vmem:[%s11 + $0xb0] sm:$0xff]
        %v4559 = vld [vmem:[%s11 + $0xb8] sm:$0xff]
        %v4560 = vld [vmem:[%s11 + $0xc0] sm:$0xff]
        %v4561 = vld [vmem:[%s11 + $0xc8] sm:$0xff]
        %v4562 = vld [vmem:[%s11 + $0xd0] sm:$0xff]
        %v4563 = vld [vmem:[%s11 + $0xd8] sm:$0xff]
        %v4564 = vld [vmem:[%s11 + $0xe0] sm:$0xff]
        %v4565 = vld [vmem:[%s11 + $0xe8] sm:$0xff]
        %v4566 = vld [vmem:[%s11 + $0xf0] sm:$0xff]
        %v4567 = vld [vmem:[%s11 + $0xf8] sm:$0xff]
        %v4600 = vunpack.c.l.b16 %v4536
        %v4601 = vunpack.c.h.b16 %v4536
        %v4602 = vunpack.c.l.b16 %v4537
        %v4603 = vunpack.c.h.b16 %v4537
        %v4604 = vunpack.c.l.b16 %v4538
        %v4605 = vunpack.c.h.b16 %v4538
        %v4606 = vunpack.c.l.b16 %v4539
        %v4607 = vunpack.c.h.b16 %v4539
        %v4608 = vunpack.c.l.b16 %v4540
        %v4609 = vunpack.c.h.b16 %v4540
        %v4610 = vunpack.c.l.b16 %v4541
        %v4611 = vunpack.c.h.b16 %v4541
        %v4612 = vunpack.c.l.b16 %v4542
        %v4613 = vunpack.c.h.b16 %v4542
        %v4614 = vunpack.c.l.b16 %v4543
        %v4615 = vunpack.c.h.b16 %v4543
        %v4616 = vunpack.c.l.b16 %v4544
        %v4617 = vunpack.c.h.b16 %v4544
        %v4618 = vunpack.c.l.b16 %v4545
        %v4619 = vunpack.c.h.b16 %v4545
        %v4620 = vunpack.c.l.b16 %v4546
        %v4621 = vunpack.c.h.b16 %v4546
        %v4622 = vunpack.c.l.b16 %v4547
        %v4623 = vunpack.c.h.b16 %v4547
        %v4624 = vunpack.c.l.b16 %v4548
        %v4625 = vunpack.c.h.b16 %v4548
        %v4626 = vunpack.c.l.b16 %v4549
        %v4627 = vunpack.c.h.b16 %v4549
        %v4628 = vunpack.c.l.b16 %v4550
        %v4629 = vunpack.c.h.b16 %v4550
        %v4630 = vunpack.c.l.b16 %v4551
        %v4631 = vunpack.c.h.b16 %v4551
        %v4632 = vunpack.c.l.b16 %v4552
        %v4633 = vunpack.c.h.b16 %v4552
        %v4634 = vunpack.c.l.b16 %v4553
        %v4635 = vunpack.c.h.b16 %v4553
        %v4636 = vunpack.c.l.b16 %v4554
        %v4637 = vunpack.c.h.b16 %v4554
        %v4638 = vunpack.c.l.b16 %v4555
        %v4639 = vunpack.c.h.b16 %v4555
        %v4640 = vunpack.c.l.b16 %v4556
        %v4641 = vunpack.c.h.b16 %v4556
        %v4642 = vunpack.c.l.b16 %v4557
        %v4643 = vunpack.c.h.b16 %v4557
        %v4644 = vunpack.c.l.b16 %v4558
        %v4645 = vunpack.c.h.b16 %v4558
        %v4646 = vunpack.c.l.b16 %v4559
        %v4647 = vunpack.c.h.b16 %v4559
        %v4648 = vunpack.c.l.b16 %v4560
        %v4649 = vunpack.c.h.b16 %v4560
        %v4650 = vunpack.c.l.b16 %v4561
        %v4651 = vunpack.c.h.b16 %v4561
        %v4652 = vunpack.c.l.b16 %v4562
        %v4653 = vunpack.c.h.b16 %v4562
        %v4654 = vunpack.c.l.b16 %v4563
        %v4655 = vunpack.c.h.b16 %v4563
        %v4656 = vunpack.c.l.b16 %v4564
        %v4657 = vunpack.c.h.b16 %v4564
        %v4658 = vunpack.c.l.b16 %v4565
        %v4659 = vunpack.c.h.b16 %v4565
        %v4660 = vunpack.c.l.b16 %v4566
        %v4661 = vunpack.c.h.b16 %v4566
        %v4662 = vunpack.c.l.b16 %v4567
        %v4663 = vunpack.c.h.b16 %v4567
        %v4664 = vpack.c.b16 %v4602, %v4600
        %v4665 = vpack.c.b16 %v4603, %v4601
        %v4666 = vpack.c.b16 %v4606, %v4604
        %v4667 = vpack.c.b16 %v4607, %v4605
        %v4668 = vpack.c.b16 %v4610, %v4608
        %v4669 = vpack.c.b16 %v4611, %v4609
        %v4670 = vpack.c.b16 %v4614, %v4612
        %v4671 = vpack.c.b16 %v4615, %v4613
        %v4672 = vpack.c.b16 %v4618, %v4616
        %v4673 = vpack.c.b16 %v4619, %v4617
        %v4674 = vpack.c.b16 %v4622, %v4620
        %v4675 = vpack.c.b16 %v4623, %v4621
        %v4676 = vpack.c.b16 %v4626, %v4624
        %v4677 = vpack.c.b16 %v4627, %v4625
        %v4678 = vpack.c.b16 %v4630, %v4628
        %v4679 = vpack.c.b16 %v4631, %v4629
        %v4680 = vpack.c.b16 %v4634, %v4632
        %v4681 = vpack.c.b16 %v4635, %v4633
        %v4682 = vpack.c.b16 %v4638, %v4636
        %v4683 = vpack.c.b16 %v4639, %v4637
        %v4684 = vpack.c.b16 %v4642, %v4640
        %v4685 = vpack.c.b16 %v4643, %v4641
        %v4686 = vpack.c.b16 %v4646, %v4644
        %v4687 = vpack.c.b16 %v4647, %v4645
        %v4688 = vpack.c.b16 %v4650, %v4648
        %v4689 = vpack.c.b16 %v4651, %v4649
        %v4690 = vpack.c.b16 %v4654, %v4652
        %v4691 = vpack.c.b16 %v4655, %v4653
        %v4692 = vpack.c.b16 %v4658, %v4656
        %v4693 = vpack.c.b16 %v4659, %v4657
        %v4694 = vpack.c.b16 %v4662, %v4660
        %v4695 = vpack.c.b16 %v4663, %v4661
        %4728 = vmatprep.subr.bf16.mxu0 %v4665
        %4729 = vmatpush1.bf16.msra.mxu0 %v4664
        %4730 = vmatprep.subr.bf16.mxu0 %v4667
        %4731 = vmatpush1.bf16.msra.mxu0 %v4666
        %4732 = vmatprep.subr.bf16.mxu0 %v4669
        %4733 = vmatpush1.bf16.msra.mxu0 %v4668
        %4734 = vmatprep.subr.bf16.mxu0 %v4671
        %4735 = vmatpush1.bf16.msra.mxu0 %v4670
        %4736 = vmatprep.subr.bf16.mxu0 %v4673
        %4737 = vmatpush1.bf16.msra.mxu0 %v4672
        %4738 = vmatprep.subr.bf16.mxu0 %v4675
        %4739 = vmatpush1.bf16.msra.mxu0 %v4674
        %4740 = vmatprep.subr.bf16.mxu0 %v4677
        %4741 = vmatpush1.bf16.msra.mxu0 %v4676
        %4742 = vmatprep.subr.bf16.mxu0 %v4679
        %4743 = vmatpush1.bf16.msra.mxu0 %v4678
        %4744 = vmatprep.subr.bf16.mxu0 %v4681
        %4745 = vmatpush1.bf16.msra.mxu0 %v4680
        %4746 = vmatprep.subr.bf16.mxu0 %v4683
        %4747 = vmatpush1.bf16.msra.mxu0 %v4682
        %4748 = vmatprep.subr.bf16.mxu0 %v4685
        %4749 = vmatpush1.bf16.msra.mxu0 %v4684
        %4750 = vmatprep.subr.bf16.mxu0 %v4687
        %4751 = vmatpush1.bf16.msra.mxu0 %v4686
        %4752 = vmatprep.subr.bf16.mxu0 %v4689
        %4753 = vmatpush1.bf16.msra.mxu0 %v4688
        %4754 = vmatprep.subr.bf16.mxu0 %v4691
        %4755 = vmatpush1.bf16.msra.mxu0 %v4690
        %4756 = vmatprep.subr.bf16.mxu0 %v4693
        %4757 = vmatpush1.bf16.msra.mxu0 %v4692
        %4758 = vmatprep.subr.bf16.mxu0 %v4695
        %4759 = vmatpush1.bf16.msra.mxu0 %v4694
        %4760 = vmatprep.mubr.bf16.mxu0 %v4535
        %4761 = vmatmul.mubr.bf16.gmra.mrb[0].mxu0 %v4534
        %v4762 = vpop.f32.mrb[0].mxu0
        %v4763 = vadd.f32 0.0, %v4762
        %v4764 = vpop.f32.mrb[0].mxu0
        %v4765 = vadd.f32 0.0, %v4764
        %v4766 = vpop.f32.mrb[0].mxu0
        %v4767 = vpop.f32.mrb[0].mxu0
        %4768 = vdwg.mxu0
        %v4769 = vadd.f32 %v4283, %v4763
        %v4770 = vadd.f32 %v4284, %v4765
        %v4771 = vld [vmem:[%s12] sm:$0x3]
        %v4773 = vlaneseq
        %v4774 = vshrl.u32 %v4773, 7
        %v4775 = vsub.s32 0, %v4774
        %v4776 = vrot.slane %v4771, %v4775
        %v4777 = vlaneseq
        %v4778 = vshrl.u32 %v4777, 7
        %v4779 = vsub.s32 1, %v4778
        %v4780 = vrot.slane %v4771, %v4779
        %v4783 = vadd.f32 %v4769, %v4776
        %v4784 = vadd.f32 %v4770, %v4780
        %v4785 = vpack.c.bf16 %v4783, %v4783
        %v4786 = vpack.c.bf16 %v4784, %v4784
        %v4787 = vld [vmem:[%s729] sm:$0xff]
        %v4788 = vld [vmem:[%s729 + $0x8] sm:$0xff]
        %v4789 = vld [vmem:[%s729 + $0x10] sm:$0xff]
        %v4790 = vld [vmem:[%s729 + $0x18] sm:$0xff]
        %v4791 = vld [vmem:[%s729 + $0x20] sm:$0xff]
        %v4792 = vld [vmem:[%s729 + $0x28] sm:$0xff]
        %v4793 = vld [vmem:[%s729 + $0x30] sm:$0xff]
        %v4794 = vld [vmem:[%s729 + $0x38] sm:$0xff]
        %v4795 = vld [vmem:[%s729 + $0x40] sm:$0xff]
        %v4796 = vld [vmem:[%s729 + $0x48] sm:$0xff]
        %v4797 = vld [vmem:[%s729 + $0x50] sm:$0xff]
        %v4798 = vld [vmem:[%s729 + $0x58] sm:$0xff]
        %v4799 = vld [vmem:[%s729 + $0x60] sm:$0xff]
        %v4800 = vld [vmem:[%s729 + $0x68] sm:$0xff]
        %v4801 = vld [vmem:[%s729 + $0x70] sm:$0xff]
        %v4802 = vld [vmem:[%s729 + $0x78] sm:$0xff]
        %v4803 = vld [vmem:[%s729 + $0x80] sm:$0xff]
        %v4804 = vld [vmem:[%s729 + $0x88] sm:$0xff]
        %v4805 = vld [vmem:[%s729 + $0x90] sm:$0xff]
        %v4806 = vld [vmem:[%s729 + $0x98] sm:$0xff]
        %v4807 = vld [vmem:[%s729 + $0xa0] sm:$0xff]
        %v4808 = vld [vmem:[%s729 + $0xa8] sm:$0xff]
        %v4809 = vld [vmem:[%s729 + $0xb0] sm:$0xff]
        %v4810 = vld [vmem:[%s729 + $0xb8] sm:$0xff]
        %v4811 = vld [vmem:[%s729 + $0xc0] sm:$0xff]
        %v4812 = vld [vmem:[%s729 + $0xc8] sm:$0xff]
        %v4813 = vld [vmem:[%s729 + $0xd0] sm:$0xff]
        %v4814 = vld [vmem:[%s729 + $0xd8] sm:$0xff]
        %v4815 = vld [vmem:[%s729 + $0xe0] sm:$0xff]
        %v4816 = vld [vmem:[%s729 + $0xe8] sm:$0xff]
        %v4817 = vld [vmem:[%s729 + $0xf0] sm:$0xff]
        %v4818 = vld [vmem:[%s729 + $0xf8] sm:$0xff]
        %v4819 = vld [vmem:[%s729 + $0x100] sm:$0xff]
        %v4820 = vld [vmem:[%s729 + $0x108] sm:$0xff]
        %v4821 = vld [vmem:[%s729 + $0x110] sm:$0xff]
        %v4822 = vld [vmem:[%s729 + $0x118] sm:$0xff]
        %v4823 = vld [vmem:[%s729 + $0x120] sm:$0xff]
        %v4824 = vld [vmem:[%s729 + $0x128] sm:$0xff]
        %v4825 = vld [vmem:[%s729 + $0x130] sm:$0xff]
        %v4826 = vld [vmem:[%s729 + $0x138] sm:$0xff]
        %v4827 = vld [vmem:[%s729 + $0x140] sm:$0xff]
        %v4828 = vld [vmem:[%s729 + $0x148] sm:$0xff]
        %v4829 = vld [vmem:[%s729 + $0x150] sm:$0xff]
        %v4830 = vld [vmem:[%s729 + $0x158] sm:$0xff]
        %v4831 = vld [vmem:[%s729 + $0x160] sm:$0xff]
        %v4832 = vld [vmem:[%s729 + $0x168] sm:$0xff]
        %v4833 = vld [vmem:[%s729 + $0x170] sm:$0xff]
        %v4834 = vld [vmem:[%s729 + $0x178] sm:$0xff]
        %v4835 = vld [vmem:[%s729 + $0x180] sm:$0xff]
        %v4836 = vld [vmem:[%s729 + $0x188] sm:$0xff]
        %v4837 = vld [vmem:[%s729 + $0x190] sm:$0xff]
        %v4838 = vld [vmem:[%s729 + $0x198] sm:$0xff]
        %v4839 = vld [vmem:[%s729 + $0x1a0] sm:$0xff]
        %v4840 = vld [vmem:[%s729 + $0x1a8] sm:$0xff]
        %v4841 = vld [vmem:[%s729 + $0x1b0] sm:$0xff]
        %v4842 = vld [vmem:[%s729 + $0x1b8] sm:$0xff]
        %v4843 = vld [vmem:[%s729 + $0x1c0] sm:$0xff]
        %v4844 = vld [vmem:[%s729 + $0x1c8] sm:$0xff]
        %v4845 = vld [vmem:[%s729 + $0x1d0] sm:$0xff]
        %v4846 = vld [vmem:[%s729 + $0x1d8] sm:$0xff]
        %v4847 = vld [vmem:[%s729 + $0x1e0] sm:$0xff]
        %v4848 = vld [vmem:[%s729 + $0x1e8] sm:$0xff]
        %v4849 = vld [vmem:[%s729 + $0x1f0] sm:$0xff]
        %v4850 = vld [vmem:[%s729 + $0x1f8] sm:$0xff]
        %v4851 = vld [vmem:[%s729 + $0x200] sm:$0xff]
        %v4852 = vld [vmem:[%s729 + $0x208] sm:$0xff]
        %v4853 = vld [vmem:[%s729 + $0x210] sm:$0xff]
        %v4854 = vld [vmem:[%s729 + $0x218] sm:$0xff]
        %v4855 = vld [vmem:[%s729 + $0x220] sm:$0xff]
        %v4856 = vld [vmem:[%s729 + $0x228] sm:$0xff]
        %v4857 = vld [vmem:[%s729 + $0x230] sm:$0xff]
        %v4858 = vld [vmem:[%s729 + $0x238] sm:$0xff]
        %v4859 = vld [vmem:[%s729 + $0x240] sm:$0xff]
        %v4860 = vld [vmem:[%s729 + $0x248] sm:$0xff]
        %v4861 = vld [vmem:[%s729 + $0x250] sm:$0xff]
        %v4862 = vld [vmem:[%s729 + $0x258] sm:$0xff]
        %v4863 = vld [vmem:[%s729 + $0x260] sm:$0xff]
        %v4864 = vld [vmem:[%s729 + $0x268] sm:$0xff]
        %v4865 = vld [vmem:[%s729 + $0x270] sm:$0xff]
        %v4866 = vld [vmem:[%s729 + $0x278] sm:$0xff]
        %v4867 = vld [vmem:[%s729 + $0x280] sm:$0xff]
        %v4868 = vld [vmem:[%s729 + $0x288] sm:$0xff]
        %v4869 = vld [vmem:[%s729 + $0x290] sm:$0xff]
        %v4870 = vld [vmem:[%s729 + $0x298] sm:$0xff]
        %v4871 = vld [vmem:[%s729 + $0x2a0] sm:$0xff]
        %v4872 = vld [vmem:[%s729 + $0x2a8] sm:$0xff]
        %v4873 = vld [vmem:[%s729 + $0x2b0] sm:$0xff]
        %v4874 = vld [vmem:[%s729 + $0x2b8] sm:$0xff]
        %v4875 = vld [vmem:[%s729 + $0x2c0] sm:$0xff]
        %v4876 = vld [vmem:[%s729 + $0x2c8] sm:$0xff]
        %v4877 = vld [vmem:[%s729 + $0x2d0] sm:$0xff]
        %v4878 = vld [vmem:[%s729 + $0x2d8] sm:$0xff]
        %v4879 = vld [vmem:[%s729 + $0x2e0] sm:$0xff]
        %v4880 = vld [vmem:[%s729 + $0x2e8] sm:$0xff]
        %v4881 = vld [vmem:[%s729 + $0x2f0] sm:$0xff]
        %v4882 = vld [vmem:[%s729 + $0x2f8] sm:$0xff]
        %v4883 = vld [vmem:[%s729 + $0x300] sm:$0xff]
        %v4884 = vld [vmem:[%s729 + $0x308] sm:$0xff]
        %v4885 = vld [vmem:[%s729 + $0x310] sm:$0xff]
        %v4886 = vld [vmem:[%s729 + $0x318] sm:$0xff]
        %v4887 = vld [vmem:[%s729 + $0x320] sm:$0xff]
        %v4888 = vld [vmem:[%s729 + $0x328] sm:$0xff]
        %v4889 = vld [vmem:[%s729 + $0x330] sm:$0xff]
        %v4890 = vld [vmem:[%s729 + $0x338] sm:$0xff]
        %v4891 = vld [vmem:[%s729 + $0x340] sm:$0xff]
        %v4892 = vld [vmem:[%s729 + $0x348] sm:$0xff]
        %v4893 = vld [vmem:[%s729 + $0x350] sm:$0xff]
        %v4894 = vld [vmem:[%s729 + $0x358] sm:$0xff]
        %v4895 = vld [vmem:[%s729 + $0x360] sm:$0xff]
        %v4896 = vld [vmem:[%s729 + $0x368] sm:$0xff]
        %v4897 = vld [vmem:[%s729 + $0x370] sm:$0xff]
        %v4898 = vld [vmem:[%s729 + $0x378] sm:$0xff]
        %v4899 = vld [vmem:[%s729 + $0x380] sm:$0xff]
        %v4900 = vld [vmem:[%s729 + $0x388] sm:$0xff]
        %v4901 = vld [vmem:[%s729 + $0x390] sm:$0xff]
        %v4902 = vld [vmem:[%s729 + $0x398] sm:$0xff]
        %v4903 = vld [vmem:[%s729 + $0x3a0] sm:$0xff]
        %v4904 = vld [vmem:[%s729 + $0x3a8] sm:$0xff]
        %v4905 = vld [vmem:[%s729 + $0x3b0] sm:$0xff]
        %v4906 = vld [vmem:[%s729 + $0x3b8] sm:$0xff]
        %v4907 = vld [vmem:[%s729 + $0x3c0] sm:$0xff]
        %v4908 = vld [vmem:[%s729 + $0x3c8] sm:$0xff]
        %v4909 = vld [vmem:[%s729 + $0x3d0] sm:$0xff]
        %v4910 = vld [vmem:[%s729 + $0x3d8] sm:$0xff]
        %v4911 = vld [vmem:[%s729 + $0x3e0] sm:$0xff]
        %v4912 = vld [vmem:[%s729 + $0x3e8] sm:$0xff]
        %v4913 = vld [vmem:[%s729 + $0x3f0] sm:$0xff]
        %v4914 = vld [vmem:[%s729 + $0x3f8] sm:$0xff]
        %v4915 = vld [vmem:[%s782] sm:$0xff]
        %v4917 = vlaneseq
        %v4918 = vshrl.u32 %v4917, 7
        %v4919 = vsub.s32 0, %v4918
        %v4920 = vrot.slane %v4915, %v4919
        %v4921 = vlaneseq
        %v4922 = vshrl.u32 %v4921, 7
        %v4923 = vsub.s32 1, %v4922
        %v4924 = vrot.slane %v4915, %v4923
        %v4925 = vlaneseq
        %v4926 = vshrl.u32 %v4925, 7
        %v4927 = vsub.s32 2, %v4926
        %v4928 = vrot.slane %v4915, %v4927
        %v4929 = vlaneseq
        %v4930 = vshrl.u32 %v4929, 7
        %v4931 = vsub.s32 3, %v4930
        %v4932 = vrot.slane %v4915, %v4931
        %v4933 = vlaneseq
        %v4934 = vshrl.u32 %v4933, 7
        %v4935 = vsub.s32 4, %v4934
        %v4936 = vrot.slane %v4915, %v4935
        %v4937 = vlaneseq
        %v4938 = vshrl.u32 %v4937, 7
        %v4939 = vsub.s32 5, %v4938
        %v4940 = vrot.slane %v4915, %v4939
        %v4941 = vlaneseq
        %v4942 = vshrl.u32 %v4941, 7
        %v4943 = vsub.s32 6, %v4942
        %v4944 = vrot.slane %v4915, %v4943
        %v4945 = vlaneseq
        %v4946 = vshrl.u32 %v4945, 7
        %v4947 = vsub.s32 7, %v4946
        %v4948 = vrot.slane %v4915, %v4947
        %v5085 = vunpack.c.l.b16 %v4787
        %v5086 = vunpack.c.h.b16 %v4787
        %v5087 = vunpack.c.l.b16 %v4788
        %v5088 = vunpack.c.h.b16 %v4788
        %v5089 = vunpack.c.l.b16 %v4789
        %v5090 = vunpack.c.h.b16 %v4789
        %v5091 = vunpack.c.l.b16 %v4790
        %v5092 = vunpack.c.h.b16 %v4790
        %v5093 = vunpack.c.l.b16 %v4791
        %v5094 = vunpack.c.h.b16 %v4791
        %v5095 = vunpack.c.l.b16 %v4792
        %v5096 = vunpack.c.h.b16 %v4792
        %v5097 = vunpack.c.l.b16 %v4793
        %v5098 = vunpack.c.h.b16 %v4793
        %v5099 = vunpack.c.l.b16 %v4794
        %v5100 = vunpack.c.h.b16 %v4794
        %v5101 = vunpack.c.l.b16 %v4795
        %v5102 = vunpack.c.h.b16 %v4795
        %v5103 = vunpack.c.l.b16 %v4796
        %v5104 = vunpack.c.h.b16 %v4796
        %v5105 = vunpack.c.l.b16 %v4797
        %v5106 = vunpack.c.h.b16 %v4797
        %v5107 = vunpack.c.l.b16 %v4798
        %v5108 = vunpack.c.h.b16 %v4798
        %v5109 = vunpack.c.l.b16 %v4799
        %v5110 = vunpack.c.h.b16 %v4799
        %v5111 = vunpack.c.l.b16 %v4800
        %v5112 = vunpack.c.h.b16 %v4800
        %v5113 = vunpack.c.l.b16 %v4801
        %v5114 = vunpack.c.h.b16 %v4801
        %v5115 = vunpack.c.l.b16 %v4802
        %v5116 = vunpack.c.h.b16 %v4802
        %v5117 = vunpack.c.l.b16 %v4803
        %v5118 = vunpack.c.h.b16 %v4803
        %v5119 = vunpack.c.l.b16 %v4804
        %v5120 = vunpack.c.h.b16 %v4804
        %v5121 = vunpack.c.l.b16 %v4805
        %v5122 = vunpack.c.h.b16 %v4805
        %v5123 = vunpack.c.l.b16 %v4806
        %v5124 = vunpack.c.h.b16 %v4806
        %v5125 = vunpack.c.l.b16 %v4807
        %v5126 = vunpack.c.h.b16 %v4807
        %v5127 = vunpack.c.l.b16 %v4808
        %v5128 = vunpack.c.h.b16 %v4808
        %v5129 = vunpack.c.l.b16 %v4809
        %v5130 = vunpack.c.h.b16 %v4809
        %v5131 = vunpack.c.l.b16 %v4810
        %v5132 = vunpack.c.h.b16 %v4810
        %v5133 = vunpack.c.l.b16 %v4811
        %v5134 = vunpack.c.h.b16 %v4811
        %v5135 = vunpack.c.l.b16 %v4812
        %v5136 = vunpack.c.h.b16 %v4812
        %v5137 = vunpack.c.l.b16 %v4813
        %v5138 = vunpack.c.h.b16 %v4813
        %v5139 = vunpack.c.l.b16 %v4814
        %v5140 = vunpack.c.h.b16 %v4814
        %v5141 = vunpack.c.l.b16 %v4815
        %v5142 = vunpack.c.h.b16 %v4815
        %v5143 = vunpack.c.l.b16 %v4816
        %v5144 = vunpack.c.h.b16 %v4816
        %v5145 = vunpack.c.l.b16 %v4817
        %v5146 = vunpack.c.h.b16 %v4817
        %v5147 = vunpack.c.l.b16 %v4818
        %v5148 = vunpack.c.h.b16 %v4818
        %v5149 = vunpack.c.l.b16 %v4819
        %v5150 = vunpack.c.h.b16 %v4819
        %v5151 = vunpack.c.l.b16 %v4820
        %v5152 = vunpack.c.h.b16 %v4820
        %v5153 = vunpack.c.l.b16 %v4821
        %v5154 = vunpack.c.h.b16 %v4821
        %v5155 = vunpack.c.l.b16 %v4822
        %v5156 = vunpack.c.h.b16 %v4822
        %v5157 = vunpack.c.l.b16 %v4823
        %v5158 = vunpack.c.h.b16 %v4823
        %v5159 = vunpack.c.l.b16 %v4824
        %v5160 = vunpack.c.h.b16 %v4824
        %v5161 = vunpack.c.l.b16 %v4825
        %v5162 = vunpack.c.h.b16 %v4825
        %v5163 = vunpack.c.l.b16 %v4826
        %v5164 = vunpack.c.h.b16 %v4826
        %v5165 = vunpack.c.l.b16 %v4827
        %v5166 = vunpack.c.h.b16 %v4827
        %v5167 = vunpack.c.l.b16 %v4828
        %v5168 = vunpack.c.h.b16 %v4828
        %v5169 = vunpack.c.l.b16 %v4829
        %v5170 = vunpack.c.h.b16 %v4829
        %v5171 = vunpack.c.l.b16 %v4830
        %v5172 = vunpack.c.h.b16 %v4830
        %v5173 = vunpack.c.l.b16 %v4831
        %v5174 = vunpack.c.h.b16 %v4831
        %v5175 = vunpack.c.l.b16 %v4832
        %v5176 = vunpack.c.h.b16 %v4832
        %v5177 = vunpack.c.l.b16 %v4833
        %v5178 = vunpack.c.h.b16 %v4833
        %v5179 = vunpack.c.l.b16 %v4834
        %v5180 = vunpack.c.h.b16 %v4834
        %v5181 = vunpack.c.l.b16 %v4835
        %v5182 = vunpack.c.h.b16 %v4835
        %v5183 = vunpack.c.l.b16 %v4836
        %v5184 = vunpack.c.h.b16 %v4836
        %v5185 = vunpack.c.l.b16 %v4837
        %v5186 = vunpack.c.h.b16 %v4837
        %v5187 = vunpack.c.l.b16 %v4838
        %v5188 = vunpack.c.h.b16 %v4838
        %v5189 = vunpack.c.l.b16 %v4839
        %v5190 = vunpack.c.h.b16 %v4839
        %v5191 = vunpack.c.l.b16 %v4840
        %v5192 = vunpack.c.h.b16 %v4840
        %v5193 = vunpack.c.l.b16 %v4841
        %v5194 = vunpack.c.h.b16 %v4841
        %v5195 = vunpack.c.l.b16 %v4842
        %v5196 = vunpack.c.h.b16 %v4842
        %v5197 = vunpack.c.l.b16 %v4843
        %v5198 = vunpack.c.h.b16 %v4843
        %v5199 = vunpack.c.l.b16 %v4844
        %v5200 = vunpack.c.h.b16 %v4844
        %v5201 = vunpack.c.l.b16 %v4845
        %v5202 = vunpack.c.h.b16 %v4845
        %v5203 = vunpack.c.l.b16 %v4846
        %v5204 = vunpack.c.h.b16 %v4846
        %v5205 = vunpack.c.l.b16 %v4847
        %v5206 = vunpack.c.h.b16 %v4847
        %v5207 = vunpack.c.l.b16 %v4848
        %v5208 = vunpack.c.h.b16 %v4848
        %v5209 = vunpack.c.l.b16 %v4849
        %v5210 = vunpack.c.h.b16 %v4849
        %v5211 = vunpack.c.l.b16 %v4850
        %v5212 = vunpack.c.h.b16 %v4850
        %v5213 = vunpack.c.l.b16 %v4851
        %v5214 = vunpack.c.h.b16 %v4851
        %v5215 = vunpack.c.l.b16 %v4852
        %v5216 = vunpack.c.h.b16 %v4852
        %v5217 = vunpack.c.l.b16 %v4853
        %v5218 = vunpack.c.h.b16 %v4853
        %v5219 = vunpack.c.l.b16 %v4854
        %v5220 = vunpack.c.h.b16 %v4854
        %v5221 = vunpack.c.l.b16 %v4855
        %v5222 = vunpack.c.h.b16 %v4855
        %v5223 = vunpack.c.l.b16 %v4856
        %v5224 = vunpack.c.h.b16 %v4856
        %v5225 = vunpack.c.l.b16 %v4857
        %v5226 = vunpack.c.h.b16 %v4857
        %v5227 = vunpack.c.l.b16 %v4858
        %v5228 = vunpack.c.h.b16 %v4858
        %v5229 = vunpack.c.l.b16 %v4859
        %v5230 = vunpack.c.h.b16 %v4859
        %v5231 = vunpack.c.l.b16 %v4860
        %v5232 = vunpack.c.h.b16 %v4860
        %v5233 = vunpack.c.l.b16 %v4861
        %v5234 = vunpack.c.h.b16 %v4861
        %v5235 = vunpack.c.l.b16 %v4862
        %v5236 = vunpack.c.h.b16 %v4862
        %v5237 = vunpack.c.l.b16 %v4863
        %v5238 = vunpack.c.h.b16 %v4863
        %v5239 = vunpack.c.l.b16 %v4864
        %v5240 = vunpack.c.h.b16 %v4864
        %v5241 = vunpack.c.l.b16 %v4865
        %v5242 = vunpack.c.h.b16 %v4865
        %v5243 = vunpack.c.l.b16 %v4866
        %v5244 = vunpack.c.h.b16 %v4866
        %v5245 = vunpack.c.l.b16 %v4867
        %v5246 = vunpack.c.h.b16 %v4867
        %v5247 = vunpack.c.l.b16 %v4868
        %v5248 = vunpack.c.h.b16 %v4868
        %v5249 = vunpack.c.l.b16 %v4869
        %v5250 = vunpack.c.h.b16 %v4869
        %v5251 = vunpack.c.l.b16 %v4870
        %v5252 = vunpack.c.h.b16 %v4870
        %v5253 = vunpack.c.l.b16 %v4871
        %v5254 = vunpack.c.h.b16 %v4871
        %v5255 = vunpack.c.l.b16 %v4872
        %v5256 = vunpack.c.h.b16 %v4872
        %v5257 = vunpack.c.l.b16 %v4873
        %v5258 = vunpack.c.h.b16 %v4873
        %v5259 = vunpack.c.l.b16 %v4874
        %v5260 = vunpack.c.h.b16 %v4874
        %v5261 = vunpack.c.l.b16 %v4875
        %v5262 = vunpack.c.h.b16 %v4875
        %v5263 = vunpack.c.l.b16 %v4876
        %v5264 = vunpack.c.h.b16 %v4876
        %v5265 = vunpack.c.l.b16 %v4877
        %v5266 = vunpack.c.h.b16 %v4877
        %v5267 = vunpack.c.l.b16 %v4878
        %v5268 = vunpack.c.h.b16 %v4878
        %v5269 = vunpack.c.l.b16 %v4879
        %v5270 = vunpack.c.h.b16 %v4879
        %v5271 = vunpack.c.l.b16 %v4880
        %v5272 = vunpack.c.h.b16 %v4880
        %v5273 = vunpack.c.l.b16 %v4881
        %v5274 = vunpack.c.h.b16 %v4881
        %v5275 = vunpack.c.l.b16 %v4882
        %v5276 = vunpack.c.h.b16 %v4882
        %v5277 = vunpack.c.l.b16 %v4883
        %v5278 = vunpack.c.h.b16 %v4883
        %v5279 = vunpack.c.l.b16 %v4884
        %v5280 = vunpack.c.h.b16 %v4884
        %v5281 = vunpack.c.l.b16 %v4885
        %v5282 = vunpack.c.h.b16 %v4885
        %v5283 = vunpack.c.l.b16 %v4886
        %v5284 = vunpack.c.h.b16 %v4886
        %v5285 = vunpack.c.l.b16 %v4887
        %v5286 = vunpack.c.h.b16 %v4887
        %v5287 = vunpack.c.l.b16 %v4888
        %v5288 = vunpack.c.h.b16 %v4888
        %v5289 = vunpack.c.l.b16 %v4889
        %v5290 = vunpack.c.h.b16 %v4889
        %v5291 = vunpack.c.l.b16 %v4890
        %v5292 = vunpack.c.h.b16 %v4890
        %v5293 = vunpack.c.l.b16 %v4891
        %v5294 = vunpack.c.h.b16 %v4891
        %v5295 = vunpack.c.l.b16 %v4892
        %v5296 = vunpack.c.h.b16 %v4892
        %v5297 = vunpack.c.l.b16 %v4893
        %v5298 = vunpack.c.h.b16 %v4893
        %v5299 = vunpack.c.l.b16 %v4894
        %v5300 = vunpack.c.h.b16 %v4894
        %v5301 = vunpack.c.l.b16 %v4895
        %v5302 = vunpack.c.h.b16 %v4895
        %v5303 = vunpack.c.l.b16 %v4896
        %v5304 = vunpack.c.h.b16 %v4896
        %v5305 = vunpack.c.l.b16 %v4897
        %v5306 = vunpack.c.h.b16 %v4897
        %v5307 = vunpack.c.l.b16 %v4898
        %v5308 = vunpack.c.h.b16 %v4898
        %v5309 = vunpack.c.l.b16 %v4899
        %v5310 = vunpack.c.h.b16 %v4899
        %v5311 = vunpack.c.l.b16 %v4900
        %v5312 = vunpack.c.h.b16 %v4900
        %v5313 = vunpack.c.l.b16 %v4901
        %v5314 = vunpack.c.h.b16 %v4901
        %v5315 = vunpack.c.l.b16 %v4902
        %v5316 = vunpack.c.h.b16 %v4902
        %v5317 = vunpack.c.l.b16 %v4903
        %v5318 = vunpack.c.h.b16 %v4903
        %v5319 = vunpack.c.l.b16 %v4904
        %v5320 = vunpack.c.h.b16 %v4904
        %v5321 = vunpack.c.l.b16 %v4905
        %v5322 = vunpack.c.h.b16 %v4905
        %v5323 = vunpack.c.l.b16 %v4906
        %v5324 = vunpack.c.h.b16 %v4906
        %v5325 = vunpack.c.l.b16 %v4907
        %v5326 = vunpack.c.h.b16 %v4907
        %v5327 = vunpack.c.l.b16 %v4908
        %v5328 = vunpack.c.h.b16 %v4908
        %v5329 = vunpack.c.l.b16 %v4909
        %v5330 = vunpack.c.h.b16 %v4909
        %v5331 = vunpack.c.l.b16 %v4910
        %v5332 = vunpack.c.h.b16 %v4910
        %v5333 = vunpack.c.l.b16 %v4911
        %v5334 = vunpack.c.h.b16 %v4911
        %v5335 = vunpack.c.l.b16 %v4912
        %v5336 = vunpack.c.h.b16 %v4912
        %v5337 = vunpack.c.l.b16 %v4913
        %v5338 = vunpack.c.h.b16 %v4913
        %v5339 = vunpack.c.l.b16 %v4914
        %v5340 = vunpack.c.h.b16 %v4914
        %v5341 = vpack.c.b16 %v5093, %v5085
        %v5342 = vpack.c.b16 %v5094, %v5086
        %v5343 = vpack.c.b16 %v5095, %v5087
        %v5344 = vpack.c.b16 %v5096, %v5088
        %v5345 = vpack.c.b16 %v5097, %v5089
        %v5346 = vpack.c.b16 %v5098, %v5090
        %v5347 = vpack.c.b16 %v5099, %v5091
        %v5348 = vpack.c.b16 %v5100, %v5092
        %v5349 = vpack.c.b16 %v5109, %v5101
        %v5350 = vpack.c.b16 %v5110, %v5102
        %v5351 = vpack.c.b16 %v5111, %v5103
        %v5352 = vpack.c.b16 %v5112, %v5104
        %v5353 = vpack.c.b16 %v5113, %v5105
        %v5354 = vpack.c.b16 %v5114, %v5106
        %v5355 = vpack.c.b16 %v5115, %v5107
        %v5356 = vpack.c.b16 %v5116, %v5108
        %v5357 = vpack.c.b16 %v5125, %v5117
        %v5358 = vpack.c.b16 %v5126, %v5118
        %v5359 = vpack.c.b16 %v5127, %v5119
        %v5360 = vpack.c.b16 %v5128, %v5120
        %v5361 = vpack.c.b16 %v5129, %v5121
        %v5362 = vpack.c.b16 %v5130, %v5122
        %v5363 = vpack.c.b16 %v5131, %v5123
        %v5364 = vpack.c.b16 %v5132, %v5124
        %v5365 = vpack.c.b16 %v5141, %v5133
        %v5366 = vpack.c.b16 %v5142, %v5134
        %v5367 = vpack.c.b16 %v5143, %v5135
        %v5368 = vpack.c.b16 %v5144, %v5136
        %v5369 = vpack.c.b16 %v5145, %v5137
        %v5370 = vpack.c.b16 %v5146, %v5138
        %v5371 = vpack.c.b16 %v5147, %v5139
        %v5372 = vpack.c.b16 %v5148, %v5140
        %v5373 = vpack.c.b16 %v5157, %v5149
        %v5374 = vpack.c.b16 %v5158, %v5150
        %v5375 = vpack.c.b16 %v5159, %v5151
        %v5376 = vpack.c.b16 %v5160, %v5152
        %v5377 = vpack.c.b16 %v5161, %v5153
        %v5378 = vpack.c.b16 %v5162, %v5154
        %v5379 = vpack.c.b16 %v5163, %v5155
        %v5380 = vpack.c.b16 %v5164, %v5156
        %v5381 = vpack.c.b16 %v5173, %v5165
        %v5382 = vpack.c.b16 %v5174, %v5166
        %v5383 = vpack.c.b16 %v5175, %v5167
        %v5384 = vpack.c.b16 %v5176, %v5168
        %v5385 = vpack.c.b16 %v5177, %v5169
        %v5386 = vpack.c.b16 %v5178, %v5170
        %v5387 = vpack.c.b16 %v5179, %v5171
        %v5388 = vpack.c.b16 %v5180, %v5172
        %v5389 = vpack.c.b16 %v5189, %v5181
        %v5390 = vpack.c.b16 %v5190, %v5182
        %v5391 = vpack.c.b16 %v5191, %v5183
        %v5392 = vpack.c.b16 %v5192, %v5184
        %v5393 = vpack.c.b16 %v5193, %v5185
        %v5394 = vpack.c.b16 %v5194, %v5186
        %v5395 = vpack.c.b16 %v5195, %v5187
        %v5396 = vpack.c.b16 %v5196, %v5188
        %v5397 = vpack.c.b16 %v5205, %v5197
        %v5398 = vpack.c.b16 %v5206, %v5198
        %v5399 = vpack.c.b16 %v5207, %v5199
        %v5400 = vpack.c.b16 %v5208, %v5200
        %v5401 = vpack.c.b16 %v5209, %v5201
        %v5402 = vpack.c.b16 %v5210, %v5202
        %v5403 = vpack.c.b16 %v5211, %v5203
        %v5404 = vpack.c.b16 %v5212, %v5204
        %v5405 = vpack.c.b16 %v5221, %v5213
        %v5406 = vpack.c.b16 %v5222, %v5214
        %v5407 = vpack.c.b16 %v5223, %v5215
        %v5408 = vpack.c.b16 %v5224, %v5216
        %v5409 = vpack.c.b16 %v5225, %v5217
        %v5410 = vpack.c.b16 %v5226, %v5218
        %v5411 = vpack.c.b16 %v5227, %v5219
        %v5412 = vpack.c.b16 %v5228, %v5220
        %v5413 = vpack.c.b16 %v5237, %v5229
        %v5414 = vpack.c.b16 %v5238, %v5230
        %v5415 = vpack.c.b16 %v5239, %v5231
        %v5416 = vpack.c.b16 %v5240, %v5232
        %v5417 = vpack.c.b16 %v5241, %v5233
        %v5418 = vpack.c.b16 %v5242, %v5234
        %v5419 = vpack.c.b16 %v5243, %v5235
        %v5420 = vpack.c.b16 %v5244, %v5236
        %v5421 = vpack.c.b16 %v5253, %v5245
        %v5422 = vpack.c.b16 %v5254, %v5246
        %v5423 = vpack.c.b16 %v5255, %v5247
        %v5424 = vpack.c.b16 %v5256, %v5248
        %v5425 = vpack.c.b16 %v5257, %v5249
        %v5426 = vpack.c.b16 %v5258, %v5250
        %v5427 = vpack.c.b16 %v5259, %v5251
        %v5428 = vpack.c.b16 %v5260, %v5252
        %v5429 = vpack.c.b16 %v5269, %v5261
        %v5430 = vpack.c.b16 %v5270, %v5262
        %v5431 = vpack.c.b16 %v5271, %v5263
        %v5432 = vpack.c.b16 %v5272, %v5264
        %v5433 = vpack.c.b16 %v5273, %v5265
        %v5434 = vpack.c.b16 %v5274, %v5266
        %v5435 = vpack.c.b16 %v5275, %v5267
        %v5436 = vpack.c.b16 %v5276, %v5268
        %v5437 = vpack.c.b16 %v5285, %v5277
        %v5438 = vpack.c.b16 %v5286, %v5278
        %v5439 = vpack.c.b16 %v5287, %v5279
        %v5440 = vpack.c.b16 %v5288, %v5280
        %v5441 = vpack.c.b16 %v5289, %v5281
        %v5442 = vpack.c.b16 %v5290, %v5282
        %v5443 = vpack.c.b16 %v5291, %v5283
        %v5444 = vpack.c.b16 %v5292, %v5284
        %v5445 = vpack.c.b16 %v5301, %v5293
        %v5446 = vpack.c.b16 %v5302, %v5294
        %v5447 = vpack.c.b16 %v5303, %v5295
        %v5448 = vpack.c.b16 %v5304, %v5296
        %v5449 = vpack.c.b16 %v5305, %v5297
        %v5450 = vpack.c.b16 %v5306, %v5298
        %v5451 = vpack.c.b16 %v5307, %v5299
        %v5452 = vpack.c.b16 %v5308, %v5300
        %v5453 = vpack.c.b16 %v5317, %v5309
        %v5454 = vpack.c.b16 %v5318, %v5310
        %v5455 = vpack.c.b16 %v5319, %v5311
        %v5456 = vpack.c.b16 %v5320, %v5312
        %v5457 = vpack.c.b16 %v5321, %v5313
        %v5458 = vpack.c.b16 %v5322, %v5314
        %v5459 = vpack.c.b16 %v5323, %v5315
        %v5460 = vpack.c.b16 %v5324, %v5316
        %v5461 = vpack.c.b16 %v5333, %v5325
        %v5462 = vpack.c.b16 %v5334, %v5326
        %v5463 = vpack.c.b16 %v5335, %v5327
        %v5464 = vpack.c.b16 %v5336, %v5328
        %v5465 = vpack.c.b16 %v5337, %v5329
        %v5466 = vpack.c.b16 %v5338, %v5330
        %v5467 = vpack.c.b16 %v5339, %v5331
        %v5468 = vpack.c.b16 %v5340, %v5332
        %5597 = vmatprep.subr.bf16.mxu0 %v5342
        %5598 = vmatpush1.bf16.msra.mxu0 %v5341
        %5599 = vmatprep.subr.bf16.mxu0 %v5350
        %5600 = vmatpush1.bf16.msra.mxu0 %v5349
        %5601 = vmatprep.subr.bf16.mxu0 %v5358
        %5602 = vmatpush1.bf16.msra.mxu0 %v5357
        %5603 = vmatprep.subr.bf16.mxu0 %v5366
        %5604 = vmatpush1.bf16.msra.mxu0 %v5365
        %5605 = vmatprep.subr.bf16.mxu0 %v5374
        %5606 = vmatpush1.bf16.msra.mxu0 %v5373
        %5607 = vmatprep.subr.bf16.mxu0 %v5382
        %5608 = vmatpush1.bf16.msra.mxu0 %v5381
        %5609 = vmatprep.subr.bf16.mxu0 %v5390
        %5610 = vmatpush1.bf16.msra.mxu0 %v5389
        %5611 = vmatprep.subr.bf16.mxu0 %v5398
        %5612 = vmatpush1.bf16.msra.mxu0 %v5397
        %5613 = vmatprep.subr.bf16.mxu0 %v5406
        %5614 = vmatpush1.bf16.msra.mxu0 %v5405
        %5615 = vmatprep.subr.bf16.mxu0 %v5414
        %5616 = vmatpush1.bf16.msra.mxu0 %v5413
        %5617 = vmatprep.subr.bf16.mxu0 %v5422
        %5618 = vmatpush1.bf16.msra.mxu0 %v5421
        %5619 = vmatprep.subr.bf16.mxu0 %v5430
        %5620 = vmatpush1.bf16.msra.mxu0 %v5429
        %5621 = vmatprep.subr.bf16.mxu0 %v5438
        %5622 = vmatpush1.bf16.msra.mxu0 %v5437
        %5623 = vmatprep.subr.bf16.mxu0 %v5446
        %5624 = vmatpush1.bf16.msra.mxu0 %v5445
        %5625 = vmatprep.subr.bf16.mxu0 %v5454
        %5626 = vmatpush1.bf16.msra.mxu0 %v5453
        %5627 = vmatprep.subr.bf16.mxu0 %v5462
        %5628 = vmatpush1.bf16.msra.mxu0 %v5461
        %5629 = vmatprep.mubr.bf16.mxu0 %v4786
        %5630 = vmatmul.mubr.bf16.gmra.mrb[0].mxu0 %v4785
        %v5631 = vpop.f32.mrb[0].mxu0
        %v5632 = vadd.f32 %v4920, %v5631
        %v5633 = vpop.f32.mrb[0].mxu0
        %v5634 = vadd.f32 %v4924, %v5633
        %v5635 = vpop.f32.mrb[0].mxu0
        %v5636 = vpop.f32.mrb[0].mxu0
        %5637 = vdwg.mxu0
        %5638 = vmatprep.subr.bf16.mxu0 %v5344
        %5639 = vmatpush1.bf16.msra.mxu0 %v5343
        %5640 = vmatprep.subr.bf16.mxu0 %v5352
        %5641 = vmatpush1.bf16.msra.mxu0 %v5351
        %5642 = vmatprep.subr.bf16.mxu0 %v5360
        %5643 = vmatpush1.bf16.msra.mxu0 %v5359
        %5644 = vmatprep.subr.bf16.mxu0 %v5368
        %5645 = vmatpush1.bf16.msra.mxu0 %v5367
        %5646 = vmatprep.subr.bf16.mxu0 %v5376
        %5647 = vmatpush1.bf16.msra.mxu0 %v5375
        %5648 = vmatprep.subr.bf16.mxu0 %v5384
        %5649 = vmatpush1.bf16.msra.mxu0 %v5383
        %5650 = vmatprep.subr.bf16.mxu0 %v5392
        %5651 = vmatpush1.bf16.msra.mxu0 %v5391
        %5652 = vmatprep.subr.bf16.mxu0 %v5400
        %5653 = vmatpush1.bf16.msra.mxu0 %v5399
        %5654 = vmatprep.subr.bf16.mxu0 %v5408
        %5655 = vmatpush1.bf16.msra.mxu0 %v5407
        %5656 = vmatprep.subr.bf16.mxu0 %v5416
        %5657 = vmatpush1.bf16.msra.mxu0 %v5415
        %5658 = vmatprep.subr.bf16.mxu0 %v5424
        %5659 = vmatpush1.bf16.msra.mxu0 %v5423
        %5660 = vmatprep.subr.bf16.mxu0 %v5432
        %5661 = vmatpush1.bf16.msra.mxu0 %v5431
        %5662 = vmatprep.subr.bf16.mxu0 %v5440
        %5663 = vmatpush1.bf16.msra.mxu0 %v5439
        %5664 = vmatprep.subr.bf16.mxu0 %v5448
        %5665 = vmatpush1.bf16.msra.mxu0 %v5447
        %5666 = vmatprep.subr.bf16.mxu0 %v5456
        %5667 = vmatpush1.bf16.msra.mxu0 %v5455
        %5668 = vmatprep.subr.bf16.mxu0 %v5464
        %5669 = vmatpush1.bf16.msra.mxu0 %v5463
        %5670 = vmatprep.mubr.bf16.mxu0 %v4786
        %5671 = vmatmul.mubr.bf16.gmra.mrb[0].mxu0 %v4785
        %v5672 = vpop.f32.mrb[0].mxu0
        %v5673 = vadd.f32 %v4928, %v5672
        %v5674 = vpop.f32.mrb[0].mxu0
        %v5675 = vadd.f32 %v4932, %v5674
        %v5676 = vpop.f32.mrb[0].mxu0
        %v5677 = vpop.f32.mrb[0].mxu0
        %5678 = vdwg.mxu0
        %5679 = vmatprep.subr.bf16.mxu0 %v5346
        %5680 = vmatpush1.bf16.msra.mxu0 %v5345
        %5681 = vmatprep.subr.bf16.mxu0 %v5354
        %5682 = vmatpush1.bf16.msra.mxu0 %v5353
        %5683 = vmatprep.subr.bf16.mxu0 %v5362
        %5684 = vmatpush1.bf16.msra.mxu0 %v5361
        %5685 = vmatprep.subr.bf16.mxu0 %v5370
        %5686 = vmatpush1.bf16.msra.mxu0 %v5369
        %5687 = vmatprep.subr.bf16.mxu0 %v5378
        %5688 = vmatpush1.bf16.msra.mxu0 %v5377
        %5689 = vmatprep.subr.bf16.mxu0 %v5386
        %5690 = vmatpush1.bf16.msra.mxu0 %v5385
        %5691 = vmatprep.subr.bf16.mxu0 %v5394
        %5692 = vmatpush1.bf16.msra.mxu0 %v5393
        %5693 = vmatprep.subr.bf16.mxu0 %v5402
        %5694 = vmatpush1.bf16.msra.mxu0 %v5401
        %5695 = vmatprep.subr.bf16.mxu0 %v5410
        %5696 = vmatpush1.bf16.msra.mxu0 %v5409
        %5697 = vmatprep.subr.bf16.mxu0 %v5418
        %5698 = vmatpush1.bf16.msra.mxu0 %v5417
        %5699 = vmatprep.subr.bf16.mxu0 %v5426
        %5700 = vmatpush1.bf16.msra.mxu0 %v5425
        %5701 = vmatprep.subr.bf16.mxu0 %v5434
        %5702 = vmatpush1.bf16.msra.mxu0 %v5433
        %5703 = vmatprep.subr.bf16.mxu0 %v5442
        %5704 = vmatpush1.bf16.msra.mxu0 %v5441
        %5705 = vmatprep.subr.bf16.mxu0 %v5450
        %5706 = vmatpush1.bf16.msra.mxu0 %v5449
        %5707 = vmatprep.subr.bf16.mxu0 %v5458
        %5708 = vmatpush1.bf16.msra.mxu0 %v5457
        %5709 = vmatprep.subr.bf16.mxu0 %v5466
        %5710 = vmatpush1.bf16.msra.mxu0 %v5465
        %5711 = vmatprep.mubr.bf16.mxu0 %v4786
        %5712 = vmatmul.mubr.bf16.gmra.mrb[0].mxu0 %v4785
        %v5713 = vpop.f32.mrb[0].mxu0
        %v5714 = vadd.f32 %v4936, %v5713
        %v5715 = vpop.f32.mrb[0].mxu0
        %v5716 = vadd.f32 %v4940, %v5715
        %v5717 = vpop.f32.mrb[0].mxu0
        %v5718 = vpop.f32.mrb[0].mxu0
        %5719 = vdwg.mxu0
        %5720 = vmatprep.subr.bf16.mxu0 %v5348
        %5721 = vmatpush1.bf16.msra.mxu0 %v5347
        %5722 = vmatprep.subr.bf16.mxu0 %v5356
        %5723 = vmatpush1.bf16.msra.mxu0 %v5355
        %5724 = vmatprep.subr.bf16.mxu0 %v5364
        %5725 = vmatpush1.bf16.msra.mxu0 %v5363
        %5726 = vmatprep.subr.bf16.mxu0 %v5372
        %5727 = vmatpush1.bf16.msra.mxu0 %v5371
        %5728 = vmatprep.subr.bf16.mxu0 %v5380
        %5729 = vmatpush1.bf16.msra.mxu0 %v5379
        %5730 = vmatprep.subr.bf16.mxu0 %v5388
        %5731 = vmatpush1.bf16.msra.mxu0 %v5387
        %5732 = vmatprep.subr.bf16.mxu0 %v5396
        %5733 = vmatpush1.bf16.msra.mxu0 %v5395
        %5734 = vmatprep.subr.bf16.mxu0 %v5404
        %5735 = vmatpush1.bf16.msra.mxu0 %v5403
        %5736 = vmatprep.subr.bf16.mxu0 %v5412
        %5737 = vmatpush1.bf16.msra.mxu0 %v5411
        %5738 = vmatprep.subr.bf16.mxu0 %v5420
        %5739 = vmatpush1.bf16.msra.mxu0 %v5419
        %5740 = vmatprep.subr.bf16.mxu0 %v5428
        %5741 = vmatpush1.bf16.msra.mxu0 %v5427
        %5742 = vmatprep.subr.bf16.mxu0 %v5436
        %5743 = vmatpush1.bf16.msra.mxu0 %v5435
        %5744 = vmatprep.subr.bf16.mxu0 %v5444
        %5745 = vmatpush1.bf16.msra.mxu0 %v5443
        %5746 = vmatprep.subr.bf16.mxu0 %v5452
        %5747 = vmatpush1.bf16.msra.mxu0 %v5451
        %5748 = vmatprep.subr.bf16.mxu0 %v5460
        %5749 = vmatpush1.bf16.msra.mxu0 %v5459
        %5750 = vmatprep.subr.bf16.mxu0 %v5468
        %5751 = vmatpush1.bf16.msra.mxu0 %v5467
        %5752 = vmatprep.mubr.bf16.mxu0 %v4786
        %5753 = vmatmul.mubr.bf16.gmra.mrb[0].mxu0 %v4785
        %v5754 = vpop.f32.mrb[0].mxu0
        %v5755 = vadd.f32 %v4944, %v5754
        %v5756 = vpop.f32.mrb[0].mxu0
        %v5757 = vadd.f32 %v4948, %v5756
        %v5758 = vpop.f32.mrb[0].mxu0
        %v5759 = vpop.f32.mrb[0].mxu0
        %5760 = vdwg.mxu0
        %v5769 = vcombine.low %v5632, %v5634
        %v5770 = vcombine.low %v5673, %v5675
        %v5772 = vunpack.c.l.s4 1983009808
        %v5773 = vunpack.c.0.s8 %v5772
        %v5774 = vlaneseq
        %v5775 = vshrl.u32 %v5774, 7
        %v5776 = vsub.s32 %v5773, %v5775
        %v5777 = vrot.slane %v5769, %v5776
        %v5779 = vunpack.c.l.s4 1983009808
        %v5780 = vunpack.c.0.s8 %v5779
        %v5781 = vlaneseq
        %v5782 = vshrl.u32 %v5781, 7
        %v5783 = vsub.s32 %v5780, %v5782
        %v5784 = vrot.slane %v5770, %v5783
        %v5785 = vcombine.low %v5777, %v5784
        %v5786 = vcombine.low %v5714, %v5716
        %v5787 = vcombine.low %v5755, %v5757
        %v5789 = vunpack.c.l.s4 1983009808
        %v5790 = vunpack.c.0.s8 %v5789
        %v5791 = vlaneseq
        %v5792 = vshrl.u32 %v5791, 7
        %v5793 = vsub.s32 %v5790, %v5792
        %v5794 = vrot.slane %v5786, %v5793
        %v5796 = vunpack.c.l.s4 1983009808
        %v5797 = vunpack.c.0.s8 %v5796
        %v5798 = vlaneseq
        %v5799 = vshrl.u32 %v5798, 7
        %v5800 = vsub.s32 %v5797, %v5799
        %v5801 = vrot.slane %v5787, %v5800
        %v5802 = vcombine.low %v5794, %v5801
        %5805 = vst [vmem:[%s788] sm:$0xff] %v5785
        %5806 = vst [vmem:[%s788 + $0x8] sm:$0xff] %v5802
        %s5807 = smul.u32 8, %s26
        %p5808 = scmp.lt.s32.totalorder %s5807, 15
        %s5809 = scalar_select %p5808, %s5807, 15
        %s5810 = smul.addr %s5809, 2
        %s5811 = scalar_lea.vmem %s15, %s5810
        // Predicated region
        $region104: #{latent_diffusion_forward.21} parent=98 // pred_check
          %p5812 = pneg %p369
        $region105: #{latent_diffusion_forward.21} parent=98 // pred_check_branch
          %5814 = sbr.rel (%p5812) target = $region107
        $region106: #{latent_diffusion_forward.21} parent=98 // pred_region
          %s5815 = smul.u32 8, %s26
        $region107: #{latent_diffusion_forward.21} parent=98 // pred_fallthru
          _
      $region99: #{latent_diffusion_forward.21} parent=5 // pred_fallthru
        _
      %p5816 = scmp.le.s32.totalorder 2, %s21
      // Predicated region
      $region108: #{latent_diffusion_forward.21} parent=5 // pred_check
        %p5817 = pneg %p5816
      $region109: #{latent_diffusion_forward.21} parent=5 // pred_check_branch
        %5819 = sbr.rel (%p5817) target = $region111
      $region110: #{latent_diffusion_forward.21} parent=5 // pred_region
        %s5820 = ssub.s32 %s21, 2
        // Predicated region
        $region112: #{latent_diffusion_forward.21} parent=110 // pred_check
          %p5821 = pneg %p375
        $region113: #{latent_diffusion_forward.21} parent=110 // pred_check_branch
          %5823 = sbr.rel (%p5821) target = $region115
        $region114: #{latent_diffusion_forward.21} parent=110 // pred_region
          %s5824 = smul.u32 8, %s27
          %p5825 = scmp.lt.s32.totalorder %s5824, 15
          %s5826 = scalar_select %p5825, %s5824, 15
          %s5827 = smul.addr %s5826, 2
          %s5828 = scalar_lea.vmem %s15, %s5827
        $region115: #{latent_diffusion_forward.21} parent=110 // pred_fallthru
          _
      $region111: #{latent_diffusion_forward.21} parent=5 // pred_fallthru
        _
    $region6: #{latent_diffusion_forward.21} parent=1 // loop_footer
      %s25 = sadd.s32 1, %s21
    $region7: #{latent_diffusion_forward.21} parent=1 // loop_footer_branch
      %20 = sbr.rel target = $region3
    $region8: #{latent_diffusion_forward.21} parent=1 // loop_exit
      _

</llo_original>
